<compile_context>
chip_gen: v7x
topology: tpu7x:2x2x1
jax: 0.10.0
libtpu: 0.0.40
codegen_flags: <defaults>
</compile_context>

<pallas_src>
import functools
import math

import jax
import jax.numpy as jnp
from jax import lax
from jax.experimental import pallas as pl
from jax.experimental.pallas import tpu as pltpu

LN_EPS = 1e-5
LANE = 128
NEG_INF = -1e30


def _round_up(x, m):
    return ((x + m - 1) // m) * m


def _layernorm(z, g, b):
    mu = jnp.mean(z, axis=-1, keepdims=True)
    var = jnp.mean((z - mu) ** 2, axis=-1, keepdims=True)
    return (z - mu) * lax.rsqrt(var + LN_EPS) * g + b


def _full_spec(arr):
    nd = arr.ndim
    return pl.BlockSpec(arr.shape, lambda *_: (0,) * nd)


# ----------------------------- fused full-model kernel -----------------------
def _wfe_kernel(wf_ref, bias_ref,
                proj_w_ref, pre_w1_ref, pre_w2_ref, pre_b1_ref, pre_vec_ref,
                wqkv_ref, bqkv_ref, wo_ref, w1_ref, b1_ref, w2_ref, vecd_ref,
                post_w1_ref, post_w2_ref, post_w3_ref, post_bh_ref, post_b3_ref,
                o_ref, *, heads, layers, scale):
    f32, bf16 = jnp.float32, jnp.bfloat16

    # ------------- pre-stage: d_proj Linear -> MLP_pre -> +res -> LN --------
    pre_vec = pre_vec_ref[...]                               # (4, 1, D) f32
    x0 = jnp.dot(wf_ref[0].astype(bf16), proj_w_ref[...],
                 preferred_element_type=f32) + pre_vec[0]
    h = jax.nn.gelu(jnp.dot(x0.astype(bf16), pre_w1_ref[...],
                            preferred_element_type=f32) + pre_b1_ref[...])
    m = jnp.dot(h.astype(bf16), pre_w2_ref[...],
                preferred_element_type=f32) + pre_vec[1]
    x = _layernorm(x0 + m, pre_vec[2], pre_vec[3])           # (S, D) f32

    S, D = x.shape
    bias3 = bias_ref[0][None]                                # (1, 1, S) additive mask

    # ------------- encoder stack, unrolled at trace time --------------------
    for l in range(layers):
        # Fused head-major, lane-padded QKV projection: one batched einsum
        # over 3*heads "heads"; slices below are free leading-axis views.
        xb = jnp.broadcast_to(x.astype(bf16)[None], (3 * heads, S, D))
        qkv = jnp.einsum("hsd,hdk->hsk", xb, wqkv_ref[l],
                         preferred_element_type=f32) + bqkv_ref[l]
        q, k, v = qkv[:heads], qkv[heads:2 * heads], qkv[2 * heads:]

        s = jnp.einsum("hqd,hkd->hqk", q.astype(bf16), k.astype(bf16),
                       preferred_element_type=f32) * scale   # (H, S, S)
        s = s + bias3
        s = s - jnp.max(s, axis=-1, keepdims=True)
        p = jnp.exp(s)
        p = p * pl.reciprocal(jnp.sum(p, axis=-1, keepdims=True), approx=True)

        ctx = jnp.einsum("hqk,hkd->hqd", p.astype(bf16), v.astype(bf16),
                         preferred_element_type=f32)          # (H, S, dh_pad)
        per_head = jnp.einsum("hsd,hde->hse", ctx.astype(bf16), wo_ref[l],
                              preferred_element_type=f32)     # (H, S, D)
        vec = vecd_ref[l]                                     # (6, 1, D) f32
        attn = jnp.sum(per_head, axis=0) + vec[0]

        h1 = _layernorm(x + attn, vec[1], vec[2])

        mm = jax.nn.gelu(jnp.dot(h1.astype(bf16), w1_ref[l],
                                 preferred_element_type=f32) + b1_ref[l])
        mm = jnp.dot(mm.astype(bf16), w2_ref[l],
                     preferred_element_type=f32) + vec[3]
        x = _layernorm(h1 + mm, vec[4], vec[5])

    # ------------- post-stage MLP: Lin-GELU-Lin-GELU-Lin --------------------
    post_bh = post_bh_ref[...]                                # (2, 1, Hpost)
    hp = jax.nn.gelu(jnp.dot(x.astype(bf16), post_w1_ref[...],
                             preferred_element_type=f32) + post_bh[0])
    hp = jax.nn.gelu(jnp.dot(hp.astype(bf16), post_w2_ref[...],
                             preferred_element_type=f32) + post_bh[1])
    y = jnp.dot(hp.astype(bf16), post_w3_ref[...],
                preferred_element_type=f32) + post_b3_ref[...]
    o_ref[0] = y.astype(o_ref.dtype)                          # lane-dense store


# ----------------------------- parameters ------------------------------------
def init_params(key, *, d_model, d_proj, d_latent, d_hidden_pre, d_hidden_post,
                d_hidden_attn, encoder_layers, use_bias):
    """Natural (PyTorch-like, (in, out)) f32 parameter layout."""
    keys = iter(jax.random.split(key, 1024))

    def dense(d_in, d_out, bias=True):
        w = (jax.random.normal(next(keys), (d_in, d_out), jnp.float32)
             / jnp.sqrt(jnp.float32(d_in)))
        b = (0.01 * jax.random.normal(next(keys), (d_out,), jnp.float32)
             if bias else jnp.zeros((d_out,), jnp.float32))
        return w, b

    def ln(d):
        return jnp.ones((d,), jnp.float32), jnp.zeros((d,), jnp.float32)

    proj_w, proj_b = dense(d_model, d_proj)
    pre_w1, pre_b1 = dense(d_proj, d_hidden_pre)
    pre_w2, pre_b2 = dense(d_hidden_pre, d_proj)
    pre_g, pre_beta = ln(d_proj)

    encoders = []
    for _ in range(encoder_layers):
        wq, bq = dense(d_proj, d_proj, bias=use_bias)
        wk, bk = dense(d_proj, d_proj, bias=use_bias)
        wv, bv = dense(d_proj, d_proj, bias=use_bias)
        wo, bo = dense(d_proj, d_proj, bias=use_bias)
        g1, beta1 = ln(d_proj)
        w1, b1 = dense(d_proj, d_hidden_attn)
        w2, b2 = dense(d_hidden_attn, d_proj)
        g2, beta2 = ln(d_proj)
        encoders.append(dict(wq=wq, bq=bq, wk=wk, bk=bk, wv=wv, bv=bv,
                             wo=wo, bo=bo, g1=g1, beta1=beta1,
                             w1=w1, b1=b1, w2=w2, b2=b2, g2=g2, beta2=beta2))

    post_w1, post_b1 = dense(d_proj, d_hidden_post)
    post_w2, post_b2 = dense(d_hidden_post, d_hidden_post)
    post_w3, post_b3 = dense(d_hidden_post, 2 * d_latent)

    return dict(proj_w=proj_w, proj_b=proj_b,
                pre_w1=pre_w1, pre_b1=pre_b1, pre_w2=pre_w2, pre_b2=pre_b2,
                pre_g=pre_g, pre_beta=pre_beta, encoders=encoders,
                post_w1=post_w1, post_b1=post_b1, post_w2=post_w2,
                post_b2=post_b2, post_w3=post_w3, post_b3=post_b3)


def pack_params(p, *, heads):
    """Offline re-layout: head-major / lane-padded attention weights, stacked
    per-layer tensors, packed bias/LN vectors, bf16 matmul weights, and a
    128-lane zero-padded output projection."""
    D = p["proj_w"].shape[1]
    assert D % heads == 0
    dh = D // heads
    dh_pad = _round_up(dh, LANE)
    bf = lambda a: a.astype(jnp.bfloat16)

    def head_w(w):      # (D, D) head-ordered columns -> (heads, D, dh_pad)
        w = w.reshape(D, heads, dh).transpose(1, 0, 2)
        return jnp.pad(w, ((0, 0), (0, 0), (0, dh_pad - dh)))

    def head_b(b):      # (D,) -> (heads, 1, dh_pad)
        b = b.reshape(heads, 1, dh)
        return jnp.pad(b, ((0, 0), (0, 0), (0, dh_pad - dh)))

    def head_wo(w):     # (D, D) head-ordered rows -> (heads, dh_pad, D)
        w = w.reshape(heads, dh, D)
        return jnp.pad(w, ((0, 0), (0, dh_pad - dh), (0, 0)))

    wqkv, bqkv, wo, w1, b1, w2, vecd = [], [], [], [], [], [], []
    for e in p["encoders"]:
        wqkv.append(jnp.concatenate(
            [head_w(e["wq"]), head_w(e["wk"]), head_w(e["wv"])], axis=0))
        bqkv.append(jnp.concatenate(
            [head_b(e["bq"]), head_b(e["bk"]), head_b(e["bv"])], axis=0))
        wo.append(head_wo(e["wo"]))
        w1.append(e["w1"])
        b1.append(e["b1"].reshape(1, -1))
        w2.append(e["w2"])
        vecd.append(jnp.stack([e["bo"], e["g1"], e["beta1"],
                               e["b2"], e["g2"], e["beta2"]]).reshape(6, 1, D))

    n_out = p["post_w3"].shape[1]
    n_pad = _round_up(n_out, LANE)
    post_w3 = jnp.pad(p["post_w3"], ((0, 0), (0, n_pad - n_out)))
    post_b3 = jnp.pad(p["post_b3"], ((0, n_pad - n_out),)).reshape(1, n_pad)

    return dict(
        proj_w=bf(p["proj_w"]),
        pre_w1=bf(p["pre_w1"]), pre_w2=bf(p["pre_w2"]),
        pre_b1=p["pre_b1"].reshape(1, -1),
        pre_vec=jnp.stack([p["proj_b"], p["pre_b2"],
                           p["pre_g"], p["pre_beta"]]).reshape(4, 1, D),
        wqkv=bf(jnp.stack(wqkv)), bqkv=jnp.stack(bqkv), wo=bf(jnp.stack(wo)),
        w1=bf(jnp.stack(w1)), b1=jnp.stack(b1), w2=bf(jnp.stack(w2)),
        vecd=jnp.stack(vecd),
        post_w1=bf(p["post_w1"]), post_w2=bf(p["post_w2"]), post_w3=bf(post_w3),
        post_bh=jnp.stack([p["post_b1"], p["post_b2"]])[:, None, :],
        post_b3=post_b3,
    )


# ----------------------------- wrapper ----------------------------------------
def wave_function_encoding(pp, wf, key_padding_mask=None, *, heads, d_latent):
    """wf: (B, S, d_model) -> (latent_mean, latent_log_var), each (B, S, d_latent)."""
    B, S, d_model = wf.shape
    D = pp["proj_w"].shape[1]
    L = pp["wqkv"].shape[0]
    n_pad = pp["post_w3"].shape[1]

    if key_padding_mask is None:
        bias = jnp.zeros((B, 1, S), jnp.float32)
    else:
        bias = jnp.where(key_padding_mask.reshape(B, 1, S).astype(bool),
                         jnp.float32(NEG_INF), jnp.float32(0.0))

    kernel = functools.partial(_wfe_kernel, heads=heads, layers=L,
                               scale=1.0 / math.sqrt(D // heads))

    weight_names = ("proj_w", "pre_w1", "pre_w2", "pre_b1", "pre_vec",
                    "wqkv", "bqkv", "wo", "w1", "b1", "w2", "vecd",
                    "post_w1", "post_w2", "post_w3", "post_bh", "post_b3")
    weights = [pp[n] for n in weight_names]

    out = pl.pallas_call(
        kernel,
        out_shape=jax.ShapeDtypeStruct((B, S, n_pad), jnp.float32),
        grid=(B,),
        in_specs=[pl.BlockSpec((1, S, d_model), lambda b: (b, 0, 0)),
                  pl.BlockSpec((1, 1, S), lambda b: (b, 0, 0))]
                 + [_full_spec(w) for w in weights],
        out_specs=pl.BlockSpec((1, S, n_pad), lambda b: (b, 0, 0)),
        compiler_params=pltpu.CompilerParams(
            dimension_semantics=("parallel",),
            vmem_limit_bytes=32 * 1024 * 1024),
    )(wf, bias, *weights)

    stats = out[:, :, :2 * d_latent]                  # drop lane padding
    latent_mean, latent_log_var = jnp.split(stats, 2, axis=2)
    return latent_mean, latent_log_var


# ----------------------------- driver -----------------------------------------
if __name__ == "__main__":
    B, S = 2, 8
    d_model, d_proj, d_latent = 32, 64, 16
    d_hidden_pre, d_hidden_post, d_hidden_attn = 128, 128, 128
    heads, encoder_layers = 4, 2

    key = jax.random.PRNGKey(0)
    pkey, xkey = jax.random.split(key)
    params = init_params(
        pkey, d_model=d_model, d_proj=d_proj, d_latent=d_latent,
        d_hidden_pre=d_hidden_pre, d_hidden_post=d_hidden_post,
        d_hidden_attn=d_hidden_attn, encoder_layers=encoder_layers,
        use_bias=False)
    packed = pack_params(params, heads=heads)

    wf = jax.random.normal(xkey, (B, S, d_model), jnp.float32)
    key_padding_mask = jnp.zeros((B, S), jnp.bool_).at[1, S - 1].set(True)

    fwd = jax.jit(functools.partial(wave_function_encoding,
                                    heads=heads, d_latent=d_latent))
    latent_mean, latent_log_var = fwd(packed, wf, key_padding_mask)
    jax.block_until_ready((latent_mean, latent_log_var))

    assert latent_mean.shape == (B, S, d_latent)
    assert latent_log_var.shape == (B, S, d_latent)
    assert bool(jnp.all(jnp.isfinite(latent_mean)))
    assert bool(jnp.all(jnp.isfinite(latent_log_var)))
    print("KERNEL_OK")
</pallas_src>

<mosaic_0001>
module attributes {stable_mosaic.version = 11 : i64} {
  func.func @_wfe_kernel(%arg0: i32, %arg1: memref<1x8x32xf32, #tpu.memory_space<vmem>>, %arg2: memref<1x1x8xf32, #tpu.memory_space<vmem>>, %arg3: memref<32x64xbf16, #tpu.memory_space<vmem>>, %arg4: memref<64x128xbf16, #tpu.memory_space<vmem>>, %arg5: memref<128x64xbf16, #tpu.memory_space<vmem>>, %arg6: memref<1x128xf32, #tpu.memory_space<vmem>>, %arg7: memref<4x1x64xf32, #tpu.memory_space<vmem>>, %arg8: memref<2x12x64x128xbf16, #tpu.memory_space<vmem>>, %arg9: memref<2x12x1x128xf32, #tpu.memory_space<vmem>>, %arg10: memref<2x4x128x64xbf16, #tpu.memory_space<vmem>>, %arg11: memref<2x64x128xbf16, #tpu.memory_space<vmem>>, %arg12: memref<2x1x128xf32, #tpu.memory_space<vmem>>, %arg13: memref<2x128x64xbf16, #tpu.memory_space<vmem>>, %arg14: memref<2x6x1x64xf32, #tpu.memory_space<vmem>>, %arg15: memref<64x128xbf16, #tpu.memory_space<vmem>>, %arg16: memref<128x128xbf16, #tpu.memory_space<vmem>>, %arg17: memref<128x128xbf16, #tpu.memory_space<vmem>>, %arg18: memref<2x1x128xf32, #tpu.memory_space<vmem>>, %arg19: memref<1x128xf32, #tpu.memory_space<vmem>>, %arg20: memref<1x8x128xf32, #tpu.memory_space<vmem>>) attributes {dimension_semantics = [#tpu.dimension_semantics<parallel>], iteration_bounds = array<i64: 2>, scalar_prefetch = 0 : i64, scratch_operands = 0 : i64, tpu.core_type = #tpu.core_type<tc>, window_params = [{transform_indices = @transform_0, window_bounds = array<i64: 1, 8, 32>}, {transform_indices = @transform_1, window_bounds = array<i64: 1, 1, 8>}, {pipeline_mode = #tpu.pipeline_mode<synchronous>, transform_indices = @transform_2, window_bounds = array<i64: 32, 64>}, {pipeline_mode = #tpu.pipeline_mode<synchronous>, transform_indices = @transform_3, window_bounds = array<i64: 64, 128>}, {pipeline_mode = #tpu.pipeline_mode<synchronous>, transform_indices = @transform_4, window_bounds = array<i64: 128, 64>}, {pipeline_mode = #tpu.pipeline_mode<synchronous>, transform_indices = @transform_5, window_bounds = array<i64: 1, 128>}, {pipeline_mode = #tpu.pipeline_mode<synchronous>, transform_indices = @transform_6, window_bounds = array<i64: 4, 1, 64>}, {pipeline_mode = #tpu.pipeline_mode<synchronous>, transform_indices = @transform_7, window_bounds = array<i64: 2, 12, 64, 128>}, {pipeline_mode = #tpu.pipeline_mode<synchronous>, transform_indices = @transform_8, window_bounds = array<i64: 2, 12, 1, 128>}, {pipeline_mode = #tpu.pipeline_mode<synchronous>, transform_indices = @transform_9, window_bounds = array<i64: 2, 4, 128, 64>}, {pipeline_mode = #tpu.pipeline_mode<synchronous>, transform_indices = @transform_10, window_bounds = array<i64: 2, 64, 128>}, {pipeline_mode = #tpu.pipeline_mode<synchronous>, transform_indices = @transform_11, window_bounds = array<i64: 2, 1, 128>}, {pipeline_mode = #tpu.pipeline_mode<synchronous>, transform_indices = @transform_12, window_bounds = array<i64: 2, 128, 64>}, {pipeline_mode = #tpu.pipeline_mode<synchronous>, transform_indices = @transform_13, window_bounds = array<i64: 2, 6, 1, 64>}, {pipeline_mode = #tpu.pipeline_mode<synchronous>, transform_indices = @transform_14, window_bounds = array<i64: 64, 128>}, {pipeline_mode = #tpu.pipeline_mode<synchronous>, transform_indices = @transform_15, window_bounds = array<i64: 128, 128>}, {pipeline_mode = #tpu.pipeline_mode<synchronous>, transform_indices = @transform_16, window_bounds = array<i64: 128, 128>}, {pipeline_mode = #tpu.pipeline_mode<synchronous>, transform_indices = @transform_17, window_bounds = array<i64: 2, 1, 128>}, {pipeline_mode = #tpu.pipeline_mode<synchronous>, transform_indices = @transform_18, window_bounds = array<i64: 1, 128>}, {transform_indices = @transform_19, window_bounds = array<i64: 1, 8, 128>}]} {
    %c0 = arith.constant 0 : index
    %c0_0 = arith.constant 0 : index
    %c0_1 = arith.constant 0 : index
    %0 = vector.load %arg7[%c0, %c0_0, %c0_1] : memref<4x1x64xf32, #tpu.memory_space<vmem>>, vector<4x1x64xf32>
    %c0_2 = arith.constant 0 : index
    %c0_3 = arith.constant 0 : index
    %c0_4 = arith.constant 0 : index
    %1 = vector.load %arg1[%c0_2, %c0_3, %c0_4] : memref<1x8x32xf32, #tpu.memory_space<vmem>>, vector<1x8x32xf32>
    %2 = vector.shape_cast %1 : vector<1x8x32xf32> to vector<8x32xf32>
    %3 = arith.truncf %2 : vector<8x32xf32> to vector<8x32xbf16>
    %c0_5 = arith.constant 0 : index
    %c0_6 = arith.constant 0 : index
    %4 = vector.load %arg3[%c0_5, %c0_6] : memref<32x64xbf16, #tpu.memory_space<vmem>>, vector<32x64xbf16>
    %cst = arith.constant dense<0.000000e+00> : vector<8x64xf32>
    %5 = tpu.matmul %3, %4, %cst {dimension_numbers = #tpu.dot_dimension_numbers<[1], [0], [0], [1], [0, 0, 1, 1], [], []>} : vector<8x32xbf16>, vector<32x64xbf16>, vector<8x64xf32> -> vector<8x64xf32>
    %6 = vector.extract_strided_slice %0 {offsets = [0, 0, 0], sizes = [1, 1, 64], strides = [1, 1, 1]} : vector<4x1x64xf32> to vector<1x1x64xf32>
    %7 = vector.shape_cast %6 : vector<1x1x64xf32> to vector<1x64xf32>
    %8 = vector.broadcast %7 : vector<1x64xf32> to vector<8x64xf32>
    %9 = arith.addf %5, %8 : vector<8x64xf32>
    %10 = arith.truncf %9 : vector<8x64xf32> to vector<8x64xbf16>
    %c0_7 = arith.constant 0 : index
    %c0_8 = arith.constant 0 : index
    %11 = vector.load %arg4[%c0_7, %c0_8] : memref<64x128xbf16, #tpu.memory_space<vmem>>, vector<64x128xbf16>
    %cst_9 = arith.constant dense<0.000000e+00> : vector<8x128xf32>
    %12 = tpu.matmul %10, %11, %cst_9 {dimension_numbers = #tpu.dot_dimension_numbers<[1], [0], [0], [1], [0, 0, 1, 1], [], []>} : vector<8x64xbf16>, vector<64x128xbf16>, vector<8x128xf32> -> vector<8x128xf32>
    %c0_10 = arith.constant 0 : index
    %c0_11 = arith.constant 0 : index
    %13 = vector.load %arg6[%c0_10, %c0_11] : memref<1x128xf32, #tpu.memory_space<vmem>>, vector<1x128xf32>
    %14 = vector.broadcast %13 : vector<1x128xf32> to vector<8x128xf32>
    %15 = arith.addf %12, %14 : vector<8x128xf32>
    %16 = arith.mulf %15, %15 : vector<8x128xf32>
    %17 = arith.mulf %15, %16 : vector<8x128xf32>
    %cst_12 = arith.constant 4.471500e-02 : f32
    %18 = vector.broadcast %cst_12 : f32 to vector<8x128xf32>
    %19 = arith.mulf %18, %17 : vector<8x128xf32>
    %20 = arith.addf %15, %19 : vector<8x128xf32>
    %cst_13 = arith.constant 0.797884583 : f32
    %21 = vector.broadcast %cst_13 : f32 to vector<8x128xf32>
    %22 = arith.mulf %21, %20 : vector<8x128xf32>
    %23 = math.tanh %22 : vector<8x128xf32>
    %cst_14 = arith.constant 1.000000e+00 : f32
    %24 = vector.broadcast %cst_14 : f32 to vector<8x128xf32>
    %25 = arith.addf %24, %23 : vector<8x128xf32>
    %cst_15 = arith.constant 5.000000e-01 : f32
    %26 = vector.broadcast %cst_15 : f32 to vector<8x128xf32>
    %27 = arith.mulf %26, %25 : vector<8x128xf32>
    %28 = arith.mulf %15, %27 : vector<8x128xf32>
    %29 = arith.truncf %28 : vector<8x128xf32> to vector<8x128xbf16>
    %c0_16 = arith.constant 0 : index
    %c0_17 = arith.constant 0 : index
    %30 = vector.load %arg5[%c0_16, %c0_17] : memref<128x64xbf16, #tpu.memory_space<vmem>>, vector<128x64xbf16>
    %cst_18 = arith.constant dense<0.000000e+00> : vector<8x64xf32>
    %31 = tpu.matmul %29, %30, %cst_18 {dimension_numbers = #tpu.dot_dimension_numbers<[1], [0], [0], [1], [0, 0, 1, 1], [], []>} : vector<8x128xbf16>, vector<128x64xbf16>, vector<8x64xf32> -> vector<8x64xf32>
    %32 = vector.extract_strided_slice %0 {offsets = [1, 0, 0], sizes = [1, 1, 64], strides = [1, 1, 1]} : vector<4x1x64xf32> to vector<1x1x64xf32>
    %33 = vector.shape_cast %32 : vector<1x1x64xf32> to vector<1x64xf32>
    %34 = vector.broadcast %33 : vector<1x64xf32> to vector<8x64xf32>
    %35 = arith.addf %31, %34 : vector<8x64xf32>
    %36 = arith.addf %9, %35 : vector<8x64xf32>
    %37 = vector.extract_strided_slice %0 {offsets = [2, 0, 0], sizes = [1, 1, 64], strides = [1, 1, 1]} : vector<4x1x64xf32> to vector<1x1x64xf32>
    %38 = vector.shape_cast %37 : vector<1x1x64xf32> to vector<1x64xf32>
    %39 = vector.extract_strided_slice %0 {offsets = [3, 0, 0], sizes = [1, 1, 64], strides = [1, 1, 1]} : vector<4x1x64xf32> to vector<1x1x64xf32>
    %40 = vector.shape_cast %39 : vector<1x1x64xf32> to vector<1x64xf32>
    %cst_19 = arith.constant dense<0.000000e+00> : vector<8xf32>
    %41 = vector.multi_reduction <add>, %36, %cst_19 [1] : vector<8x64xf32> to vector<8xf32>
    %42 = vector.shape_cast %41 : vector<8xf32> to vector<8x1xf32>
    %cst_20 = arith.constant 6.400000e+01 : f32
    %43 = vector.broadcast %cst_20 : f32 to vector<8x1xf32>
    %44 = arith.divf %42, %43 : vector<8x1xf32>
    %45 = vector.broadcast %44 : vector<8x1xf32> to vector<8x64xf32>
    %46 = arith.subf %36, %45 : vector<8x64xf32>
    %47 = arith.mulf %46, %46 : vector<8x64xf32>
    %cst_21 = arith.constant dense<0.000000e+00> : vector<8xf32>
    %48 = vector.multi_reduction <add>, %47, %cst_21 [1] : vector<8x64xf32> to vector<8xf32>
    %49 = vector.shape_cast %48 : vector<8xf32> to vector<8x1xf32>
    %cst_22 = arith.constant 6.400000e+01 : f32
    %50 = vector.broadcast %cst_22 : f32 to vector<8x1xf32>
    %51 = arith.divf %49, %50 : vector<8x1xf32>
    %52 = vector.broadcast %44 : vector<8x1xf32> to vector<8x64xf32>
    %53 = arith.subf %36, %52 : vector<8x64xf32>
    %cst_23 = arith.constant 9.99999974E-6 : f32
    %54 = vector.broadcast %cst_23 : f32 to vector<8x1xf32>
    %55 = arith.addf %51, %54 : vector<8x1xf32>
    %56 = math.rsqrt %55 : vector<8x1xf32>
    %57 = vector.broadcast %56 : vector<8x1xf32> to vector<8x64xf32>
    %58 = arith.mulf %53, %57 : vector<8x64xf32>
    %59 = vector.broadcast %38 : vector<1x64xf32> to vector<8x64xf32>
    %60 = arith.mulf %58, %59 : vector<8x64xf32>
    %61 = vector.broadcast %40 : vector<1x64xf32> to vector<8x64xf32>
    %62 = arith.addf %60, %61 : vector<8x64xf32>
    %c0_24 = arith.constant 0 : index
    %c0_25 = arith.constant 0 : index
    %c0_26 = arith.constant 0 : index
    %63 = vector.load %arg2[%c0_24, %c0_25, %c0_26] : memref<1x1x8xf32, #tpu.memory_space<vmem>>, vector<1x1x8xf32>
    %64 = vector.shape_cast %63 : vector<1x1x8xf32> to vector<1x8xf32>
    %65 = vector.shape_cast %64 : vector<1x8xf32> to vector<1x1x8xf32>
    %66 = arith.truncf %62 : vector<8x64xf32> to vector<8x64xbf16>
    %67 = vector.shape_cast %66 : vector<8x64xbf16> to vector<1x8x64xbf16>
    %68 = vector.shape_cast %67 : vector<1x8x64xbf16> to vector<1x8x64xbf16>
    %69 = vector.broadcast %68 : vector<1x8x64xbf16> to vector<12x8x64xbf16>
    %c0_27 = arith.constant 0 : index
    %c0_28 = arith.constant 0 : index
    %c0_29 = arith.constant 0 : index
    %c0_30 = arith.constant 0 : index
    %70 = vector.load %arg8[%c0_27, %c0_28, %c0_29, %c0_30] : memref<2x12x64x128xbf16, #tpu.memory_space<vmem>>, vector<1x12x64x128xbf16>
    %71 = vector.shape_cast %70 : vector<1x12x64x128xbf16> to vector<12x64x128xbf16>
    "tpu.trace_start"() <{level = 10 : i32, message = "hsd,hdk->hsk"}> : () -> ()
    %cst_31 = arith.constant dense<0.000000e+00> : vector<12x8x128xf32>
    %72 = tpu.matmul %69, %71, %cst_31 {dimension_numbers = #tpu.dot_dimension_numbers<[2], [1], [1], [2], [0, 0, 0, 1, 1, 2], [0], [0]>} : vector<12x8x64xbf16>, vector<12x64x128xbf16>, vector<12x8x128xf32> -> vector<12x8x128xf32>
    "tpu.trace_stop"() : () -> ()
    %c0_32 = arith.constant 0 : index
    %c0_33 = arith.constant 0 : index
    %c0_34 = arith.constant 0 : index
    %c0_35 = arith.constant 0 : index
    %73 = vector.load %arg9[%c0_32, %c0_33, %c0_34, %c0_35] : memref<2x12x1x128xf32, #tpu.memory_space<vmem>>, vector<1x12x1x128xf32>
    %74 = vector.shape_cast %73 : vector<1x12x1x128xf32> to vector<12x1x128xf32>
    %75 = vector.broadcast %74 : vector<12x1x128xf32> to vector<12x8x128xf32>
    %76 = arith.addf %72, %75 : vector<12x8x128xf32>
    %77 = vector.extract_strided_slice %76 {offsets = [0, 0, 0], sizes = [4, 8, 128], strides = [1, 1, 1]} : vector<12x8x128xf32> to vector<4x8x128xf32>
    %78 = vector.extract_strided_slice %76 {offsets = [4, 0, 0], sizes = [4, 8, 128], strides = [1, 1, 1]} : vector<12x8x128xf32> to vector<4x8x128xf32>
    %79 = vector.extract_strided_slice %76 {offsets = [8, 0, 0], sizes = [4, 8, 128], strides = [1, 1, 1]} : vector<12x8x128xf32> to vector<4x8x128xf32>
    %80 = arith.truncf %77 : vector<4x8x128xf32> to vector<4x8x128xbf16>
    %81 = arith.truncf %78 : vector<4x8x128xf32> to vector<4x8x128xbf16>
    "tpu.trace_start"() <{level = 10 : i32, message = "hqd,hkd->hqk"}> : () -> ()
    %cst_36 = arith.constant dense<0.000000e+00> : vector<4x8x8xf32>
    %82 = tpu.matmul %80, %81, %cst_36 {dimension_numbers = #tpu.dot_dimension_numbers<[2], [2], [1], [1], [0, 0, 0, 1, 1, 1], [0], [0]>} : vector<4x8x128xbf16>, vector<4x8x128xbf16>, vector<4x8x8xf32> -> vector<4x8x8xf32>
    "tpu.trace_stop"() : () -> ()
    %cst_37 = arith.constant 2.500000e-01 : f32
    %83 = vector.broadcast %cst_37 : f32 to vector<4x8x8xf32>
    %84 = arith.mulf %82, %83 : vector<4x8x8xf32>
    %85 = vector.broadcast %65 : vector<1x1x8xf32> to vector<4x8x8xf32>
    %86 = arith.addf %84, %85 : vector<4x8x8xf32>
    %cst_38 = arith.constant dense<0xFF800000> : vector<4x8xf32>
    %87 = vector.multi_reduction <maximumf>, %86, %cst_38 [2] : vector<4x8x8xf32> to vector<4x8xf32>
    %88 = vector.shape_cast %87 : vector<4x8xf32> to vector<4x8x1xf32>
    %89 = vector.broadcast %88 : vector<4x8x1xf32> to vector<4x8x8xf32>
    %90 = arith.subf %86, %89 : vector<4x8x8xf32>
    %91 = math.exp %90 : vector<4x8x8xf32>
    %cst_39 = arith.constant dense<0.000000e+00> : vector<4x8xf32>
    %92 = vector.multi_reduction <add>, %91, %cst_39 [2] : vector<4x8x8xf32> to vector<4x8xf32>
    %93 = vector.shape_cast %92 : vector<4x8xf32> to vector<4x8x1xf32>
    %94 = tpu.reciprocal %93 {approx = true} : vector<4x8x1xf32> -> vector<4x8x1xf32>
    %95 = vector.broadcast %94 : vector<4x8x1xf32> to vector<4x8x8xf32>
    %96 = arith.mulf %91, %95 : vector<4x8x8xf32>
    %97 = arith.truncf %96 : vector<4x8x8xf32> to vector<4x8x8xbf16>
    %98 = arith.truncf %79 : vector<4x8x128xf32> to vector<4x8x128xbf16>
    "tpu.trace_start"() <{level = 10 : i32, message = "hqk,hkd->hqd"}> : () -> ()
    %cst_40 = arith.constant dense<0.000000e+00> : vector<4x8x128xf32>
    %99 = tpu.matmul %97, %98, %cst_40 {dimension_numbers = #tpu.dot_dimension_numbers<[2], [1], [1], [2], [0, 0, 0, 1, 1, 2], [0], [0]>} : vector<4x8x8xbf16>, vector<4x8x128xbf16>, vector<4x8x128xf32> -> vector<4x8x128xf32>
    "tpu.trace_stop"() : () -> ()
    %100 = arith.truncf %99 : vector<4x8x128xf32> to vector<4x8x128xbf16>
    %c0_41 = arith.constant 0 : index
    %c0_42 = arith.constant 0 : index
    %c0_43 = arith.constant 0 : index
    %c0_44 = arith.constant 0 : index
    %101 = vector.load %arg10[%c0_41, %c0_42, %c0_43, %c0_44] : memref<2x4x128x64xbf16, #tpu.memory_space<vmem>>, vector<1x4x128x64xbf16>
    %102 = vector.shape_cast %101 : vector<1x4x128x64xbf16> to vector<4x128x64xbf16>
    "tpu.trace_start"() <{level = 10 : i32, message = "hsd,hde->hse"}> : () -> ()
    %cst_45 = arith.constant dense<0.000000e+00> : vector<4x8x64xf32>
    %103 = tpu.matmul %100, %102, %cst_45 {dimension_numbers = #tpu.dot_dimension_numbers<[2], [1], [1], [2], [0, 0, 0, 1, 1, 2], [0], [0]>} : vector<4x8x128xbf16>, vector<4x128x64xbf16>, vector<4x8x64xf32> -> vector<4x8x64xf32>
    "tpu.trace_stop"() : () -> ()
    %c0_46 = arith.constant 0 : index
    %c0_47 = arith.constant 0 : index
    %c0_48 = arith.constant 0 : index
    %c0_49 = arith.constant 0 : index
    %104 = vector.load %arg14[%c0_46, %c0_47, %c0_48, %c0_49] : memref<2x6x1x64xf32, #tpu.memory_space<vmem>>, vector<1x6x1x64xf32>
    %105 = vector.shape_cast %104 : vector<1x6x1x64xf32> to vector<6x1x64xf32>
    %cst_50 = arith.constant dense<0.000000e+00> : vector<8x64xf32>
    %106 = vector.multi_reduction <add>, %103, %cst_50 [0] : vector<4x8x64xf32> to vector<8x64xf32>
    %107 = vector.extract_strided_slice %105 {offsets = [0, 0, 0], sizes = [1, 1, 64], strides = [1, 1, 1]} : vector<6x1x64xf32> to vector<1x1x64xf32>
    %108 = vector.shape_cast %107 : vector<1x1x64xf32> to vector<1x64xf32>
    %109 = vector.broadcast %108 : vector<1x64xf32> to vector<8x64xf32>
    %110 = arith.addf %106, %109 : vector<8x64xf32>
    %111 = arith.addf %62, %110 : vector<8x64xf32>
    %112 = vector.extract_strided_slice %105 {offsets = [1, 0, 0], sizes = [1, 1, 64], strides = [1, 1, 1]} : vector<6x1x64xf32> to vector<1x1x64xf32>
    %113 = vector.shape_cast %112 : vector<1x1x64xf32> to vector<1x64xf32>
    %114 = vector.extract_strided_slice %105 {offsets = [2, 0, 0], sizes = [1, 1, 64], strides = [1, 1, 1]} : vector<6x1x64xf32> to vector<1x1x64xf32>
    %115 = vector.shape_cast %114 : vector<1x1x64xf32> to vector<1x64xf32>
    %cst_51 = arith.constant dense<0.000000e+00> : vector<8xf32>
    %116 = vector.multi_reduction <add>, %111, %cst_51 [1] : vector<8x64xf32> to vector<8xf32>
    %117 = vector.shape_cast %116 : vector<8xf32> to vector<8x1xf32>
    %cst_52 = arith.constant 6.400000e+01 : f32
    %118 = vector.broadcast %cst_52 : f32 to vector<8x1xf32>
    %119 = arith.divf %117, %118 : vector<8x1xf32>
    %120 = vector.broadcast %119 : vector<8x1xf32> to vector<8x64xf32>
    %121 = arith.subf %111, %120 : vector<8x64xf32>
    %122 = arith.mulf %121, %121 : vector<8x64xf32>
    %cst_53 = arith.constant dense<0.000000e+00> : vector<8xf32>
    %123 = vector.multi_reduction <add>, %122, %cst_53 [1] : vector<8x64xf32> to vector<8xf32>
    %124 = vector.shape_cast %123 : vector<8xf32> to vector<8x1xf32>
    %cst_54 = arith.constant 6.400000e+01 : f32
    %125 = vector.broadcast %cst_54 : f32 to vector<8x1xf32>
    %126 = arith.divf %124, %125 : vector<8x1xf32>
    %127 = vector.broadcast %119 : vector<8x1xf32> to vector<8x64xf32>
    %128 = arith.subf %111, %127 : vector<8x64xf32>
    %cst_55 = arith.constant 9.99999974E-6 : f32
    %129 = vector.broadcast %cst_55 : f32 to vector<8x1xf32>
    %130 = arith.addf %126, %129 : vector<8x1xf32>
    %131 = math.rsqrt %130 : vector<8x1xf32>
    %132 = vector.broadcast %131 : vector<8x1xf32> to vector<8x64xf32>
    %133 = arith.mulf %128, %132 : vector<8x64xf32>
    %134 = vector.broadcast %113 : vector<1x64xf32> to vector<8x64xf32>
    %135 = arith.mulf %133, %134 : vector<8x64xf32>
    %136 = vector.broadcast %115 : vector<1x64xf32> to vector<8x64xf32>
    %137 = arith.addf %135, %136 : vector<8x64xf32>
    %138 = arith.truncf %137 : vector<8x64xf32> to vector<8x64xbf16>
    %c0_56 = arith.constant 0 : index
    %c0_57 = arith.constant 0 : index
    %c0_58 = arith.constant 0 : index
    %139 = vector.load %arg11[%c0_56, %c0_57, %c0_58] : memref<2x64x128xbf16, #tpu.memory_space<vmem>>, vector<1x64x128xbf16>
    %140 = vector.shape_cast %139 : vector<1x64x128xbf16> to vector<64x128xbf16>
    %cst_59 = arith.constant dense<0.000000e+00> : vector<8x128xf32>
    %141 = tpu.matmul %138, %140, %cst_59 {dimension_numbers = #tpu.dot_dimension_numbers<[1], [0], [0], [1], [0, 0, 1, 1], [], []>} : vector<8x64xbf16>, vector<64x128xbf16>, vector<8x128xf32> -> vector<8x128xf32>
    %c0_60 = arith.constant 0 : index
    %c0_61 = arith.constant 0 : index
    %c0_62 = arith.constant 0 : index
    %142 = vector.load %arg12[%c0_60, %c0_61, %c0_62] : memref<2x1x128xf32, #tpu.memory_space<vmem>>, vector<1x1x128xf32>
    %143 = vector.shape_cast %142 : vector<1x1x128xf32> to vector<1x128xf32>
    %144 = vector.broadcast %143 : vector<1x128xf32> to vector<8x128xf32>
    %145 = arith.addf %141, %144 : vector<8x128xf32>
    %146 = arith.mulf %145, %145 : vector<8x128xf32>
    %147 = arith.mulf %145, %146 : vector<8x128xf32>
    %cst_63 = arith.constant 4.471500e-02 : f32
    %148 = vector.broadcast %cst_63 : f32 to vector<8x128xf32>
    %149 = arith.mulf %148, %147 : vector<8x128xf32>
    %150 = arith.addf %145, %149 : vector<8x128xf32>
    %cst_64 = arith.constant 0.797884583 : f32
    %151 = vector.broadcast %cst_64 : f32 to vector<8x128xf32>
    %152 = arith.mulf %151, %150 : vector<8x128xf32>
    %153 = math.tanh %152 : vector<8x128xf32>
    %cst_65 = arith.constant 1.000000e+00 : f32
    %154 = vector.broadcast %cst_65 : f32 to vector<8x128xf32>
    %155 = arith.addf %154, %153 : vector<8x128xf32>
    %cst_66 = arith.constant 5.000000e-01 : f32
    %156 = vector.broadcast %cst_66 : f32 to vector<8x128xf32>
    %157 = arith.mulf %156, %155 : vector<8x128xf32>
    %158 = arith.mulf %145, %157 : vector<8x128xf32>
    %159 = arith.truncf %158 : vector<8x128xf32> to vector<8x128xbf16>
    %c0_67 = arith.constant 0 : index
    %c0_68 = arith.constant 0 : index
    %c0_69 = arith.constant 0 : index
    %160 = vector.load %arg13[%c0_67, %c0_68, %c0_69] : memref<2x128x64xbf16, #tpu.memory_space<vmem>>, vector<1x128x64xbf16>
    %161 = vector.shape_cast %160 : vector<1x128x64xbf16> to vector<128x64xbf16>
    %cst_70 = arith.constant dense<0.000000e+00> : vector<8x64xf32>
    %162 = tpu.matmul %159, %161, %cst_70 {dimension_numbers = #tpu.dot_dimension_numbers<[1], [0], [0], [1], [0, 0, 1, 1], [], []>} : vector<8x128xbf16>, vector<128x64xbf16>, vector<8x64xf32> -> vector<8x64xf32>
    %163 = vector.extract_strided_slice %105 {offsets = [3, 0, 0], sizes = [1, 1, 64], strides = [1, 1, 1]} : vector<6x1x64xf32> to vector<1x1x64xf32>
    %164 = vector.shape_cast %163 : vector<1x1x64xf32> to vector<1x64xf32>
    %165 = vector.broadcast %164 : vector<1x64xf32> to vector<8x64xf32>
    %166 = arith.addf %162, %165 : vector<8x64xf32>
    %167 = arith.addf %137, %166 : vector<8x64xf32>
    %168 = vector.extract_strided_slice %105 {offsets = [4, 0, 0], sizes = [1, 1, 64], strides = [1, 1, 1]} : vector<6x1x64xf32> to vector<1x1x64xf32>
    %169 = vector.shape_cast %168 : vector<1x1x64xf32> to vector<1x64xf32>
    %170 = vector.extract_strided_slice %105 {offsets = [5, 0, 0], sizes = [1, 1, 64], strides = [1, 1, 1]} : vector<6x1x64xf32> to vector<1x1x64xf32>
    %171 = vector.shape_cast %170 : vector<1x1x64xf32> to vector<1x64xf32>
    %cst_71 = arith.constant dense<0.000000e+00> : vector<8xf32>
    %172 = vector.multi_reduction <add>, %167, %cst_71 [1] : vector<8x64xf32> to vector<8xf32>
    %173 = vector.shape_cast %172 : vector<8xf32> to vector<8x1xf32>
    %cst_72 = arith.constant 6.400000e+01 : f32
    %174 = vector.broadcast %cst_72 : f32 to vector<8x1xf32>
    %175 = arith.divf %173, %174 : vector<8x1xf32>
    %176 = vector.broadcast %175 : vector<8x1xf32> to vector<8x64xf32>
    %177 = arith.subf %167, %176 : vector<8x64xf32>
    %178 = arith.mulf %177, %177 : vector<8x64xf32>
    %cst_73 = arith.constant dense<0.000000e+00> : vector<8xf32>
    %179 = vector.multi_reduction <add>, %178, %cst_73 [1] : vector<8x64xf32> to vector<8xf32>
    %180 = vector.shape_cast %179 : vector<8xf32> to vector<8x1xf32>
    %cst_74 = arith.constant 6.400000e+01 : f32
    %181 = vector.broadcast %cst_74 : f32 to vector<8x1xf32>
    %182 = arith.divf %180, %181 : vector<8x1xf32>
    %183 = vector.broadcast %175 : vector<8x1xf32> to vector<8x64xf32>
    %184 = arith.subf %167, %183 : vector<8x64xf32>
    %cst_75 = arith.constant 9.99999974E-6 : f32
    %185 = vector.broadcast %cst_75 : f32 to vector<8x1xf32>
    %186 = arith.addf %182, %185 : vector<8x1xf32>
    %187 = math.rsqrt %186 : vector<8x1xf32>
    %188 = vector.broadcast %187 : vector<8x1xf32> to vector<8x64xf32>
    %189 = arith.mulf %184, %188 : vector<8x64xf32>
    %190 = vector.broadcast %169 : vector<1x64xf32> to vector<8x64xf32>
    %191 = arith.mulf %189, %190 : vector<8x64xf32>
    %192 = vector.broadcast %171 : vector<1x64xf32> to vector<8x64xf32>
    %193 = arith.addf %191, %192 : vector<8x64xf32>
    %194 = arith.truncf %193 : vector<8x64xf32> to vector<8x64xbf16>
    %195 = vector.shape_cast %194 : vector<8x64xbf16> to vector<1x8x64xbf16>
    %196 = vector.shape_cast %195 : vector<1x8x64xbf16> to vector<1x8x64xbf16>
    %197 = vector.broadcast %196 : vector<1x8x64xbf16> to vector<12x8x64xbf16>
    %c1 = arith.constant 1 : index
    %c0_76 = arith.constant 0 : index
    %c0_77 = arith.constant 0 : index
    %c0_78 = arith.constant 0 : index
    %198 = vector.load %arg8[%c1, %c0_76, %c0_77, %c0_78] : memref<2x12x64x128xbf16, #tpu.memory_space<vmem>>, vector<1x12x64x128xbf16>
    %199 = vector.shape_cast %198 : vector<1x12x64x128xbf16> to vector<12x64x128xbf16>
    "tpu.trace_start"() <{level = 10 : i32, message = "hsd,hdk->hsk"}> : () -> ()
    %cst_79 = arith.constant dense<0.000000e+00> : vector<12x8x128xf32>
    %200 = tpu.matmul %197, %199, %cst_79 {dimension_numbers = #tpu.dot_dimension_numbers<[2], [1], [1], [2], [0, 0, 0, 1, 1, 2], [0], [0]>} : vector<12x8x64xbf16>, vector<12x64x128xbf16>, vector<12x8x128xf32> -> vector<12x8x128xf32>
    "tpu.trace_stop"() : () -> ()
    %c1_80 = arith.constant 1 : index
    %c0_81 = arith.constant 0 : index
    %c0_82 = arith.constant 0 : index
    %c0_83 = arith.constant 0 : index
    %201 = vector.load %arg9[%c1_80, %c0_81, %c0_82, %c0_83] : memref<2x12x1x128xf32, #tpu.memory_space<vmem>>, vector<1x12x1x128xf32>
    %202 = vector.shape_cast %201 : vector<1x12x1x128xf32> to vector<12x1x128xf32>
    %203 = vector.broadcast %202 : vector<12x1x128xf32> to vector<12x8x128xf32>
    %204 = arith.addf %200, %203 : vector<12x8x128xf32>
    %205 = vector.extract_strided_slice %204 {offsets = [0, 0, 0], sizes = [4, 8, 128], strides = [1, 1, 1]} : vector<12x8x128xf32> to vector<4x8x128xf32>
    %206 = vector.extract_strided_slice %204 {offsets = [4, 0, 0], sizes = [4, 8, 128], strides = [1, 1, 1]} : vector<12x8x128xf32> to vector<4x8x128xf32>
    %207 = vector.extract_strided_slice %204 {offsets = [8, 0, 0], sizes = [4, 8, 128], strides = [1, 1, 1]} : vector<12x8x128xf32> to vector<4x8x128xf32>
    %208 = arith.truncf %205 : vector<4x8x128xf32> to vector<4x8x128xbf16>
    %209 = arith.truncf %206 : vector<4x8x128xf32> to vector<4x8x128xbf16>
    "tpu.trace_start"() <{level = 10 : i32, message = "hqd,hkd->hqk"}> : () -> ()
    %cst_84 = arith.constant dense<0.000000e+00> : vector<4x8x8xf32>
    %210 = tpu.matmul %208, %209, %cst_84 {dimension_numbers = #tpu.dot_dimension_numbers<[2], [2], [1], [1], [0, 0, 0, 1, 1, 1], [0], [0]>} : vector<4x8x128xbf16>, vector<4x8x128xbf16>, vector<4x8x8xf32> -> vector<4x8x8xf32>
    "tpu.trace_stop"() : () -> ()
    %cst_85 = arith.constant 2.500000e-01 : f32
    %211 = vector.broadcast %cst_85 : f32 to vector<4x8x8xf32>
    %212 = arith.mulf %210, %211 : vector<4x8x8xf32>
    %213 = vector.broadcast %65 : vector<1x1x8xf32> to vector<4x8x8xf32>
    %214 = arith.addf %212, %213 : vector<4x8x8xf32>
    %cst_86 = arith.constant dense<0xFF800000> : vector<4x8xf32>
    %215 = vector.multi_reduction <maximumf>, %214, %cst_86 [2] : vector<4x8x8xf32> to vector<4x8xf32>
    %216 = vector.shape_cast %215 : vector<4x8xf32> to vector<4x8x1xf32>
    %217 = vector.broadcast %216 : vector<4x8x1xf32> to vector<4x8x8xf32>
    %218 = arith.subf %214, %217 : vector<4x8x8xf32>
    %219 = math.exp %218 : vector<4x8x8xf32>
    %cst_87 = arith.constant dense<0.000000e+00> : vector<4x8xf32>
    %220 = vector.multi_reduction <add>, %219, %cst_87 [2] : vector<4x8x8xf32> to vector<4x8xf32>
    %221 = vector.shape_cast %220 : vector<4x8xf32> to vector<4x8x1xf32>
    %222 = tpu.reciprocal %221 {approx = true} : vector<4x8x1xf32> -> vector<4x8x1xf32>
    %223 = vector.broadcast %222 : vector<4x8x1xf32> to vector<4x8x8xf32>
    %224 = arith.mulf %219, %223 : vector<4x8x8xf32>
    %225 = arith.truncf %224 : vector<4x8x8xf32> to vector<4x8x8xbf16>
    %226 = arith.truncf %207 : vector<4x8x128xf32> to vector<4x8x128xbf16>
    "tpu.trace_start"() <{level = 10 : i32, message = "hqk,hkd->hqd"}> : () -> ()
    %cst_88 = arith.constant dense<0.000000e+00> : vector<4x8x128xf32>
    %227 = tpu.matmul %225, %226, %cst_88 {dimension_numbers = #tpu.dot_dimension_numbers<[2], [1], [1], [2], [0, 0, 0, 1, 1, 2], [0], [0]>} : vector<4x8x8xbf16>, vector<4x8x128xbf16>, vector<4x8x128xf32> -> vector<4x8x128xf32>
    "tpu.trace_stop"() : () -> ()
    %228 = arith.truncf %227 : vector<4x8x128xf32> to vector<4x8x128xbf16>
    %c1_89 = arith.constant 1 : index
    %c0_90 = arith.constant 0 : index
    %c0_91 = arith.constant 0 : index
    %c0_92 = arith.constant 0 : index
    %229 = vector.load %arg10[%c1_89, %c0_90, %c0_91, %c0_92] : memref<2x4x128x64xbf16, #tpu.memory_space<vmem>>, vector<1x4x128x64xbf16>
    %230 = vector.shape_cast %229 : vector<1x4x128x64xbf16> to vector<4x128x64xbf16>
    "tpu.trace_start"() <{level = 10 : i32, message = "hsd,hde->hse"}> : () -> ()
    %cst_93 = arith.constant dense<0.000000e+00> : vector<4x8x64xf32>
    %231 = tpu.matmul %228, %230, %cst_93 {dimension_numbers = #tpu.dot_dimension_numbers<[2], [1], [1], [2], [0, 0, 0, 1, 1, 2], [0], [0]>} : vector<4x8x128xbf16>, vector<4x128x64xbf16>, vector<4x8x64xf32> -> vector<4x8x64xf32>
    "tpu.trace_stop"() : () -> ()
    %c1_94 = arith.constant 1 : index
    %c0_95 = arith.constant 0 : index
    %c0_96 = arith.constant 0 : index
    %c0_97 = arith.constant 0 : index
    %232 = vector.load %arg14[%c1_94, %c0_95, %c0_96, %c0_97] : memref<2x6x1x64xf32, #tpu.memory_space<vmem>>, vector<1x6x1x64xf32>
    %233 = vector.shape_cast %232 : vector<1x6x1x64xf32> to vector<6x1x64xf32>
    %cst_98 = arith.constant dense<0.000000e+00> : vector<8x64xf32>
    %234 = vector.multi_reduction <add>, %231, %cst_98 [0] : vector<4x8x64xf32> to vector<8x64xf32>
    %235 = vector.extract_strided_slice %233 {offsets = [0, 0, 0], sizes = [1, 1, 64], strides = [1, 1, 1]} : vector<6x1x64xf32> to vector<1x1x64xf32>
    %236 = vector.shape_cast %235 : vector<1x1x64xf32> to vector<1x64xf32>
    %237 = vector.broadcast %236 : vector<1x64xf32> to vector<8x64xf32>
    %238 = arith.addf %234, %237 : vector<8x64xf32>
    %239 = arith.addf %193, %238 : vector<8x64xf32>
    %240 = vector.extract_strided_slice %233 {offsets = [1, 0, 0], sizes = [1, 1, 64], strides = [1, 1, 1]} : vector<6x1x64xf32> to vector<1x1x64xf32>
    %241 = vector.shape_cast %240 : vector<1x1x64xf32> to vector<1x64xf32>
    %242 = vector.extract_strided_slice %233 {offsets = [2, 0, 0], sizes = [1, 1, 64], strides = [1, 1, 1]} : vector<6x1x64xf32> to vector<1x1x64xf32>
    %243 = vector.shape_cast %242 : vector<1x1x64xf32> to vector<1x64xf32>
    %cst_99 = arith.constant dense<0.000000e+00> : vector<8xf32>
    %244 = vector.multi_reduction <add>, %239, %cst_99 [1] : vector<8x64xf32> to vector<8xf32>
    %245 = vector.shape_cast %244 : vector<8xf32> to vector<8x1xf32>
    %cst_100 = arith.constant 6.400000e+01 : f32
    %246 = vector.broadcast %cst_100 : f32 to vector<8x1xf32>
    %247 = arith.divf %245, %246 : vector<8x1xf32>
    %248 = vector.broadcast %247 : vector<8x1xf32> to vector<8x64xf32>
    %249 = arith.subf %239, %248 : vector<8x64xf32>
    %250 = arith.mulf %249, %249 : vector<8x64xf32>
    %cst_101 = arith.constant dense<0.000000e+00> : vector<8xf32>
    %251 = vector.multi_reduction <add>, %250, %cst_101 [1] : vector<8x64xf32> to vector<8xf32>
    %252 = vector.shape_cast %251 : vector<8xf32> to vector<8x1xf32>
    %cst_102 = arith.constant 6.400000e+01 : f32
    %253 = vector.broadcast %cst_102 : f32 to vector<8x1xf32>
    %254 = arith.divf %252, %253 : vector<8x1xf32>
    %255 = vector.broadcast %247 : vector<8x1xf32> to vector<8x64xf32>
    %256 = arith.subf %239, %255 : vector<8x64xf32>
    %cst_103 = arith.constant 9.99999974E-6 : f32
    %257 = vector.broadcast %cst_103 : f32 to vector<8x1xf32>
    %258 = arith.addf %254, %257 : vector<8x1xf32>
    %259 = math.rsqrt %258 : vector<8x1xf32>
    %260 = vector.broadcast %259 : vector<8x1xf32> to vector<8x64xf32>
    %261 = arith.mulf %256, %260 : vector<8x64xf32>
    %262 = vector.broadcast %241 : vector<1x64xf32> to vector<8x64xf32>
    %263 = arith.mulf %261, %262 : vector<8x64xf32>
    %264 = vector.broadcast %243 : vector<1x64xf32> to vector<8x64xf32>
    %265 = arith.addf %263, %264 : vector<8x64xf32>
    %266 = arith.truncf %265 : vector<8x64xf32> to vector<8x64xbf16>
    %c1_104 = arith.constant 1 : index
    %c0_105 = arith.constant 0 : index
    %c0_106 = arith.constant 0 : index
    %267 = vector.load %arg11[%c1_104, %c0_105, %c0_106] : memref<2x64x128xbf16, #tpu.memory_space<vmem>>, vector<1x64x128xbf16>
    %268 = vector.shape_cast %267 : vector<1x64x128xbf16> to vector<64x128xbf16>
    %cst_107 = arith.constant dense<0.000000e+00> : vector<8x128xf32>
    %269 = tpu.matmul %266, %268, %cst_107 {dimension_numbers = #tpu.dot_dimension_numbers<[1], [0], [0], [1], [0, 0, 1, 1], [], []>} : vector<8x64xbf16>, vector<64x128xbf16>, vector<8x128xf32> -> vector<8x128xf32>
    %c1_108 = arith.constant 1 : index
    %c0_109 = arith.constant 0 : index
    %c0_110 = arith.constant 0 : index
    %270 = vector.load %arg12[%c1_108, %c0_109, %c0_110] : memref<2x1x128xf32, #tpu.memory_space<vmem>>, vector<1x1x128xf32>
    %271 = vector.shape_cast %270 : vector<1x1x128xf32> to vector<1x128xf32>
    %272 = vector.broadcast %271 : vector<1x128xf32> to vector<8x128xf32>
    %273 = arith.addf %269, %272 : vector<8x128xf32>
    %274 = arith.mulf %273, %273 : vector<8x128xf32>
    %275 = arith.mulf %273, %274 : vector<8x128xf32>
    %cst_111 = arith.constant 4.471500e-02 : f32
    %276 = vector.broadcast %cst_111 : f32 to vector<8x128xf32>
    %277 = arith.mulf %276, %275 : vector<8x128xf32>
    %278 = arith.addf %273, %277 : vector<8x128xf32>
    %cst_112 = arith.constant 0.797884583 : f32
    %279 = vector.broadcast %cst_112 : f32 to vector<8x128xf32>
    %280 = arith.mulf %279, %278 : vector<8x128xf32>
    %281 = math.tanh %280 : vector<8x128xf32>
    %cst_113 = arith.constant 1.000000e+00 : f32
    %282 = vector.broadcast %cst_113 : f32 to vector<8x128xf32>
    %283 = arith.addf %282, %281 : vector<8x128xf32>
    %cst_114 = arith.constant 5.000000e-01 : f32
    %284 = vector.broadcast %cst_114 : f32 to vector<8x128xf32>
    %285 = arith.mulf %284, %283 : vector<8x128xf32>
    %286 = arith.mulf %273, %285 : vector<8x128xf32>
    %287 = arith.truncf %286 : vector<8x128xf32> to vector<8x128xbf16>
    %c1_115 = arith.constant 1 : index
    %c0_116 = arith.constant 0 : index
    %c0_117 = arith.constant 0 : index
    %288 = vector.load %arg13[%c1_115, %c0_116, %c0_117] : memref<2x128x64xbf16, #tpu.memory_space<vmem>>, vector<1x128x64xbf16>
    %289 = vector.shape_cast %288 : vector<1x128x64xbf16> to vector<128x64xbf16>
    %cst_118 = arith.constant dense<0.000000e+00> : vector<8x64xf32>
    %290 = tpu.matmul %287, %289, %cst_118 {dimension_numbers = #tpu.dot_dimension_numbers<[1], [0], [0], [1], [0, 0, 1, 1], [], []>} : vector<8x128xbf16>, vector<128x64xbf16>, vector<8x64xf32> -> vector<8x64xf32>
    %291 = vector.extract_strided_slice %233 {offsets = [3, 0, 0], sizes = [1, 1, 64], strides = [1, 1, 1]} : vector<6x1x64xf32> to vector<1x1x64xf32>
    %292 = vector.shape_cast %291 : vector<1x1x64xf32> to vector<1x64xf32>
    %293 = vector.broadcast %292 : vector<1x64xf32> to vector<8x64xf32>
    %294 = arith.addf %290, %293 : vector<8x64xf32>
    %295 = arith.addf %265, %294 : vector<8x64xf32>
    %296 = vector.extract_strided_slice %233 {offsets = [4, 0, 0], sizes = [1, 1, 64], strides = [1, 1, 1]} : vector<6x1x64xf32> to vector<1x1x64xf32>
    %297 = vector.shape_cast %296 : vector<1x1x64xf32> to vector<1x64xf32>
    %298 = vector.extract_strided_slice %233 {offsets = [5, 0, 0], sizes = [1, 1, 64], strides = [1, 1, 1]} : vector<6x1x64xf32> to vector<1x1x64xf32>
    %299 = vector.shape_cast %298 : vector<1x1x64xf32> to vector<1x64xf32>
    %cst_119 = arith.constant dense<0.000000e+00> : vector<8xf32>
    %300 = vector.multi_reduction <add>, %295, %cst_119 [1] : vector<8x64xf32> to vector<8xf32>
    %301 = vector.shape_cast %300 : vector<8xf32> to vector<8x1xf32>
    %cst_120 = arith.constant 6.400000e+01 : f32
    %302 = vector.broadcast %cst_120 : f32 to vector<8x1xf32>
    %303 = arith.divf %301, %302 : vector<8x1xf32>
    %304 = vector.broadcast %303 : vector<8x1xf32> to vector<8x64xf32>
    %305 = arith.subf %295, %304 : vector<8x64xf32>
    %306 = arith.mulf %305, %305 : vector<8x64xf32>
    %cst_121 = arith.constant dense<0.000000e+00> : vector<8xf32>
    %307 = vector.multi_reduction <add>, %306, %cst_121 [1] : vector<8x64xf32> to vector<8xf32>
    %308 = vector.shape_cast %307 : vector<8xf32> to vector<8x1xf32>
    %cst_122 = arith.constant 6.400000e+01 : f32
    %309 = vector.broadcast %cst_122 : f32 to vector<8x1xf32>
    %310 = arith.divf %308, %309 : vector<8x1xf32>
    %311 = vector.broadcast %303 : vector<8x1xf32> to vector<8x64xf32>
    %312 = arith.subf %295, %311 : vector<8x64xf32>
    %cst_123 = arith.constant 9.99999974E-6 : f32
    %313 = vector.broadcast %cst_123 : f32 to vector<8x1xf32>
    %314 = arith.addf %310, %313 : vector<8x1xf32>
    %315 = math.rsqrt %314 : vector<8x1xf32>
    %316 = vector.broadcast %315 : vector<8x1xf32> to vector<8x64xf32>
    %317 = arith.mulf %312, %316 : vector<8x64xf32>
    %318 = vector.broadcast %297 : vector<1x64xf32> to vector<8x64xf32>
    %319 = arith.mulf %317, %318 : vector<8x64xf32>
    %320 = vector.broadcast %299 : vector<1x64xf32> to vector<8x64xf32>
    %321 = arith.addf %319, %320 : vector<8x64xf32>
    %c0_124 = arith.constant 0 : index
    %c0_125 = arith.constant 0 : index
    %c0_126 = arith.constant 0 : index
    %322 = vector.load %arg18[%c0_124, %c0_125, %c0_126] : memref<2x1x128xf32, #tpu.memory_space<vmem>>, vector<2x1x128xf32>
    %323 = arith.truncf %321 : vector<8x64xf32> to vector<8x64xbf16>
    %c0_127 = arith.constant 0 : index
    %c0_128 = arith.constant 0 : index
    %324 = vector.load %arg15[%c0_127, %c0_128] : memref<64x128xbf16, #tpu.memory_space<vmem>>, vector<64x128xbf16>
    %cst_129 = arith.constant dense<0.000000e+00> : vector<8x128xf32>
    %325 = tpu.matmul %323, %324, %cst_129 {dimension_numbers = #tpu.dot_dimension_numbers<[1], [0], [0], [1], [0, 0, 1, 1], [], []>} : vector<8x64xbf16>, vector<64x128xbf16>, vector<8x128xf32> -> vector<8x128xf32>
    %326 = vector.extract_strided_slice %322 {offsets = [0, 0, 0], sizes = [1, 1, 128], strides = [1, 1, 1]} : vector<2x1x128xf32> to vector<1x1x128xf32>
    %327 = vector.shape_cast %326 : vector<1x1x128xf32> to vector<1x128xf32>
    %328 = vector.broadcast %327 : vector<1x128xf32> to vector<8x128xf32>
    %329 = arith.addf %325, %328 : vector<8x128xf32>
    %330 = arith.mulf %329, %329 : vector<8x128xf32>
    %331 = arith.mulf %329, %330 : vector<8x128xf32>
    %cst_130 = arith.constant 4.471500e-02 : f32
    %332 = vector.broadcast %cst_130 : f32 to vector<8x128xf32>
    %333 = arith.mulf %332, %331 : vector<8x128xf32>
    %334 = arith.addf %329, %333 : vector<8x128xf32>
    %cst_131 = arith.constant 0.797884583 : f32
    %335 = vector.broadcast %cst_131 : f32 to vector<8x128xf32>
    %336 = arith.mulf %335, %334 : vector<8x128xf32>
    %337 = math.tanh %336 : vector<8x128xf32>
    %cst_132 = arith.constant 1.000000e+00 : f32
    %338 = vector.broadcast %cst_132 : f32 to vector<8x128xf32>
    %339 = arith.addf %338, %337 : vector<8x128xf32>
    %cst_133 = arith.constant 5.000000e-01 : f32
    %340 = vector.broadcast %cst_133 : f32 to vector<8x128xf32>
    %341 = arith.mulf %340, %339 : vector<8x128xf32>
    %342 = arith.mulf %329, %341 : vector<8x128xf32>
    %343 = arith.truncf %342 : vector<8x128xf32> to vector<8x128xbf16>
    %c0_134 = arith.constant 0 : index
    %c0_135 = arith.constant 0 : index
    %344 = vector.load %arg16[%c0_134, %c0_135] : memref<128x128xbf16, #tpu.memory_space<vmem>>, vector<128x128xbf16>
    %cst_136 = arith.constant dense<0.000000e+00> : vector<8x128xf32>
    %345 = tpu.matmul %343, %344, %cst_136 {dimension_numbers = #tpu.dot_dimension_numbers<[1], [0], [0], [1], [0, 0, 1, 1], [], []>} : vector<8x128xbf16>, vector<128x128xbf16>, vector<8x128xf32> -> vector<8x128xf32>
    %346 = vector.extract_strided_slice %322 {offsets = [1, 0, 0], sizes = [1, 1, 128], strides = [1, 1, 1]} : vector<2x1x128xf32> to vector<1x1x128xf32>
    %347 = vector.shape_cast %346 : vector<1x1x128xf32> to vector<1x128xf32>
    %348 = vector.broadcast %347 : vector<1x128xf32> to vector<8x128xf32>
    %349 = arith.addf %345, %348 : vector<8x128xf32>
    %350 = arith.mulf %349, %349 : vector<8x128xf32>
    %351 = arith.mulf %349, %350 : vector<8x128xf32>
    %cst_137 = arith.constant 4.471500e-02 : f32
    %352 = vector.broadcast %cst_137 : f32 to vector<8x128xf32>
    %353 = arith.mulf %352, %351 : vector<8x128xf32>
    %354 = arith.addf %349, %353 : vector<8x128xf32>
    %cst_138 = arith.constant 0.797884583 : f32
    %355 = vector.broadcast %cst_138 : f32 to vector<8x128xf32>
    %356 = arith.mulf %355, %354 : vector<8x128xf32>
    %357 = math.tanh %356 : vector<8x128xf32>
    %cst_139 = arith.constant 1.000000e+00 : f32
    %358 = vector.broadcast %cst_139 : f32 to vector<8x128xf32>
    %359 = arith.addf %358, %357 : vector<8x128xf32>
    %cst_140 = arith.constant 5.000000e-01 : f32
    %360 = vector.broadcast %cst_140 : f32 to vector<8x128xf32>
    %361 = arith.mulf %360, %359 : vector<8x128xf32>
    %362 = arith.mulf %349, %361 : vector<8x128xf32>
    %363 = arith.truncf %362 : vector<8x128xf32> to vector<8x128xbf16>
    %c0_141 = arith.constant 0 : index
    %c0_142 = arith.constant 0 : index
    %364 = vector.load %arg17[%c0_141, %c0_142] : memref<128x128xbf16, #tpu.memory_space<vmem>>, vector<128x128xbf16>
    %cst_143 = arith.constant dense<0.000000e+00> : vector<8x128xf32>
    %365 = tpu.matmul %363, %364, %cst_143 {dimension_numbers = #tpu.dot_dimension_numbers<[1], [0], [0], [1], [0, 0, 1, 1], [], []>} : vector<8x128xbf16>, vector<128x128xbf16>, vector<8x128xf32> -> vector<8x128xf32>
    %c0_144 = arith.constant 0 : index
    %c0_145 = arith.constant 0 : index
    %366 = vector.load %arg19[%c0_144, %c0_145] : memref<1x128xf32, #tpu.memory_space<vmem>>, vector<1x128xf32>
    %367 = vector.broadcast %366 : vector<1x128xf32> to vector<8x128xf32>
    %368 = arith.addf %365, %367 : vector<8x128xf32>
    %c0_146 = arith.constant 0 : index
    %c0_147 = arith.constant 0 : index
    %c0_148 = arith.constant 0 : index
    %369 = vector.load %arg20[%c0_146, %c0_147, %c0_148] : memref<1x8x128xf32, #tpu.memory_space<vmem>>, vector<1x8x128xf32>
    %370 = vector.shape_cast %369 : vector<1x8x128xf32> to vector<8x128xf32>
    %371 = vector.shape_cast %368 : vector<8x128xf32> to vector<1x8x128xf32>
    tpu.vector_store %arg20[%c0_146, %c0_147, %c0_148], %371 {strides = array<i32>} : memref<1x8x128xf32, #tpu.memory_space<vmem>>, vector<1x8x128xf32>,
    return
  }
  func.func @transform_0(%arg0: i32) -> (i32, i32, i32) {
    %c0_i32 = arith.constant 0 : i32
    %c0_i32_0 = arith.constant 0 : i32
    %c0_i32_1 = arith.constant 0 : i32
    return %arg0, %c0_i32, %c0_i32_0 : i32, i32, i32
  }
  func.func @transform_1(%arg0: i32) -> (i32, i32, i32) {
    %c0_i32 = arith.constant 0 : i32
    %c0_i32_0 = arith.constant 0 : i32
    %c0_i32_1 = arith.constant 0 : i32
    return %arg0, %c0_i32, %c0_i32_0 : i32, i32, i32
  }
  func.func @transform_2(%arg0: i32) -> (i32, i32) {
    %c0_i32 = arith.constant 0 : i32
    %c0_i32_0 = arith.constant 0 : i32
    %c0_i32_1 = arith.constant 0 : i32
    return %c0_i32, %c0_i32_0 : i32, i32
  }
  func.func @transform_3(%arg0: i32) -> (i32, i32) {
    %c0_i32 = arith.constant 0 : i32
    %c0_i32_0 = arith.constant 0 : i32
    %c0_i32_1 = arith.constant 0 : i32
    return %c0_i32, %c0_i32_0 : i32, i32
  }
  func.func @transform_4(%arg0: i32) -> (i32, i32) {
    %c0_i32 = arith.constant 0 : i32
    %c0_i32_0 = arith.constant 0 : i32
    %c0_i32_1 = arith.constant 0 : i32
    return %c0_i32, %c0_i32_0 : i32, i32
  }
  func.func @transform_5(%arg0: i32) -> (i32, i32) {
    %c0_i32 = arith.constant 0 : i32
    %c0_i32_0 = arith.constant 0 : i32
    %c0_i32_1 = arith.constant 0 : i32
    return %c0_i32, %c0_i32_0 : i32, i32
  }
  func.func @transform_6(%arg0: i32) -> (i32, i32, i32) {
    %c0_i32 = arith.constant 0 : i32
    %c0_i32_0 = arith.constant 0 : i32
    %c0_i32_1 = arith.constant 0 : i32
    %c0_i32_2 = arith.constant 0 : i32
    return %c0_i32, %c0_i32_0, %c0_i32_1 : i32, i32, i32
  }
  func.func @transform_7(%arg0: i32) -> (i32, i32, i32, i32) {
    %c0_i32 = arith.constant 0 : i32
    %c0_i32_0 = arith.constant 0 : i32
    %c0_i32_1 = arith.constant 0 : i32
    %c0_i32_2 = arith.constant 0 : i32
    %c0_i32_3 = arith.constant 0 : i32
    return %c0_i32, %c0_i32_0, %c0_i32_1, %c0_i32_2 : i32, i32, i32, i32
  }
  func.func @transform_8(%arg0: i32) -> (i32, i32, i32, i32) {
    %c0_i32 = arith.constant 0 : i32
    %c0_i32_0 = arith.constant 0 : i32
    %c0_i32_1 = arith.constant 0 : i32
    %c0_i32_2 = arith.constant 0 : i32
    %c0_i32_3 = arith.constant 0 : i32
    return %c0_i32, %c0_i32_0, %c0_i32_1, %c0_i32_2 : i32, i32, i32, i32
  }
  func.func @transform_9(%arg0: i32) -> (i32, i32, i32, i32) {
    %c0_i32 = arith.constant 0 : i32
    %c0_i32_0 = arith.constant 0 : i32
    %c0_i32_1 = arith.constant 0 : i32
    %c0_i32_2 = arith.constant 0 : i32
    %c0_i32_3 = arith.constant 0 : i32
    return %c0_i32, %c0_i32_0, %c0_i32_1, %c0_i32_2 : i32, i32, i32, i32
  }
  func.func @transform_10(%arg0: i32) -> (i32, i32, i32) {
    %c0_i32 = arith.constant 0 : i32
    %c0_i32_0 = arith.constant 0 : i32
    %c0_i32_1 = arith.constant 0 : i32
    %c0_i32_2 = arith.constant 0 : i32
    return %c0_i32, %c0_i32_0, %c0_i32_1 : i32, i32, i32
  }
  func.func @transform_11(%arg0: i32) -> (i32, i32, i32) {
    %c0_i32 = arith.constant 0 : i32
    %c0_i32_0 = arith.constant 0 : i32
    %c0_i32_1 = arith.constant 0 : i32
    %c0_i32_2 = arith.constant 0 : i32
    return %c0_i32, %c0_i32_0, %c0_i32_1 : i32, i32, i32
  }
  func.func @transform_12(%arg0: i32) -> (i32, i32, i32) {
    %c0_i32 = arith.constant 0 : i32
    %c0_i32_0 = arith.constant 0 : i32
    %c0_i32_1 = arith.constant 0 : i32
    %c0_i32_2 = arith.constant 0 : i32
    return %c0_i32, %c0_i32_0, %c0_i32_1 : i32, i32, i32
  }
  func.func @transform_13(%arg0: i32) -> (i32, i32, i32, i32) {
    %c0_i32 = arith.constant 0 : i32
    %c0_i32_0 = arith.constant 0 : i32
    %c0_i32_1 = arith.constant 0 : i32
    %c0_i32_2 = arith.constant 0 : i32
    %c0_i32_3 = arith.constant 0 : i32
    return %c0_i32, %c0_i32_0, %c0_i32_1, %c0_i32_2 : i32, i32, i32, i32
  }
  func.func @transform_14(%arg0: i32) -> (i32, i32) {
    %c0_i32 = arith.constant 0 : i32
    %c0_i32_0 = arith.constant 0 : i32
    %c0_i32_1 = arith.constant 0 : i32
    return %c0_i32, %c0_i32_0 : i32, i32
  }
  func.func @transform_15(%arg0: i32) -> (i32, i32) {
    %c0_i32 = arith.constant 0 : i32
    %c0_i32_0 = arith.constant 0 : i32
    %c0_i32_1 = arith.constant 0 : i32
    return %c0_i32, %c0_i32_0 : i32, i32
  }
  func.func @transform_16(%arg0: i32) -> (i32, i32) {
    %c0_i32 = arith.constant 0 : i32
    %c0_i32_0 = arith.constant 0 : i32
    %c0_i32_1 = arith.constant 0 : i32
    return %c0_i32, %c0_i32_0 : i32, i32
  }
  func.func @transform_17(%arg0: i32) -> (i32, i32, i32) {
    %c0_i32 = arith.constant 0 : i32
    %c0_i32_0 = arith.constant 0 : i32
    %c0_i32_1 = arith.constant 0 : i32
    %c0_i32_2 = arith.constant 0 : i32
    return %c0_i32, %c0_i32_0, %c0_i32_1 : i32, i32, i32
  }
  func.func @transform_18(%arg0: i32) -> (i32, i32) {
    %c0_i32 = arith.constant 0 : i32
    %c0_i32_0 = arith.constant 0 : i32
    %c0_i32_1 = arith.constant 0 : i32
    return %c0_i32, %c0_i32_0 : i32, i32
  }
  func.func @transform_19(%arg0: i32) -> (i32, i32, i32) {
    %c0_i32 = arith.constant 0 : i32
    %c0_i32_0 = arith.constant 0 : i32
    %c0_i32_1 = arith.constant 0 : i32
    return %arg0, %c0_i32, %c0_i32_0 : i32, i32, i32
  }
}

</mosaic_0001>

<llo_original>
// kernel: wave_function_encoding.1
$region0: #{wave_function_encoding.1}
  #allocation0 [shape = 'u32[]', space=smem, size = 0x4, offset = 0x4, fixed_abs, tag = 'smem constant byte address 0x4 - core index']
  #allocation1 [shape = 'u32[144,128]{1,0:T(1,128)}', space=vmem, size = 0x12000, scoped, tag = 'internal scratch']
  %s0 = inlined_call_operand.vmem [shape: f32[2,8,32], index: 0, kind: input, shape index: {}]
  %s1 = inlined_call_operand.vmem [shape: f32[2,1,8], index: 1, kind: input, shape index: {}]
  %s2 = inlined_call_operand.vmem [shape: bf16[32,64], index: 2, kind: input, shape index: {}]
  %s3 = inlined_call_operand.vmem [shape: bf16[64,128], index: 3, kind: input, shape index: {}]
  %s4 = inlined_call_operand.vmem [shape: bf16[128,64], index: 4, kind: input, shape index: {}]
  %s5 = inlined_call_operand.vmem [shape: f32[1,128], index: 5, kind: input, shape index: {}]
  %s6 = inlined_call_operand.vmem [shape: f32[4,1,64], index: 6, kind: input, shape index: {}]
  %s7 = inlined_call_operand.vmem [shape: bf16[2,12,64,128], index: 7, kind: input, shape index: {}]
  %s8 = inlined_call_operand.vmem [shape: f32[2,12,1,128], index: 8, kind: input, shape index: {}]
  %s9 = inlined_call_operand.vmem [shape: bf16[2,4,128,64], index: 9, kind: input, shape index: {}]
  %s10 = inlined_call_operand.vmem [shape: bf16[2,64,128], index: 10, kind: input, shape index: {}]
  %s11 = inlined_call_operand.vmem [shape: f32[2,1,128], index: 11, kind: input, shape index: {}]
  %s12 = inlined_call_operand.vmem [shape: bf16[2,128,64], index: 12, kind: input, shape index: {}]
  %s13 = inlined_call_operand.vmem [shape: f32[2,6,1,64], index: 13, kind: input, shape index: {}]
  %s14 = inlined_call_operand.vmem [shape: bf16[64,128], index: 14, kind: input, shape index: {}]
  %s15 = inlined_call_operand.vmem [shape: bf16[128,128], index: 15, kind: input, shape index: {}]
  %s16 = inlined_call_operand.vmem [shape: bf16[128,128], index: 16, kind: input, shape index: {}]
  %s17 = inlined_call_operand.vmem [shape: f32[2,1,128], index: 17, kind: input, shape index: {}]
  %s18 = inlined_call_operand.vmem [shape: f32[1,128], index: 18, kind: input, shape index: {}]
  %s19 = inlined_call_operand.vmem [shape: f32[2,8,128], index: 19, kind: output, shape index: {}]
  %s20 = sld [smem:[#allocation0]]
  $region109: #{wave_function_encoding.1} parent=0
    _
  %s22 = ssub.s32 1, %s20
  %s23 = scalar_select 0, %s22, %s20
  loop: start=0, step=1, limit=4
  $region2: #{wave_function_encoding.1} parent=0 // loop_pre_header
    _
  $region3: #{wave_function_encoding.1} parent=0 // loop_header
    %s25 = sphi 0, %s29
    %p26 = scmp.ge.s32.totalorder %s25, 4
    %s35 = sphi 0, %s37
    %s38 = sphi 0, %s35
    %s39 = sphi 0, %s38
    %s55 = sphi 0, %s39
    %s61 = sphi 0, %s63
    %s64 = sphi 0, %s61
    %s65 = sphi 0, %s64
    %s81 = sphi 0, %s65
    %s85 = sphi 0, %s85
    %s87 = sphi 0, %s85
    %s88 = sphi 0, %s87
    %s102 = sphi 0, %s88
    %s106 = sphi 0, %s106
    %s108 = sphi 0, %s106
    %s109 = sphi 0, %s108
    %s123 = sphi 0, %s109
    %s127 = sphi 0, %s127
    %s129 = sphi 0, %s127
    %s130 = sphi 0, %s129
    %s144 = sphi 0, %s130
    %s148 = sphi 0, %s148
    %s150 = sphi 0, %s148
    %s151 = sphi 0, %s150
    %s165 = sphi 0, %s151
    %s169 = sphi 0, %s169
    %s171 = sphi 0, %s169
    %s172 = sphi 0, %s171
    %s186 = sphi 0, %s172
    %s190 = sphi 0, %s190
    %s192 = sphi 0, %s190
    %s193 = sphi 0, %s192
    %s207 = sphi 0, %s193
    %s211 = sphi 0, %s211
    %s213 = sphi 0, %s211
    %s214 = sphi 0, %s213
    %s228 = sphi 0, %s214
    %s232 = sphi 0, %s232
    %s234 = sphi 0, %s232
    %s235 = sphi 0, %s234
    %s249 = sphi 0, %s235
    %s253 = sphi 0, %s253
    %s255 = sphi 0, %s253
    %s256 = sphi 0, %s255
    %s270 = sphi 0, %s256
    %s274 = sphi 0, %s274
    %s276 = sphi 0, %s274
    %s277 = sphi 0, %s276
    %s291 = sphi 0, %s277
    %s295 = sphi 0, %s295
    %s297 = sphi 0, %s295
    %s298 = sphi 0, %s297
    %s312 = sphi 0, %s298
    %s316 = sphi 0, %s316
    %s318 = sphi 0, %s316
    %s319 = sphi 0, %s318
    %s333 = sphi 0, %s319
    %s337 = sphi 0, %s337
    %s339 = sphi 0, %s337
    %s340 = sphi 0, %s339
    %s354 = sphi 0, %s340
    %s358 = sphi 0, %s358
    %s360 = sphi 0, %s358
    %s361 = sphi 0, %s360
    %s375 = sphi 0, %s361
    %s379 = sphi 0, %s379
    %s381 = sphi 0, %s379
    %s382 = sphi 0, %s381
    %s396 = sphi 0, %s382
    %s400 = sphi 0, %s400
    %s402 = sphi 0, %s400
    %s403 = sphi 0, %s402
    %s417 = sphi 0, %s403
    %s421 = sphi 0, %s421
    %s423 = sphi 0, %s421
    %s424 = sphi 0, %s423
    %s438 = sphi 0, %s424
    %s444 = sphi 0, %s446
    %s447 = sphi 0, %s444
    %s448 = sphi 0, %s447
    %s464 = sphi 0, %s448
  $region4: #{wave_function_encoding.1} parent=0 // loop_header_branch
    %28 = sbr.rel (%p26) target = $region8
  $region5: #{wave_function_encoding.1} parent=0 // loop_body
    %s30 = ssub.s32 %s25, 1
    %s31 = ssub.s32 %s25, 2
    %s32 = sadd.s32 %s25, 1
    %s33 = ssub.s32 %s25, %s32
    %p34 = scmp.eq.s32.totalorder %s33, 0
    %s36 = sadd.s32 %s35, 1
    %s37 = scalar_select %p34, %s35, %s36
    %p40 = pneg %p34
    %p41 = scmp.eq.s32.totalorder %s25, 1
    %p42 = por %p40, %p41
    %p43 = scmp.ne.s32.totalorder %s35, %s38
    %p44 = scmp.eq.s32.totalorder %s25, 0
    %p45 = por %p43, %p44
    %p46 = scmp.ne.s32.totalorder %s35, %s38
    %p47 = scmp.eq.s32.totalorder %s30, 1
    %p48 = por %p46, %p47
    %p49 = scmp.ne.s32.totalorder %s38, %s39
    %p50 = scmp.eq.s32.totalorder %s30, 0
    %p51 = por %p49, %p50
    %p52 = scmp.ne.s32.totalorder %s38, %s39
    %p53 = scmp.eq.s32.totalorder %s31, 1
    %p54 = por %p52, %p53
    %p56 = scmp.ne.s32.totalorder %s39, %s55
    %p57 = scmp.eq.s32.totalorder %s31, 0
    %p58 = por %p56, %p57
    %s59 = ssub.s32 %s25, %s32
    %p60 = scmp.eq.s32.totalorder %s59, 0
    %s62 = sadd.s32 %s61, 1
    %s63 = scalar_select %p60, %s61, %s62
    %p66 = pneg %p60
    %p67 = scmp.eq.s32.totalorder %s25, 1
    %p68 = por %p66, %p67
    %p69 = scmp.ne.s32.totalorder %s61, %s64
    %p70 = scmp.eq.s32.totalorder %s25, 0
    %p71 = por %p69, %p70
    %p72 = scmp.ne.s32.totalorder %s61, %s64
    %p73 = scmp.eq.s32.totalorder %s30, 1
    %p74 = por %p72, %p73
    %p75 = scmp.ne.s32.totalorder %s64, %s65
    %p76 = scmp.eq.s32.totalorder %s30, 0
    %p77 = por %p75, %p76
    %p78 = scmp.ne.s32.totalorder %s64, %s65
    %p79 = scmp.eq.s32.totalorder %s31, 1
    %p80 = por %p78, %p79
    %p82 = scmp.ne.s32.totalorder %s65, %s81
    %p83 = scmp.eq.s32.totalorder %s31, 0
    %p84 = por %p82, %p83
    %s86 = sadd.s32 %s85, 1
    %p89 = scmp.eq.s32.totalorder %s25, 1
    %p90 = scmp.ne.s32.totalorder %s85, %s87
    %p91 = scmp.eq.s32.totalorder %s25, 0
    %p92 = por %p90, %p91
    %p93 = scmp.ne.s32.totalorder %s85, %s87
    %p94 = scmp.eq.s32.totalorder %s30, 1
    %p95 = por %p93, %p94
    %p96 = scmp.ne.s32.totalorder %s87, %s88
    %p97 = scmp.eq.s32.totalorder %s30, 0
    %p98 = por %p96, %p97
    %p99 = scmp.ne.s32.totalorder %s87, %s88
    %p100 = scmp.eq.s32.totalorder %s31, 1
    %p101 = por %p99, %p100
    %p103 = scmp.ne.s32.totalorder %s88, %s102
    %p104 = scmp.eq.s32.totalorder %s31, 0
    %p105 = por %p103, %p104
    %s107 = sadd.s32 %s106, 1
    %p110 = scmp.eq.s32.totalorder %s25, 1
    %p111 = scmp.ne.s32.totalorder %s106, %s108
    %p112 = scmp.eq.s32.totalorder %s25, 0
    %p113 = por %p111, %p112
    %p114 = scmp.ne.s32.totalorder %s106, %s108
    %p115 = scmp.eq.s32.totalorder %s30, 1
    %p116 = por %p114, %p115
    %p117 = scmp.ne.s32.totalorder %s108, %s109
    %p118 = scmp.eq.s32.totalorder %s30, 0
    %p119 = por %p117, %p118
    %p120 = scmp.ne.s32.totalorder %s108, %s109
    %p121 = scmp.eq.s32.totalorder %s31, 1
    %p122 = por %p120, %p121
    %p124 = scmp.ne.s32.totalorder %s109, %s123
    %p125 = scmp.eq.s32.totalorder %s31, 0
    %p126 = por %p124, %p125
    %s128 = sadd.s32 %s127, 1
    %p131 = scmp.eq.s32.totalorder %s25, 1
    %p132 = scmp.ne.s32.totalorder %s127, %s129
    %p133 = scmp.eq.s32.totalorder %s25, 0
    %p134 = por %p132, %p133
    %p135 = scmp.ne.s32.totalorder %s127, %s129
    %p136 = scmp.eq.s32.totalorder %s30, 1
    %p137 = por %p135, %p136
    %p138 = scmp.ne.s32.totalorder %s129, %s130
    %p139 = scmp.eq.s32.totalorder %s30, 0
    %p140 = por %p138, %p139
    %p141 = scmp.ne.s32.totalorder %s129, %s130
    %p142 = scmp.eq.s32.totalorder %s31, 1
    %p143 = por %p141, %p142
    %p145 = scmp.ne.s32.totalorder %s130, %s144
    %p146 = scmp.eq.s32.totalorder %s31, 0
    %p147 = por %p145, %p146
    %s149 = sadd.s32 %s148, 1
    %p152 = scmp.eq.s32.totalorder %s25, 1
    %p153 = scmp.ne.s32.totalorder %s148, %s150
    %p154 = scmp.eq.s32.totalorder %s25, 0
    %p155 = por %p153, %p154
    %p156 = scmp.ne.s32.totalorder %s148, %s150
    %p157 = scmp.eq.s32.totalorder %s30, 1
    %p158 = por %p156, %p157
    %p159 = scmp.ne.s32.totalorder %s150, %s151
    %p160 = scmp.eq.s32.totalorder %s30, 0
    %p161 = por %p159, %p160
    %p162 = scmp.ne.s32.totalorder %s150, %s151
    %p163 = scmp.eq.s32.totalorder %s31, 1
    %p164 = por %p162, %p163
    %p166 = scmp.ne.s32.totalorder %s151, %s165
    %p167 = scmp.eq.s32.totalorder %s31, 0
    %p168 = por %p166, %p167
    %s170 = sadd.s32 %s169, 1
    %p173 = scmp.eq.s32.totalorder %s25, 1
    %p174 = scmp.ne.s32.totalorder %s169, %s171
    %p175 = scmp.eq.s32.totalorder %s25, 0
    %p176 = por %p174, %p175
    %p177 = scmp.ne.s32.totalorder %s169, %s171
    %p178 = scmp.eq.s32.totalorder %s30, 1
    %p179 = por %p177, %p178
    %p180 = scmp.ne.s32.totalorder %s171, %s172
    %p181 = scmp.eq.s32.totalorder %s30, 0
    %p182 = por %p180, %p181
    %p183 = scmp.ne.s32.totalorder %s171, %s172
    %p184 = scmp.eq.s32.totalorder %s31, 1
    %p185 = por %p183, %p184
    %p187 = scmp.ne.s32.totalorder %s172, %s186
    %p188 = scmp.eq.s32.totalorder %s31, 0
    %p189 = por %p187, %p188
    %s191 = sadd.s32 %s190, 1
    %p194 = scmp.eq.s32.totalorder %s25, 1
    %p195 = scmp.ne.s32.totalorder %s190, %s192
    %p196 = scmp.eq.s32.totalorder %s25, 0
    %p197 = por %p195, %p196
    %p198 = scmp.ne.s32.totalorder %s190, %s192
    %p199 = scmp.eq.s32.totalorder %s30, 1
    %p200 = por %p198, %p199
    %p201 = scmp.ne.s32.totalorder %s192, %s193
    %p202 = scmp.eq.s32.totalorder %s30, 0
    %p203 = por %p201, %p202
    %p204 = scmp.ne.s32.totalorder %s192, %s193
    %p205 = scmp.eq.s32.totalorder %s31, 1
    %p206 = por %p204, %p205
    %p208 = scmp.ne.s32.totalorder %s193, %s207
    %p209 = scmp.eq.s32.totalorder %s31, 0
    %p210 = por %p208, %p209
    %s212 = sadd.s32 %s211, 1
    %p215 = scmp.eq.s32.totalorder %s25, 1
    %p216 = scmp.ne.s32.totalorder %s211, %s213
    %p217 = scmp.eq.s32.totalorder %s25, 0
    %p218 = por %p216, %p217
    %p219 = scmp.ne.s32.totalorder %s211, %s213
    %p220 = scmp.eq.s32.totalorder %s30, 1
    %p221 = por %p219, %p220
    %p222 = scmp.ne.s32.totalorder %s213, %s214
    %p223 = scmp.eq.s32.totalorder %s30, 0
    %p224 = por %p222, %p223
    %p225 = scmp.ne.s32.totalorder %s213, %s214
    %p226 = scmp.eq.s32.totalorder %s31, 1
    %p227 = por %p225, %p226
    %p229 = scmp.ne.s32.totalorder %s214, %s228
    %p230 = scmp.eq.s32.totalorder %s31, 0
    %p231 = por %p229, %p230
    %s233 = sadd.s32 %s232, 1
    %p236 = scmp.eq.s32.totalorder %s25, 1
    %p237 = scmp.ne.s32.totalorder %s232, %s234
    %p238 = scmp.eq.s32.totalorder %s25, 0
    %p239 = por %p237, %p238
    %p240 = scmp.ne.s32.totalorder %s232, %s234
    %p241 = scmp.eq.s32.totalorder %s30, 1
    %p242 = por %p240, %p241
    %p243 = scmp.ne.s32.totalorder %s234, %s235
    %p244 = scmp.eq.s32.totalorder %s30, 0
    %p245 = por %p243, %p244
    %p246 = scmp.ne.s32.totalorder %s234, %s235
    %p247 = scmp.eq.s32.totalorder %s31, 1
    %p248 = por %p246, %p247
    %p250 = scmp.ne.s32.totalorder %s235, %s249
    %p251 = scmp.eq.s32.totalorder %s31, 0
    %p252 = por %p250, %p251
    %s254 = sadd.s32 %s253, 1
    %p257 = scmp.eq.s32.totalorder %s25, 1
    %p258 = scmp.ne.s32.totalorder %s253, %s255
    %p259 = scmp.eq.s32.totalorder %s25, 0
    %p260 = por %p258, %p259
    %p261 = scmp.ne.s32.totalorder %s253, %s255
    %p262 = scmp.eq.s32.totalorder %s30, 1
    %p263 = por %p261, %p262
    %p264 = scmp.ne.s32.totalorder %s255, %s256
    %p265 = scmp.eq.s32.totalorder %s30, 0
    %p266 = por %p264, %p265
    %p267 = scmp.ne.s32.totalorder %s255, %s256
    %p268 = scmp.eq.s32.totalorder %s31, 1
    %p269 = por %p267, %p268
    %p271 = scmp.ne.s32.totalorder %s256, %s270
    %p272 = scmp.eq.s32.totalorder %s31, 0
    %p273 = por %p271, %p272
    %s275 = sadd.s32 %s274, 1
    %p278 = scmp.eq.s32.totalorder %s25, 1
    %p279 = scmp.ne.s32.totalorder %s274, %s276
    %p280 = scmp.eq.s32.totalorder %s25, 0
    %p281 = por %p279, %p280
    %p282 = scmp.ne.s32.totalorder %s274, %s276
    %p283 = scmp.eq.s32.totalorder %s30, 1
    %p284 = por %p282, %p283
    %p285 = scmp.ne.s32.totalorder %s276, %s277
    %p286 = scmp.eq.s32.totalorder %s30, 0
    %p287 = por %p285, %p286
    %p288 = scmp.ne.s32.totalorder %s276, %s277
    %p289 = scmp.eq.s32.totalorder %s31, 1
    %p290 = por %p288, %p289
    %p292 = scmp.ne.s32.totalorder %s277, %s291
    %p293 = scmp.eq.s32.totalorder %s31, 0
    %p294 = por %p292, %p293
    %s296 = sadd.s32 %s295, 1
    %p299 = scmp.eq.s32.totalorder %s25, 1
    %p300 = scmp.ne.s32.totalorder %s295, %s297
    %p301 = scmp.eq.s32.totalorder %s25, 0
    %p302 = por %p300, %p301
    %p303 = scmp.ne.s32.totalorder %s295, %s297
    %p304 = scmp.eq.s32.totalorder %s30, 1
    %p305 = por %p303, %p304
    %p306 = scmp.ne.s32.totalorder %s297, %s298
    %p307 = scmp.eq.s32.totalorder %s30, 0
    %p308 = por %p306, %p307
    %p309 = scmp.ne.s32.totalorder %s297, %s298
    %p310 = scmp.eq.s32.totalorder %s31, 1
    %p311 = por %p309, %p310
    %p313 = scmp.ne.s32.totalorder %s298, %s312
    %p314 = scmp.eq.s32.totalorder %s31, 0
    %p315 = por %p313, %p314
    %s317 = sadd.s32 %s316, 1
    %p320 = scmp.eq.s32.totalorder %s25, 1
    %p321 = scmp.ne.s32.totalorder %s316, %s318
    %p322 = scmp.eq.s32.totalorder %s25, 0
    %p323 = por %p321, %p322
    %p324 = scmp.ne.s32.totalorder %s316, %s318
    %p325 = scmp.eq.s32.totalorder %s30, 1
    %p326 = por %p324, %p325
    %p327 = scmp.ne.s32.totalorder %s318, %s319
    %p328 = scmp.eq.s32.totalorder %s30, 0
    %p329 = por %p327, %p328
    %p330 = scmp.ne.s32.totalorder %s318, %s319
    %p331 = scmp.eq.s32.totalorder %s31, 1
    %p332 = por %p330, %p331
    %p334 = scmp.ne.s32.totalorder %s319, %s333
    %p335 = scmp.eq.s32.totalorder %s31, 0
    %p336 = por %p334, %p335
    %s338 = sadd.s32 %s337, 1
    %p341 = scmp.eq.s32.totalorder %s25, 1
    %p342 = scmp.ne.s32.totalorder %s337, %s339
    %p343 = scmp.eq.s32.totalorder %s25, 0
    %p344 = por %p342, %p343
    %p345 = scmp.ne.s32.totalorder %s337, %s339
    %p346 = scmp.eq.s32.totalorder %s30, 1
    %p347 = por %p345, %p346
    %p348 = scmp.ne.s32.totalorder %s339, %s340
    %p349 = scmp.eq.s32.totalorder %s30, 0
    %p350 = por %p348, %p349
    %p351 = scmp.ne.s32.totalorder %s339, %s340
    %p352 = scmp.eq.s32.totalorder %s31, 1
    %p353 = por %p351, %p352
    %p355 = scmp.ne.s32.totalorder %s340, %s354
    %p356 = scmp.eq.s32.totalorder %s31, 0
    %p357 = por %p355, %p356
    %s359 = sadd.s32 %s358, 1
    %p362 = scmp.eq.s32.totalorder %s25, 1
    %p363 = scmp.ne.s32.totalorder %s358, %s360
    %p364 = scmp.eq.s32.totalorder %s25, 0
    %p365 = por %p363, %p364
    %p366 = scmp.ne.s32.totalorder %s358, %s360
    %p367 = scmp.eq.s32.totalorder %s30, 1
    %p368 = por %p366, %p367
    %p369 = scmp.ne.s32.totalorder %s360, %s361
    %p370 = scmp.eq.s32.totalorder %s30, 0
    %p371 = por %p369, %p370
    %p372 = scmp.ne.s32.totalorder %s360, %s361
    %p373 = scmp.eq.s32.totalorder %s31, 1
    %p374 = por %p372, %p373
    %p376 = scmp.ne.s32.totalorder %s361, %s375
    %p377 = scmp.eq.s32.totalorder %s31, 0
    %p378 = por %p376, %p377
    %s380 = sadd.s32 %s379, 1
    %p383 = scmp.eq.s32.totalorder %s25, 1
    %p384 = scmp.ne.s32.totalorder %s379, %s381
    %p385 = scmp.eq.s32.totalorder %s25, 0
    %p386 = por %p384, %p385
    %p387 = scmp.ne.s32.totalorder %s379, %s381
    %p388 = scmp.eq.s32.totalorder %s30, 1
    %p389 = por %p387, %p388
    %p390 = scmp.ne.s32.totalorder %s381, %s382
    %p391 = scmp.eq.s32.totalorder %s30, 0
    %p392 = por %p390, %p391
    %p393 = scmp.ne.s32.totalorder %s381, %s382
    %p394 = scmp.eq.s32.totalorder %s31, 1
    %p395 = por %p393, %p394
    %p397 = scmp.ne.s32.totalorder %s382, %s396
    %p398 = scmp.eq.s32.totalorder %s31, 0
    %p399 = por %p397, %p398
    %s401 = sadd.s32 %s400, 1
    %p404 = scmp.eq.s32.totalorder %s25, 1
    %p405 = scmp.ne.s32.totalorder %s400, %s402
    %p406 = scmp.eq.s32.totalorder %s25, 0
    %p407 = por %p405, %p406
    %p408 = scmp.ne.s32.totalorder %s400, %s402
    %p409 = scmp.eq.s32.totalorder %s30, 1
    %p410 = por %p408, %p409
    %p411 = scmp.ne.s32.totalorder %s402, %s403
    %p412 = scmp.eq.s32.totalorder %s30, 0
    %p413 = por %p411, %p412
    %p414 = scmp.ne.s32.totalorder %s402, %s403
    %p415 = scmp.eq.s32.totalorder %s31, 1
    %p416 = por %p414, %p415
    %p418 = scmp.ne.s32.totalorder %s403, %s417
    %p419 = scmp.eq.s32.totalorder %s31, 0
    %p420 = por %p418, %p419
    %s422 = sadd.s32 %s421, 1
    %p425 = scmp.eq.s32.totalorder %s25, 1
    %p426 = scmp.ne.s32.totalorder %s421, %s423
    %p427 = scmp.eq.s32.totalorder %s25, 0
    %p428 = por %p426, %p427
    %p429 = scmp.ne.s32.totalorder %s421, %s423
    %p430 = scmp.eq.s32.totalorder %s30, 1
    %p431 = por %p429, %p430
    %p432 = scmp.ne.s32.totalorder %s423, %s424
    %p433 = scmp.eq.s32.totalorder %s30, 0
    %p434 = por %p432, %p433
    %p435 = scmp.ne.s32.totalorder %s423, %s424
    %p436 = scmp.eq.s32.totalorder %s31, 1
    %p437 = por %p435, %p436
    %p439 = scmp.ne.s32.totalorder %s424, %s438
    %p440 = scmp.eq.s32.totalorder %s31, 0
    %p441 = por %p439, %p440
    %s442 = ssub.s32 %s25, %s32
    %p443 = scmp.eq.s32.totalorder %s442, 0
    %s445 = sadd.s32 %s444, 1
    %s446 = scalar_select %p443, %s444, %s445
    %p449 = pneg %p443
    %p450 = scmp.eq.s32.totalorder %s25, 1
    %p451 = por %p449, %p450
    %p452 = scmp.ne.s32.totalorder %s444, %s447
    %p453 = scmp.eq.s32.totalorder %s25, 0
    %p454 = por %p452, %p453
    %p455 = scmp.ne.s32.totalorder %s444, %s447
    %p456 = scmp.eq.s32.totalorder %s30, 1
    %p457 = por %p455, %p456
    %p458 = scmp.ne.s32.totalorder %s447, %s448
    %p459 = scmp.eq.s32.totalorder %s30, 0
    %p460 = por %p458, %p459
    %p461 = scmp.ne.s32.totalorder %s447, %s448
    %p462 = scmp.eq.s32.totalorder %s31, 1
    %p463 = por %p461, %p462
    %p465 = scmp.ne.s32.totalorder %s448, %s464
    %p466 = scmp.eq.s32.totalorder %s31, 0
    %p467 = por %p465, %p466
    %p468 = scmp.le.s32.totalorder 1, %s25
    %p469 = scmp.lt.s32.totalorder %s25, 3
    %p470 = pnand %p468, %p469
    %p471 = pneg %p470
    // Predicated region
    $region9: #{wave_function_encoding.1} parent=5 // pred_check
      _
    $region10: #{wave_function_encoding.1} parent=5 // pred_check_branch
      %473 = sbr.rel (%p470) target = $region12
    $region11: #{wave_function_encoding.1} parent=5 // pred_region
      %s474 = ssub.s32 %s25, 1
      // Predicated region
      $region13: #{wave_function_encoding.1} parent=11 // pred_check
        %p475 = pneg %p98
      $region14: #{wave_function_encoding.1} parent=11 // pred_check_branch
        %477 = sbr.rel (%p475) target = $region16
      $region15: #{wave_function_encoding.1} parent=11 // pred_region
        _
      $region16: #{wave_function_encoding.1} parent=11 // pred_fallthru
        _
      // Predicated region
      $region17: #{wave_function_encoding.1} parent=11 // pred_check
        %p478 = pneg %p119
      $region18: #{wave_function_encoding.1} parent=11 // pred_check_branch
        %480 = sbr.rel (%p478) target = $region20
      $region19: #{wave_function_encoding.1} parent=11 // pred_region
        _
      $region20: #{wave_function_encoding.1} parent=11 // pred_fallthru
        _
      // Predicated region
      $region21: #{wave_function_encoding.1} parent=11 // pred_check
        %p481 = pneg %p140
      $region22: #{wave_function_encoding.1} parent=11 // pred_check_branch
        %483 = sbr.rel (%p481) target = $region24
      $region23: #{wave_function_encoding.1} parent=11 // pred_region
        _
      $region24: #{wave_function_encoding.1} parent=11 // pred_fallthru
        _
      // Predicated region
      $region25: #{wave_function_encoding.1} parent=11 // pred_check
        %p484 = pneg %p161
      $region26: #{wave_function_encoding.1} parent=11 // pred_check_branch
        %486 = sbr.rel (%p484) target = $region28
      $region27: #{wave_function_encoding.1} parent=11 // pred_region
        _
      $region28: #{wave_function_encoding.1} parent=11 // pred_fallthru
        _
      // Predicated region
      $region29: #{wave_function_encoding.1} parent=11 // pred_check
        %p487 = pneg %p182
      $region30: #{wave_function_encoding.1} parent=11 // pred_check_branch
        %489 = sbr.rel (%p487) target = $region32
      $region31: #{wave_function_encoding.1} parent=11 // pred_region
        _
      $region32: #{wave_function_encoding.1} parent=11 // pred_fallthru
        _
      // Predicated region
      $region33: #{wave_function_encoding.1} parent=11 // pred_check
        %p490 = pneg %p203
      $region34: #{wave_function_encoding.1} parent=11 // pred_check_branch
        %492 = sbr.rel (%p490) target = $region36
      $region35: #{wave_function_encoding.1} parent=11 // pred_region
        _
      $region36: #{wave_function_encoding.1} parent=11 // pred_fallthru
        _
      // Predicated region
      $region37: #{wave_function_encoding.1} parent=11 // pred_check
        %p493 = pneg %p224
      $region38: #{wave_function_encoding.1} parent=11 // pred_check_branch
        %495 = sbr.rel (%p493) target = $region40
      $region39: #{wave_function_encoding.1} parent=11 // pred_region
        _
      $region40: #{wave_function_encoding.1} parent=11 // pred_fallthru
        _
      // Predicated region
      $region41: #{wave_function_encoding.1} parent=11 // pred_check
        %p496 = pneg %p245
      $region42: #{wave_function_encoding.1} parent=11 // pred_check_branch
        %498 = sbr.rel (%p496) target = $region44
      $region43: #{wave_function_encoding.1} parent=11 // pred_region
        _
      $region44: #{wave_function_encoding.1} parent=11 // pred_fallthru
        _
      // Predicated region
      $region45: #{wave_function_encoding.1} parent=11 // pred_check
        %p499 = pneg %p266
      $region46: #{wave_function_encoding.1} parent=11 // pred_check_branch
        %501 = sbr.rel (%p499) target = $region48
      $region47: #{wave_function_encoding.1} parent=11 // pred_region
        _
      $region48: #{wave_function_encoding.1} parent=11 // pred_fallthru
        _
      // Predicated region
      $region49: #{wave_function_encoding.1} parent=11 // pred_check
        %p502 = pneg %p287
      $region50: #{wave_function_encoding.1} parent=11 // pred_check_branch
        %504 = sbr.rel (%p502) target = $region52
      $region51: #{wave_function_encoding.1} parent=11 // pred_region
        _
      $region52: #{wave_function_encoding.1} parent=11 // pred_fallthru
        _
      // Predicated region
      $region53: #{wave_function_encoding.1} parent=11 // pred_check
        %p505 = pneg %p308
      $region54: #{wave_function_encoding.1} parent=11 // pred_check_branch
        %507 = sbr.rel (%p505) target = $region56
      $region55: #{wave_function_encoding.1} parent=11 // pred_region
        _
      $region56: #{wave_function_encoding.1} parent=11 // pred_fallthru
        _
      // Predicated region
      $region57: #{wave_function_encoding.1} parent=11 // pred_check
        %p508 = pneg %p329
      $region58: #{wave_function_encoding.1} parent=11 // pred_check_branch
        %510 = sbr.rel (%p508) target = $region60
      $region59: #{wave_function_encoding.1} parent=11 // pred_region
        _
      $region60: #{wave_function_encoding.1} parent=11 // pred_fallthru
        _
      // Predicated region
      $region61: #{wave_function_encoding.1} parent=11 // pred_check
        %p511 = pneg %p350
      $region62: #{wave_function_encoding.1} parent=11 // pred_check_branch
        %513 = sbr.rel (%p511) target = $region64
      $region63: #{wave_function_encoding.1} parent=11 // pred_region
        _
      $region64: #{wave_function_encoding.1} parent=11 // pred_fallthru
        _
      // Predicated region
      $region65: #{wave_function_encoding.1} parent=11 // pred_check
        %p514 = pneg %p371
      $region66: #{wave_function_encoding.1} parent=11 // pred_check_branch
        %516 = sbr.rel (%p514) target = $region68
      $region67: #{wave_function_encoding.1} parent=11 // pred_region
        _
      $region68: #{wave_function_encoding.1} parent=11 // pred_fallthru
        _
      // Predicated region
      $region69: #{wave_function_encoding.1} parent=11 // pred_check
        %p517 = pneg %p392
      $region70: #{wave_function_encoding.1} parent=11 // pred_check_branch
        %519 = sbr.rel (%p517) target = $region72
      $region71: #{wave_function_encoding.1} parent=11 // pred_region
        _
      $region72: #{wave_function_encoding.1} parent=11 // pred_fallthru
        _
      // Predicated region
      $region73: #{wave_function_encoding.1} parent=11 // pred_check
        %p520 = pneg %p413
      $region74: #{wave_function_encoding.1} parent=11 // pred_check_branch
        %522 = sbr.rel (%p520) target = $region76
      $region75: #{wave_function_encoding.1} parent=11 // pred_region
        _
      $region76: #{wave_function_encoding.1} parent=11 // pred_fallthru
        _
      // Predicated region
      $region77: #{wave_function_encoding.1} parent=11 // pred_check
        %p523 = pneg %p434
      $region78: #{wave_function_encoding.1} parent=11 // pred_check_branch
        %525 = sbr.rel (%p523) target = $region80
      $region79: #{wave_function_encoding.1} parent=11 // pred_region
        _
      $region80: #{wave_function_encoding.1} parent=11 // pred_fallthru
        _
    $region12: #{wave_function_encoding.1} parent=5 // pred_fallthru
      _
    %p526 = scmp.lt.s32.totalorder %s25, 2
    // Predicated region
    $region81: #{wave_function_encoding.1} parent=5 // pred_check
      %p527 = pneg %p526
    $region82: #{wave_function_encoding.1} parent=5 // pred_check_branch
      %529 = sbr.rel (%p527) target = $region84
    $region83: #{wave_function_encoding.1} parent=5 // pred_region
      // Predicated region
      $region85: #{wave_function_encoding.1} parent=83 // pred_check
        %p530 = pneg %p45
      $region86: #{wave_function_encoding.1} parent=83 // pred_check_branch
        %532 = sbr.rel (%p530) target = $region88
      $region87: #{wave_function_encoding.1} parent=83 // pred_region
        %p533 = scmp.lt.s32.totalorder %s25, 1
        %s534 = scalar_select %p533, %s25, 1
        %s535 = smul.addr %s534, 8
        %s536 = scalar_lea.vmem %s0, %s535
      $region88: #{wave_function_encoding.1} parent=83 // pred_fallthru
        _
      // Predicated region
      $region89: #{wave_function_encoding.1} parent=83 // pred_check
        %p537 = pneg %p71
      $region90: #{wave_function_encoding.1} parent=83 // pred_check_branch
        %539 = sbr.rel (%p537) target = $region92
      $region91: #{wave_function_encoding.1} parent=83 // pred_region
        %p540 = scmp.lt.s32.totalorder %s25, 1
        %s541 = scalar_select %p540, %s25, 1
        %s542 = scalar_lea.vmem %s1, %s541
      $region92: #{wave_function_encoding.1} parent=83 // pred_fallthru
        _
    $region84: #{wave_function_encoding.1} parent=5 // pred_fallthru
      _
    %p543 = scmp.le.s32.totalorder 1, %s25
    %p544 = scmp.lt.s32.totalorder %s25, 3
    %p545 = pnand %p543, %p544
    %p546 = pneg %p545
    // Predicated region
    $region93: #{wave_function_encoding.1} parent=5 // pred_check
      _
    $region94: #{wave_function_encoding.1} parent=5 // pred_check_branch
      %548 = sbr.rel (%p545) target = $region96
    $region95: #{wave_function_encoding.1} parent=5 // pred_region
      %s549 = ssub.s32 %s25, 1
      %p550 = scmp.lt.s32.totalorder %s30, 1
      %s551 = scalar_select %p550, %s30, 1
      %s552 = smul.addr %s551, 8
      %s553 = scalar_lea.vmem %s0, %s552
      %p554 = pneg %p51
      %p555 = pneg %p48
      %p556 = scmp.lt.s32.totalorder %s30, 1
      %s557 = scalar_select %p556, %s30, 1
      %s558 = scalar_lea.vmem %s1, %s557
      %p559 = pneg %p77
      %p560 = pneg %p74
      %p561 = pneg %p98
      %p562 = pneg %p95
      %p563 = pneg %p119
      %p564 = pneg %p116
      %p565 = pneg %p140
      %p566 = pneg %p137
      %p567 = pneg %p161
      %p568 = pneg %p158
      %p569 = pneg %p182
      %p570 = pneg %p179
      %p571 = pneg %p203
      %p572 = pneg %p200
      %p573 = pneg %p224
      %p574 = pneg %p221
      %p575 = pneg %p245
      %p576 = pneg %p242
      %p577 = pneg %p266
      %p578 = pneg %p263
      %p579 = pneg %p287
      %p580 = pneg %p284
      %p581 = pneg %p308
      %p582 = pneg %p305
      %p583 = pneg %p329
      %p584 = pneg %p326
      %p585 = pneg %p350
      %p586 = pneg %p347
      %p587 = pneg %p371
      %p588 = pneg %p368
      %p589 = pneg %p392
      %p590 = pneg %p389
      %p591 = pneg %p413
      %p592 = pneg %p410
      %p593 = pneg %p434
      %p594 = pneg %p431
      %p595 = pneg %p460
      %p596 = pneg %p457
      %p597 = scmp.lt.s32.totalorder %s30, 1
      %s598 = scalar_select %p597, %s30, 1
      %s599 = smul.addr %s598, 8
      %s600 = scalar_lea.vmem %s19, %s599
      %p601 = scmp.lt.s32.totalorder %s30, 1
      %s602 = scalar_select %p601, %s30, 1
      %s603 = smul.addr %s602, 8
      %s604 = scalar_lea.vmem %s0, %s603
      %p605 = scmp.lt.s32.totalorder %s30, 1
      %s606 = scalar_select %p605, %s30, 1
      %s607 = scalar_lea.vmem %s1, %s606
      %p608 = scmp.lt.s32.totalorder %s30, 1
      %s609 = scalar_select %p608, %s30, 1
      %s610 = smul.addr %s609, 8
      %s611 = scalar_lea.vmem %s19, %s610
      %v613 = vld [vmem:[%s6] sm:$0x1]
      %v614 = vld [vmem:[%s6 + $0x1] sm:$0x1]
      %v615 = vld [vmem:[%s6 + $0x2] sm:$0x1]
      %v616 = vld [vmem:[%s6 + $0x3] sm:$0x1]
      %v617 = vld [vmem:[%s604] sm:$0xff]
      %v618 = vpack.c.bf16 %v617, %v617
      %v619 = vld [vmem:[%s2] sm:$0xf]
      %v620 = vld [vmem:[%s2 + $0x4] sm:$0xf]
      %v621 = vld [vmem:[%s2 + $0x8] sm:$0xf]
      %v622 = vld [vmem:[%s2 + $0xc] sm:$0xf]
      %v624 = vlaneseq
      %v625 = vshrl.u32 %v624, 7
      %v626 = vsub.s32 0, %v625
      %v627 = vrot.slane %v613, %v626
      %v633 = vunpack.c.l.b16 %v619
      %v634 = vunpack.c.l.b16 %v620
      %v635 = vunpack.c.l.b16 %v621
      %v636 = vunpack.c.l.b16 %v622
      %v637 = vpack.c.b16 %v634, %v633
      %v638 = vpack.c.b16 %v636, %v635
      %vm641 = vcmask 261120
      %v643 = vsel %vm641, %v618, 0
      %645 = vmatprep.subr.bf16.mxu0 0
      %646 = vmatpush1.bf16.msra.mxu0 %v637
      %647 = vmatprep.subr.bf16.mxu0 0
      %648 = vmatpush1.bf16.msra.mxu0 %v638
      %649 = vmatprep.subr.bf16.mxu0 0
      %650 = vmatpush1.bf16.msra.mxu0 0
      %651 = vmatprep.subr.bf16.mxu0 0
      %652 = vmatpush1.bf16.msra.mxu0 0
      %653 = vmatprep.subr.bf16.mxu0 0
      %654 = vmatpush1.bf16.msra.mxu0 0
      %655 = vmatprep.subr.bf16.mxu0 0
      %656 = vmatpush1.bf16.msra.mxu0 0
      %657 = vmatprep.subr.bf16.mxu0 0
      %658 = vmatpush1.bf16.msra.mxu0 0
      %659 = vmatprep.subr.bf16.mxu0 0
      %660 = vmatpush1.bf16.msra.mxu0 0
      %661 = vmatprep.subr.bf16.mxu0 0
      %662 = vmatpush1.bf16.msra.mxu0 0
      %663 = vmatprep.subr.bf16.mxu0 0
      %664 = vmatpush1.bf16.msra.mxu0 0
      %665 = vmatprep.subr.bf16.mxu0 0
      %666 = vmatpush1.bf16.msra.mxu0 0
      %667 = vmatprep.subr.bf16.mxu0 0
      %668 = vmatpush1.bf16.msra.mxu0 0
      %669 = vmatprep.subr.bf16.mxu0 0
      %670 = vmatpush1.bf16.msra.mxu0 0
      %671 = vmatprep.subr.bf16.mxu0 0
      %672 = vmatpush1.bf16.msra.mxu0 0
      %673 = vmatprep.subr.bf16.mxu0 0
      %674 = vmatpush1.bf16.msra.mxu0 0
      %675 = vmatprep.subr.bf16.mxu0 0
      %676 = vmatpush1.bf16.msra.mxu0 0
      %677 = vmatprep.mubr.bf16.mxu0 0
      %678 = vmatmul.mubr.bf16.gmra.mrb[0].mxu0 %v643
      %v679 = vpop.f32.mrb[0].mxu0
      %v680 = vadd.f32 %v627, %v679
      %v681 = vpop.f32.mrb[0].mxu0
      %v682 = vpop.f32.mrb[0].mxu0
      %v683 = vpop.f32.mrb[0].mxu0
      %684 = vdwg.mxu0
      %v685 = vpack.c.bf16 %v680, %v680
      %v686 = vld [vmem:[%s3] sm:$0xf]
      %v687 = vld [vmem:[%s3 + $0x4] sm:$0xf]
      %v688 = vld [vmem:[%s3 + $0x8] sm:$0xf]
      %v689 = vld [vmem:[%s3 + $0xc] sm:$0xf]
      %v690 = vld [vmem:[%s3 + $0x10] sm:$0xf]
      %v691 = vld [vmem:[%s3 + $0x14] sm:$0xf]
      %v692 = vld [vmem:[%s3 + $0x18] sm:$0xf]
      %v693 = vld [vmem:[%s3 + $0x1c] sm:$0xf]
      %v694 = vld [vmem:[%s5] sm:$0x1]
      %v696 = vlaneseq
      %v697 = vshrl.u32 %v696, 7
      %v698 = vsub.s32 0, %v697
      %v699 = vrot.slane %v694, %v698
      %v709 = vunpack.c.l.b16 %v686
      %v710 = vunpack.c.l.b16 %v687
      %v711 = vunpack.c.l.b16 %v688
      %v712 = vunpack.c.l.b16 %v689
      %v713 = vunpack.c.l.b16 %v690
      %v714 = vunpack.c.l.b16 %v691
      %v715 = vunpack.c.l.b16 %v692
      %v716 = vunpack.c.l.b16 %v693
      %v717 = vpack.c.b16 %v710, %v709
      %v718 = vpack.c.b16 %v712, %v711
      %v719 = vpack.c.b16 %v714, %v713
      %v720 = vpack.c.b16 %v716, %v715
      %vm725 = vcmask 523264
      %v727 = vsel %vm725, %v685, 0
      %729 = vmatprep.subr.bf16.mxu0 0
      %730 = vmatpush1.bf16.msra.mxu0 %v717
      %731 = vmatprep.subr.bf16.mxu0 0
      %732 = vmatpush1.bf16.msra.mxu0 %v718
      %733 = vmatprep.subr.bf16.mxu0 0
      %734 = vmatpush1.bf16.msra.mxu0 %v719
      %735 = vmatprep.subr.bf16.mxu0 0
      %736 = vmatpush1.bf16.msra.mxu0 %v720
      %737 = vmatprep.subr.bf16.mxu0 0
      %738 = vmatpush1.bf16.msra.mxu0 0
      %739 = vmatprep.subr.bf16.mxu0 0
      %740 = vmatpush1.bf16.msra.mxu0 0
      %741 = vmatprep.subr.bf16.mxu0 0
      %742 = vmatpush1.bf16.msra.mxu0 0
      %743 = vmatprep.subr.bf16.mxu0 0
      %744 = vmatpush1.bf16.msra.mxu0 0
      %745 = vmatprep.subr.bf16.mxu0 0
      %746 = vmatpush1.bf16.msra.mxu0 0
      %747 = vmatprep.subr.bf16.mxu0 0
      %748 = vmatpush1.bf16.msra.mxu0 0
      %749 = vmatprep.subr.bf16.mxu0 0
      %750 = vmatpush1.bf16.msra.mxu0 0
      %751 = vmatprep.subr.bf16.mxu0 0
      %752 = vmatpush1.bf16.msra.mxu0 0
      %753 = vmatprep.subr.bf16.mxu0 0
      %754 = vmatpush1.bf16.msra.mxu0 0
      %755 = vmatprep.subr.bf16.mxu0 0
      %756 = vmatpush1.bf16.msra.mxu0 0
      %757 = vmatprep.subr.bf16.mxu0 0
      %758 = vmatpush1.bf16.msra.mxu0 0
      %759 = vmatprep.subr.bf16.mxu0 0
      %760 = vmatpush1.bf16.msra.mxu0 0
      %761 = vmatprep.mubr.bf16.mxu0 0
      %762 = vmatmul.mubr.bf16.gmra.mrb[0].mxu0 %v727
      %v763 = vpop.f32.mrb[0].mxu0
      %v764 = vadd.f32 %v699, %v763
      %v765 = vpop.f32.mrb[0].mxu0
      %v766 = vpop.f32.mrb[0].mxu0
      %v767 = vpop.f32.mrb[0].mxu0
      %768 = vdwg.mxu0
      %v769 = vmul.f32 %v764, %v764
      %v770 = vmul.f32 %v764, %v769
      %v771 = vmul.f32 %v770, 0.044715
      %v772 = vadd.f32 %v764, %v771
      %v773 = vmul.f32 %v772, 0.7978846
      %v774 = vtanh.pop %v773
      %v775 = vadd.f32 %v774, 1.0
      %v776 = vmul.f32 %v775, 0.5
      %v777 = vmul.f32 %v764, %v776
      %v778 = vpack.c.bf16 %v777, %v777
      %v779 = vld [vmem:[%s4] sm:$0xf]
      %v780 = vld [vmem:[%s4 + $0x4] sm:$0xf]
      %v781 = vld [vmem:[%s4 + $0x8] sm:$0xf]
      %v782 = vld [vmem:[%s4 + $0xc] sm:$0xf]
      %v783 = vld [vmem:[%s4 + $0x10] sm:$0xf]
      %v784 = vld [vmem:[%s4 + $0x14] sm:$0xf]
      %v785 = vld [vmem:[%s4 + $0x18] sm:$0xf]
      %v786 = vld [vmem:[%s4 + $0x1c] sm:$0xf]
      %v787 = vld [vmem:[%s4 + $0x20] sm:$0xf]
      %v788 = vld [vmem:[%s4 + $0x24] sm:$0xf]
      %v789 = vld [vmem:[%s4 + $0x28] sm:$0xf]
      %v790 = vld [vmem:[%s4 + $0x2c] sm:$0xf]
      %v791 = vld [vmem:[%s4 + $0x30] sm:$0xf]
      %v792 = vld [vmem:[%s4 + $0x34] sm:$0xf]
      %v793 = vld [vmem:[%s4 + $0x38] sm:$0xf]
      %v794 = vld [vmem:[%s4 + $0x3c] sm:$0xf]
      %v796 = vlaneseq
      %v797 = vshrl.u32 %v796, 7
      %v798 = vsub.s32 0, %v797
      %v799 = vrot.slane %v614, %v798
      %v817 = vunpack.c.l.b16 %v779
      %v818 = vunpack.c.l.b16 %v780
      %v819 = vunpack.c.l.b16 %v781
      %v820 = vunpack.c.l.b16 %v782
      %v821 = vunpack.c.l.b16 %v783
      %v822 = vunpack.c.l.b16 %v784
      %v823 = vunpack.c.l.b16 %v785
      %v824 = vunpack.c.l.b16 %v786
      %v825 = vunpack.c.l.b16 %v787
      %v826 = vunpack.c.l.b16 %v788
      %v827 = vunpack.c.l.b16 %v789
      %v828 = vunpack.c.l.b16 %v790
      %v829 = vunpack.c.l.b16 %v791
      %v830 = vunpack.c.l.b16 %v792
      %v831 = vunpack.c.l.b16 %v793
      %v832 = vunpack.c.l.b16 %v794
      %v833 = vpack.c.b16 %v818, %v817
      %v834 = vpack.c.b16 %v820, %v819
      %v835 = vpack.c.b16 %v822, %v821
      %v836 = vpack.c.b16 %v824, %v823
      %v837 = vpack.c.b16 %v826, %v825
      %v838 = vpack.c.b16 %v828, %v827
      %v839 = vpack.c.b16 %v830, %v829
      %v840 = vpack.c.b16 %v832, %v831
      %849 = vmatprep.subr.bf16.mxu0 0
      %850 = vmatpush1.bf16.msra.mxu0 %v833
      %851 = vmatprep.subr.bf16.mxu0 0
      %852 = vmatpush1.bf16.msra.mxu0 %v834
      %853 = vmatprep.subr.bf16.mxu0 0
      %854 = vmatpush1.bf16.msra.mxu0 %v835
      %855 = vmatprep.subr.bf16.mxu0 0
      %856 = vmatpush1.bf16.msra.mxu0 %v836
      %857 = vmatprep.subr.bf16.mxu0 0
      %858 = vmatpush1.bf16.msra.mxu0 %v837
      %859 = vmatprep.subr.bf16.mxu0 0
      %860 = vmatpush1.bf16.msra.mxu0 %v838
      %861 = vmatprep.subr.bf16.mxu0 0
      %862 = vmatpush1.bf16.msra.mxu0 %v839
      %863 = vmatprep.subr.bf16.mxu0 0
      %864 = vmatpush1.bf16.msra.mxu0 %v840
      %865 = vmatprep.subr.bf16.mxu0 0
      %866 = vmatpush1.bf16.msra.mxu0 0
      %867 = vmatprep.subr.bf16.mxu0 0
      %868 = vmatpush1.bf16.msra.mxu0 0
      %869 = vmatprep.subr.bf16.mxu0 0
      %870 = vmatpush1.bf16.msra.mxu0 0
      %871 = vmatprep.subr.bf16.mxu0 0
      %872 = vmatpush1.bf16.msra.mxu0 0
      %873 = vmatprep.subr.bf16.mxu0 0
      %874 = vmatpush1.bf16.msra.mxu0 0
      %875 = vmatprep.subr.bf16.mxu0 0
      %876 = vmatpush1.bf16.msra.mxu0 0
      %877 = vmatprep.subr.bf16.mxu0 0
      %878 = vmatpush1.bf16.msra.mxu0 0
      %879 = vmatprep.subr.bf16.mxu0 0
      %880 = vmatpush1.bf16.msra.mxu0 0
      %881 = vmatprep.mubr.bf16.mxu0 0
      %882 = vmatmul.mubr.bf16.gmra.mrb[0].mxu0 %v778
      %v883 = vpop.f32.mrb[0].mxu0
      %v884 = vadd.f32 %v799, %v883
      %v885 = vpop.f32.mrb[0].mxu0
      %v886 = vpop.f32.mrb[0].mxu0
      %v887 = vpop.f32.mrb[0].mxu0
      %888 = vdwg.mxu0
      %v889 = vadd.f32 %v680, %v884
      %v890 = vsel %vm725, %v889, 0.0
      %891 = vadd.xlane.f32.xlu0 %v890
      %v892 = vpop.xlane.xlu0 %891
      %v893 = vrcp.pop 64.0
      %v894 = vmul.f32 %v892, %v893
      %v895 = vsub.f32 %v889, %v894
      %v896 = vmul.f32 %v895, %v895
      %v897 = vsel %vm725, %v896, 0.0
      %898 = vadd.xlane.f32.xlu0 %v897
      %v899 = vpop.xlane.xlu0 %898
      %v900 = vmul.f32 %v899, %v893
      %v901 = vadd.f32 %v900, 1e-05
      %v902 = vrsqrt.pop %v901
      %v903 = vmul.f32 %v895, %v902
      %v905 = vlaneseq
      %v906 = vshrl.u32 %v905, 7
      %v907 = vsub.s32 0, %v906
      %v908 = vrot.slane %v615, %v907
      %v910 = vmul.f32 %v903, %v908
      %v912 = vlaneseq
      %v913 = vshrl.u32 %v912, 7
      %v914 = vsub.s32 0, %v913
      %v915 = vrot.slane %v616, %v914
      %v917 = vadd.f32 %v910, %v915
      %v918 = vld [vmem:[%s607] sm:$0x1]
      %v919 = vpack.c.bf16 %v917, %v917
      %v920 = vld [vmem:[%s7] sm:$0xf]
      %v921 = vld [vmem:[%s7 + $0x4] sm:$0xf]
      %v922 = vld [vmem:[%s7 + $0x8] sm:$0xf]
      %v923 = vld [vmem:[%s7 + $0xc] sm:$0xf]
      %v924 = vld [vmem:[%s7 + $0x10] sm:$0xf]
      %v925 = vld [vmem:[%s7 + $0x14] sm:$0xf]
      %v926 = vld [vmem:[%s7 + $0x18] sm:$0xf]
      %v927 = vld [vmem:[%s7 + $0x1c] sm:$0xf]
      %v928 = vld [vmem:[%s7 + $0x20] sm:$0xf]
      %v929 = vld [vmem:[%s7 + $0x24] sm:$0xf]
      %v930 = vld [vmem:[%s7 + $0x28] sm:$0xf]
      %v931 = vld [vmem:[%s7 + $0x2c] sm:$0xf]
      %v932 = vld [vmem:[%s7 + $0x30] sm:$0xf]
      %v933 = vld [vmem:[%s7 + $0x34] sm:$0xf]
      %v934 = vld [vmem:[%s7 + $0x38] sm:$0xf]
      %v935 = vld [vmem:[%s7 + $0x3c] sm:$0xf]
      %v936 = vld [vmem:[%s7 + $0x40] sm:$0xf]
      %v937 = vld [vmem:[%s7 + $0x44] sm:$0xf]
      %v938 = vld [vmem:[%s7 + $0x48] sm:$0xf]
      %v939 = vld [vmem:[%s7 + $0x4c] sm:$0xf]
      %v940 = vld [vmem:[%s7 + $0x50] sm:$0xf]
      %v941 = vld [vmem:[%s7 + $0x54] sm:$0xf]
      %v942 = vld [vmem:[%s7 + $0x58] sm:$0xf]
      %v943 = vld [vmem:[%s7 + $0x5c] sm:$0xf]
      %v944 = vld [vmem:[%s7 + $0x60] sm:$0xf]
      %v945 = vld [vmem:[%s7 + $0x64] sm:$0xf]
      %v946 = vld [vmem:[%s7 + $0x68] sm:$0xf]
      %v947 = vld [vmem:[%s7 + $0x6c] sm:$0xf]
      %v948 = vld [vmem:[%s7 + $0x70] sm:$0xf]
      %v949 = vld [vmem:[%s7 + $0x74] sm:$0xf]
      %v950 = vld [vmem:[%s7 + $0x78] sm:$0xf]
      %v951 = vld [vmem:[%s7 + $0x7c] sm:$0xf]
      %v952 = vld [vmem:[%s7 + $0x80] sm:$0xf]
      %v953 = vld [vmem:[%s7 + $0x84] sm:$0xf]
      %v954 = vld [vmem:[%s7 + $0x88] sm:$0xf]
      %v955 = vld [vmem:[%s7 + $0x8c] sm:$0xf]
      %v956 = vld [vmem:[%s7 + $0x90] sm:$0xf]
      %v957 = vld [vmem:[%s7 + $0x94] sm:$0xf]
      %v958 = vld [vmem:[%s7 + $0x98] sm:$0xf]
      %v959 = vld [vmem:[%s7 + $0x9c] sm:$0xf]
      %v960 = vld [vmem:[%s7 + $0xa0] sm:$0xf]
      %v961 = vld [vmem:[%s7 + $0xa4] sm:$0xf]
      %v962 = vld [vmem:[%s7 + $0xa8] sm:$0xf]
      %v963 = vld [vmem:[%s7 + $0xac] sm:$0xf]
      %v964 = vld [vmem:[%s7 + $0xb0] sm:$0xf]
      %v965 = vld [vmem:[%s7 + $0xb4] sm:$0xf]
      %v966 = vld [vmem:[%s7 + $0xb8] sm:$0xf]
      %v967 = vld [vmem:[%s7 + $0xbc] sm:$0xf]
      %v968 = vld [vmem:[%s7 + $0xc0] sm:$0xf]
      %v969 = vld [vmem:[%s7 + $0xc4] sm:$0xf]
      %v970 = vld [vmem:[%s7 + $0xc8] sm:$0xf]
      %v971 = vld [vmem:[%s7 + $0xcc] sm:$0xf]
      %v972 = vld [vmem:[%s7 + $0xd0] sm:$0xf]
      %v973 = vld [vmem:[%s7 + $0xd4] sm:$0xf]
      %v974 = vld [vmem:[%s7 + $0xd8] sm:$0xf]
      %v975 = vld [vmem:[%s7 + $0xdc] sm:$0xf]
      %v976 = vld [vmem:[%s7 + $0xe0] sm:$0xf]
      %v977 = vld [vmem:[%s7 + $0xe4] sm:$0xf]
      %v978 = vld [vmem:[%s7 + $0xe8] sm:$0xf]
      %v979 = vld [vmem:[%s7 + $0xec] sm:$0xf]
      %v980 = vld [vmem:[%s7 + $0xf0] sm:$0xf]
      %v981 = vld [vmem:[%s7 + $0xf4] sm:$0xf]
      %v982 = vld [vmem:[%s7 + $0xf8] sm:$0xf]
      %v983 = vld [vmem:[%s7 + $0xfc] sm:$0xf]
      %v984 = vld [vmem:[%s7 + $0x100] sm:$0xf]
      %v985 = vld [vmem:[%s7 + $0x104] sm:$0xf]
      %v986 = vld [vmem:[%s7 + $0x108] sm:$0xf]
      %v987 = vld [vmem:[%s7 + $0x10c] sm:$0xf]
      %v988 = vld [vmem:[%s7 + $0x110] sm:$0xf]
      %v989 = vld [vmem:[%s7 + $0x114] sm:$0xf]
      %v990 = vld [vmem:[%s7 + $0x118] sm:$0xf]
      %v991 = vld [vmem:[%s7 + $0x11c] sm:$0xf]
      %v992 = vld [vmem:[%s7 + $0x120] sm:$0xf]
      %v993 = vld [vmem:[%s7 + $0x124] sm:$0xf]
      %v994 = vld [vmem:[%s7 + $0x128] sm:$0xf]
      %v995 = vld [vmem:[%s7 + $0x12c] sm:$0xf]
      %v996 = vld [vmem:[%s7 + $0x130] sm:$0xf]
      %v997 = vld [vmem:[%s7 + $0x134] sm:$0xf]
      %v998 = vld [vmem:[%s7 + $0x138] sm:$0xf]
      %v999 = vld [vmem:[%s7 + $0x13c] sm:$0xf]
      %v1000 = vld [vmem:[%s7 + $0x140] sm:$0xf]
      %v1001 = vld [vmem:[%s7 + $0x144] sm:$0xf]
      %v1002 = vld [vmem:[%s7 + $0x148] sm:$0xf]
      %v1003 = vld [vmem:[%s7 + $0x14c] sm:$0xf]
      %v1004 = vld [vmem:[%s7 + $0x150] sm:$0xf]
      %v1005 = vld [vmem:[%s7 + $0x154] sm:$0xf]
      %v1006 = vld [vmem:[%s7 + $0x158] sm:$0xf]
      %v1007 = vld [vmem:[%s7 + $0x15c] sm:$0xf]
      %v1008 = vld [vmem:[%s7 + $0x160] sm:$0xf]
      %v1009 = vld [vmem:[%s7 + $0x164] sm:$0xf]
      %v1010 = vld [vmem:[%s7 + $0x168] sm:$0xf]
      %v1011 = vld [vmem:[%s7 + $0x16c] sm:$0xf]
      %v1012 = vld [vmem:[%s7 + $0x170] sm:$0xf]
      %v1013 = vld [vmem:[%s7 + $0x174] sm:$0xf]
      %v1014 = vld [vmem:[%s7 + $0x178] sm:$0xf]
      %v1015 = vld [vmem:[%s7 + $0x17c] sm:$0xf]
      %v1016 = vld [vmem:[%s8] sm:$0x1]
      %v1017 = vld [vmem:[%s8 + $0x1] sm:$0x1]
      %v1018 = vld [vmem:[%s8 + $0x2] sm:$0x1]
      %v1019 = vld [vmem:[%s8 + $0x3] sm:$0x1]
      %v1020 = vld [vmem:[%s8 + $0x4] sm:$0x1]
      %v1021 = vld [vmem:[%s8 + $0x5] sm:$0x1]
      %v1022 = vld [vmem:[%s8 + $0x6] sm:$0x1]
      %v1023 = vld [vmem:[%s8 + $0x7] sm:$0x1]
      %v1024 = vld [vmem:[%s8 + $0x8] sm:$0x1]
      %v1025 = vld [vmem:[%s8 + $0x9] sm:$0x1]
      %v1026 = vld [vmem:[%s8 + $0xa] sm:$0x1]
      %v1027 = vld [vmem:[%s8 + $0xb] sm:$0x1]
      %v1040 = vlaneseq
      %v1041 = vshrl.u32 %v1040, 7
      %v1042 = vsub.s32 0, %v1041
      %v1043 = vrot.slane %v1016, %v1042
      %v1044 = vlaneseq
      %v1045 = vshrl.u32 %v1044, 7
      %v1046 = vsub.s32 0, %v1045
      %v1047 = vrot.slane %v1017, %v1046
      %v1048 = vlaneseq
      %v1049 = vshrl.u32 %v1048, 7
      %v1050 = vsub.s32 0, %v1049
      %v1051 = vrot.slane %v1018, %v1050
      %v1052 = vlaneseq
      %v1053 = vshrl.u32 %v1052, 7
      %v1054 = vsub.s32 0, %v1053
      %v1055 = vrot.slane %v1019, %v1054
      %v1056 = vlaneseq
      %v1057 = vshrl.u32 %v1056, 7
      %v1058 = vsub.s32 0, %v1057
      %v1059 = vrot.slane %v1020, %v1058
      %v1060 = vlaneseq
      %v1061 = vshrl.u32 %v1060, 7
      %v1062 = vsub.s32 0, %v1061
      %v1063 = vrot.slane %v1021, %v1062
      %v1064 = vlaneseq
      %v1065 = vshrl.u32 %v1064, 7
      %v1066 = vsub.s32 0, %v1065
      %v1067 = vrot.slane %v1022, %v1066
      %v1068 = vlaneseq
      %v1069 = vshrl.u32 %v1068, 7
      %v1070 = vsub.s32 0, %v1069
      %v1071 = vrot.slane %v1023, %v1070
      %v1072 = vlaneseq
      %v1073 = vshrl.u32 %v1072, 7
      %v1074 = vsub.s32 0, %v1073
      %v1075 = vrot.slane %v1024, %v1074
      %v1076 = vlaneseq
      %v1077 = vshrl.u32 %v1076, 7
      %v1078 = vsub.s32 0, %v1077
      %v1079 = vrot.slane %v1025, %v1078
      %v1080 = vlaneseq
      %v1081 = vshrl.u32 %v1080, 7
      %v1082 = vsub.s32 0, %v1081
      %v1083 = vrot.slane %v1026, %v1082
      %v1084 = vlaneseq
      %v1085 = vshrl.u32 %v1084, 7
      %v1086 = vsub.s32 0, %v1085
      %v1087 = vrot.slane %v1027, %v1086
      %v1108 = vunpack.c.l.b16 %v920
      %v1109 = vunpack.c.l.b16 %v921
      %v1110 = vunpack.c.l.b16 %v922
      %v1111 = vunpack.c.l.b16 %v923
      %v1112 = vunpack.c.l.b16 %v924
      %v1113 = vunpack.c.l.b16 %v925
      %v1114 = vunpack.c.l.b16 %v926
      %v1115 = vunpack.c.l.b16 %v927
      %v1116 = vpack.c.b16 %v1109, %v1108
      %v1117 = vpack.c.b16 %v1111, %v1110
      %v1118 = vpack.c.b16 %v1113, %v1112
      %v1119 = vpack.c.b16 %v1115, %v1114
      %v1125 = vsel %vm725, %v919, 0
      %1127 = vmatprep.subr.bf16.mxu0 0
      %1128 = vmatpush1.bf16.msra.mxu0 %v1116
      %1129 = vmatprep.subr.bf16.mxu0 0
      %1130 = vmatpush1.bf16.msra.mxu0 %v1117
      %1131 = vmatprep.subr.bf16.mxu0 0
      %1132 = vmatpush1.bf16.msra.mxu0 %v1118
      %1133 = vmatprep.subr.bf16.mxu0 0
      %1134 = vmatpush1.bf16.msra.mxu0 %v1119
      %1135 = vmatprep.subr.bf16.mxu0 0
      %1136 = vmatpush1.bf16.msra.mxu0 0
      %1137 = vmatprep.subr.bf16.mxu0 0
      %1138 = vmatpush1.bf16.msra.mxu0 0
      %1139 = vmatprep.subr.bf16.mxu0 0
      %1140 = vmatpush1.bf16.msra.mxu0 0
      %1141 = vmatprep.subr.bf16.mxu0 0
      %1142 = vmatpush1.bf16.msra.mxu0 0
      %1143 = vmatprep.subr.bf16.mxu0 0
      %1144 = vmatpush1.bf16.msra.mxu0 0
      %1145 = vmatprep.subr.bf16.mxu0 0
      %1146 = vmatpush1.bf16.msra.mxu0 0
      %1147 = vmatprep.subr.bf16.mxu0 0
      %1148 = vmatpush1.bf16.msra.mxu0 0
      %1149 = vmatprep.subr.bf16.mxu0 0
      %1150 = vmatpush1.bf16.msra.mxu0 0
      %1151 = vmatprep.subr.bf16.mxu0 0
      %1152 = vmatpush1.bf16.msra.mxu0 0
      %1153 = vmatprep.subr.bf16.mxu0 0
      %1154 = vmatpush1.bf16.msra.mxu0 0
      %1155 = vmatprep.subr.bf16.mxu0 0
      %1156 = vmatpush1.bf16.msra.mxu0 0
      %1157 = vmatprep.subr.bf16.mxu0 0
      %1158 = vmatpush1.bf16.msra.mxu0 0
      %1159 = vmatprep.mubr.bf16.mxu0 0
      %1160 = vmatmul.mubr.bf16.gmra.mrb[0].mxu0 %v1125
      %v1161 = vpop.f32.mrb[0].mxu0
      %v1162 = vadd.f32 %v1043, %v1161
      %v1163 = vpop.f32.mrb[0].mxu0
      %v1164 = vpop.f32.mrb[0].mxu0
      %v1165 = vpop.f32.mrb[0].mxu0
      %1166 = vdwg.mxu0
      %v1175 = vunpack.c.l.b16 %v928
      %v1176 = vunpack.c.l.b16 %v929
      %v1177 = vunpack.c.l.b16 %v930
      %v1178 = vunpack.c.l.b16 %v931
      %v1179 = vunpack.c.l.b16 %v932
      %v1180 = vunpack.c.l.b16 %v933
      %v1181 = vunpack.c.l.b16 %v934
      %v1182 = vunpack.c.l.b16 %v935
      %v1183 = vpack.c.b16 %v1176, %v1175
      %v1184 = vpack.c.b16 %v1178, %v1177
      %v1185 = vpack.c.b16 %v1180, %v1179
      %v1186 = vpack.c.b16 %v1182, %v1181
      %1191 = vmatprep.subr.bf16.mxu0 0
      %1192 = vmatpush1.bf16.msra.mxu0 %v1183
      %1193 = vmatprep.subr.bf16.mxu0 0
      %1194 = vmatpush1.bf16.msra.mxu0 %v1184
      %1195 = vmatprep.subr.bf16.mxu0 0
      %1196 = vmatpush1.bf16.msra.mxu0 %v1185
      %1197 = vmatprep.subr.bf16.mxu0 0
      %1198 = vmatpush1.bf16.msra.mxu0 %v1186
      %1199 = vmatprep.subr.bf16.mxu0 0
      %1200 = vmatpush1.bf16.msra.mxu0 0
      %1201 = vmatprep.subr.bf16.mxu0 0
      %1202 = vmatpush1.bf16.msra.mxu0 0
      %1203 = vmatprep.subr.bf16.mxu0 0
      %1204 = vmatpush1.bf16.msra.mxu0 0
      %1205 = vmatprep.subr.bf16.mxu0 0
      %1206 = vmatpush1.bf16.msra.mxu0 0
      %1207 = vmatprep.subr.bf16.mxu0 0
      %1208 = vmatpush1.bf16.msra.mxu0 0
      %1209 = vmatprep.subr.bf16.mxu0 0
      %1210 = vmatpush1.bf16.msra.mxu0 0
      %1211 = vmatprep.subr.bf16.mxu0 0
      %1212 = vmatpush1.bf16.msra.mxu0 0
      %1213 = vmatprep.subr.bf16.mxu0 0
      %1214 = vmatpush1.bf16.msra.mxu0 0
      %1215 = vmatprep.subr.bf16.mxu0 0
      %1216 = vmatpush1.bf16.msra.mxu0 0
      %1217 = vmatprep.subr.bf16.mxu0 0
      %1218 = vmatpush1.bf16.msra.mxu0 0
      %1219 = vmatprep.subr.bf16.mxu0 0
      %1220 = vmatpush1.bf16.msra.mxu0 0
      %1221 = vmatprep.subr.bf16.mxu0 0
      %1222 = vmatpush1.bf16.msra.mxu0 0
      %1223 = vmatprep.mubr.bf16.mxu0 0
      %1224 = vmatmul.mubr.bf16.gmra.mrb[0].mxu0 %v1125
      %v1225 = vpop.f32.mrb[0].mxu0
      %v1226 = vadd.f32 %v1047, %v1225
      %v1227 = vpop.f32.mrb[0].mxu0
      %v1228 = vpop.f32.mrb[0].mxu0
      %v1229 = vpop.f32.mrb[0].mxu0
      %1230 = vdwg.mxu0
      %v1239 = vunpack.c.l.b16 %v936
      %v1240 = vunpack.c.l.b16 %v937
      %v1241 = vunpack.c.l.b16 %v938
      %v1242 = vunpack.c.l.b16 %v939
      %v1243 = vunpack.c.l.b16 %v940
      %v1244 = vunpack.c.l.b16 %v941
      %v1245 = vunpack.c.l.b16 %v942
      %v1246 = vunpack.c.l.b16 %v943
      %v1247 = vpack.c.b16 %v1240, %v1239
      %v1248 = vpack.c.b16 %v1242, %v1241
      %v1249 = vpack.c.b16 %v1244, %v1243
      %v1250 = vpack.c.b16 %v1246, %v1245
      %1255 = vmatprep.subr.bf16.mxu0 0
      %1256 = vmatpush1.bf16.msra.mxu0 %v1247
      %1257 = vmatprep.subr.bf16.mxu0 0
      %1258 = vmatpush1.bf16.msra.mxu0 %v1248
      %1259 = vmatprep.subr.bf16.mxu0 0
      %1260 = vmatpush1.bf16.msra.mxu0 %v1249
      %1261 = vmatprep.subr.bf16.mxu0 0
      %1262 = vmatpush1.bf16.msra.mxu0 %v1250
      %1263 = vmatprep.subr.bf16.mxu0 0
      %1264 = vmatpush1.bf16.msra.mxu0 0
      %1265 = vmatprep.subr.bf16.mxu0 0
      %1266 = vmatpush1.bf16.msra.mxu0 0
      %1267 = vmatprep.subr.bf16.mxu0 0
      %1268 = vmatpush1.bf16.msra.mxu0 0
      %1269 = vmatprep.subr.bf16.mxu0 0
      %1270 = vmatpush1.bf16.msra.mxu0 0
      %1271 = vmatprep.subr.bf16.mxu0 0
      %1272 = vmatpush1.bf16.msra.mxu0 0
      %1273 = vmatprep.subr.bf16.mxu0 0
      %1274 = vmatpush1.bf16.msra.mxu0 0
      %1275 = vmatprep.subr.bf16.mxu0 0
      %1276 = vmatpush1.bf16.msra.mxu0 0
      %1277 = vmatprep.subr.bf16.mxu0 0
      %1278 = vmatpush1.bf16.msra.mxu0 0
      %1279 = vmatprep.subr.bf16.mxu0 0
      %1280 = vmatpush1.bf16.msra.mxu0 0
      %1281 = vmatprep.subr.bf16.mxu0 0
      %1282 = vmatpush1.bf16.msra.mxu0 0
      %1283 = vmatprep.subr.bf16.mxu0 0
      %1284 = vmatpush1.bf16.msra.mxu0 0
      %1285 = vmatprep.subr.bf16.mxu0 0
      %1286 = vmatpush1.bf16.msra.mxu0 0
      %1287 = vmatprep.mubr.bf16.mxu0 0
      %1288 = vmatmul.mubr.bf16.gmra.mrb[0].mxu0 %v1125
      %v1289 = vpop.f32.mrb[0].mxu0
      %v1290 = vadd.f32 %v1051, %v1289
      %v1291 = vpop.f32.mrb[0].mxu0
      %v1292 = vpop.f32.mrb[0].mxu0
      %v1293 = vpop.f32.mrb[0].mxu0
      %1294 = vdwg.mxu0
      %v1303 = vunpack.c.l.b16 %v944
      %v1304 = vunpack.c.l.b16 %v945
      %v1305 = vunpack.c.l.b16 %v946
      %v1306 = vunpack.c.l.b16 %v947
      %v1307 = vunpack.c.l.b16 %v948
      %v1308 = vunpack.c.l.b16 %v949
      %v1309 = vunpack.c.l.b16 %v950
      %v1310 = vunpack.c.l.b16 %v951
      %v1311 = vpack.c.b16 %v1304, %v1303
      %v1312 = vpack.c.b16 %v1306, %v1305
      %v1313 = vpack.c.b16 %v1308, %v1307
      %v1314 = vpack.c.b16 %v1310, %v1309
      %1319 = vmatprep.subr.bf16.mxu0 0
      %1320 = vmatpush1.bf16.msra.mxu0 %v1311
      %1321 = vmatprep.subr.bf16.mxu0 0
      %1322 = vmatpush1.bf16.msra.mxu0 %v1312
      %1323 = vmatprep.subr.bf16.mxu0 0
      %1324 = vmatpush1.bf16.msra.mxu0 %v1313
      %1325 = vmatprep.subr.bf16.mxu0 0
      %1326 = vmatpush1.bf16.msra.mxu0 %v1314
      %1327 = vmatprep.subr.bf16.mxu0 0
      %1328 = vmatpush1.bf16.msra.mxu0 0
      %1329 = vmatprep.subr.bf16.mxu0 0
      %1330 = vmatpush1.bf16.msra.mxu0 0
      %1331 = vmatprep.subr.bf16.mxu0 0
      %1332 = vmatpush1.bf16.msra.mxu0 0
      %1333 = vmatprep.subr.bf16.mxu0 0
      %1334 = vmatpush1.bf16.msra.mxu0 0
      %1335 = vmatprep.subr.bf16.mxu0 0
      %1336 = vmatpush1.bf16.msra.mxu0 0
      %1337 = vmatprep.subr.bf16.mxu0 0
      %1338 = vmatpush1.bf16.msra.mxu0 0
      %1339 = vmatprep.subr.bf16.mxu0 0
      %1340 = vmatpush1.bf16.msra.mxu0 0
      %1341 = vmatprep.subr.bf16.mxu0 0
      %1342 = vmatpush1.bf16.msra.mxu0 0
      %1343 = vmatprep.subr.bf16.mxu0 0
      %1344 = vmatpush1.bf16.msra.mxu0 0
      %1345 = vmatprep.subr.bf16.mxu0 0
      %1346 = vmatpush1.bf16.msra.mxu0 0
      %1347 = vmatprep.subr.bf16.mxu0 0
      %1348 = vmatpush1.bf16.msra.mxu0 0
      %1349 = vmatprep.subr.bf16.mxu0 0
      %1350 = vmatpush1.bf16.msra.mxu0 0
      %1351 = vmatprep.mubr.bf16.mxu0 0
      %1352 = vmatmul.mubr.bf16.gmra.mrb[0].mxu0 %v1125
      %v1353 = vpop.f32.mrb[0].mxu0
      %v1354 = vadd.f32 %v1055, %v1353
      %v1355 = vpop.f32.mrb[0].mxu0
      %v1356 = vpop.f32.mrb[0].mxu0
      %v1357 = vpop.f32.mrb[0].mxu0
      %1358 = vdwg.mxu0
      %v1367 = vunpack.c.l.b16 %v952
      %v1368 = vunpack.c.l.b16 %v953
      %v1369 = vunpack.c.l.b16 %v954
      %v1370 = vunpack.c.l.b16 %v955
      %v1371 = vunpack.c.l.b16 %v956
      %v1372 = vunpack.c.l.b16 %v957
      %v1373 = vunpack.c.l.b16 %v958
      %v1374 = vunpack.c.l.b16 %v959
      %v1375 = vpack.c.b16 %v1368, %v1367
      %v1376 = vpack.c.b16 %v1370, %v1369
      %v1377 = vpack.c.b16 %v1372, %v1371
      %v1378 = vpack.c.b16 %v1374, %v1373
      %1383 = vmatprep.subr.bf16.mxu0 0
      %1384 = vmatpush1.bf16.msra.mxu0 %v1375
      %1385 = vmatprep.subr.bf16.mxu0 0
      %1386 = vmatpush1.bf16.msra.mxu0 %v1376
      %1387 = vmatprep.subr.bf16.mxu0 0
      %1388 = vmatpush1.bf16.msra.mxu0 %v1377
      %1389 = vmatprep.subr.bf16.mxu0 0
      %1390 = vmatpush1.bf16.msra.mxu0 %v1378
      %1391 = vmatprep.subr.bf16.mxu0 0
      %1392 = vmatpush1.bf16.msra.mxu0 0
      %1393 = vmatprep.subr.bf16.mxu0 0
      %1394 = vmatpush1.bf16.msra.mxu0 0
      %1395 = vmatprep.subr.bf16.mxu0 0
      %1396 = vmatpush1.bf16.msra.mxu0 0
      %1397 = vmatprep.subr.bf16.mxu0 0
      %1398 = vmatpush1.bf16.msra.mxu0 0
      %1399 = vmatprep.subr.bf16.mxu0 0
      %1400 = vmatpush1.bf16.msra.mxu0 0
      %1401 = vmatprep.subr.bf16.mxu0 0
      %1402 = vmatpush1.bf16.msra.mxu0 0
      %1403 = vmatprep.subr.bf16.mxu0 0
      %1404 = vmatpush1.bf16.msra.mxu0 0
      %1405 = vmatprep.subr.bf16.mxu0 0
      %1406 = vmatpush1.bf16.msra.mxu0 0
      %1407 = vmatprep.subr.bf16.mxu0 0
      %1408 = vmatpush1.bf16.msra.mxu0 0
      %1409 = vmatprep.subr.bf16.mxu0 0
      %1410 = vmatpush1.bf16.msra.mxu0 0
      %1411 = vmatprep.subr.bf16.mxu0 0
      %1412 = vmatpush1.bf16.msra.mxu0 0
      %1413 = vmatprep.subr.bf16.mxu0 0
      %1414 = vmatpush1.bf16.msra.mxu0 0
      %1415 = vmatprep.mubr.bf16.mxu0 0
      %1416 = vmatmul.mubr.bf16.gmra.mrb[0].mxu0 %v1125
      %v1417 = vpop.f32.mrb[0].mxu0
      %v1418 = vadd.f32 %v1059, %v1417
      %v1419 = vpop.f32.mrb[0].mxu0
      %v1420 = vpop.f32.mrb[0].mxu0
      %v1421 = vpop.f32.mrb[0].mxu0
      %1422 = vdwg.mxu0
      %v1431 = vunpack.c.l.b16 %v960
      %v1432 = vunpack.c.l.b16 %v961
      %v1433 = vunpack.c.l.b16 %v962
      %v1434 = vunpack.c.l.b16 %v963
      %v1435 = vunpack.c.l.b16 %v964
      %v1436 = vunpack.c.l.b16 %v965
      %v1437 = vunpack.c.l.b16 %v966
      %v1438 = vunpack.c.l.b16 %v967
      %v1439 = vpack.c.b16 %v1432, %v1431
      %v1440 = vpack.c.b16 %v1434, %v1433
      %v1441 = vpack.c.b16 %v1436, %v1435
      %v1442 = vpack.c.b16 %v1438, %v1437
      %1447 = vmatprep.subr.bf16.mxu0 0
      %1448 = vmatpush1.bf16.msra.mxu0 %v1439
      %1449 = vmatprep.subr.bf16.mxu0 0
      %1450 = vmatpush1.bf16.msra.mxu0 %v1440
      %1451 = vmatprep.subr.bf16.mxu0 0
      %1452 = vmatpush1.bf16.msra.mxu0 %v1441
      %1453 = vmatprep.subr.bf16.mxu0 0
      %1454 = vmatpush1.bf16.msra.mxu0 %v1442
      %1455 = vmatprep.subr.bf16.mxu0 0
      %1456 = vmatpush1.bf16.msra.mxu0 0
      %1457 = vmatprep.subr.bf16.mxu0 0
      %1458 = vmatpush1.bf16.msra.mxu0 0
      %1459 = vmatprep.subr.bf16.mxu0 0
      %1460 = vmatpush1.bf16.msra.mxu0 0
      %1461 = vmatprep.subr.bf16.mxu0 0
      %1462 = vmatpush1.bf16.msra.mxu0 0
      %1463 = vmatprep.subr.bf16.mxu0 0
      %1464 = vmatpush1.bf16.msra.mxu0 0
      %1465 = vmatprep.subr.bf16.mxu0 0
      %1466 = vmatpush1.bf16.msra.mxu0 0
      %1467 = vmatprep.subr.bf16.mxu0 0
      %1468 = vmatpush1.bf16.msra.mxu0 0
      %1469 = vmatprep.subr.bf16.mxu0 0
      %1470 = vmatpush1.bf16.msra.mxu0 0
      %1471 = vmatprep.subr.bf16.mxu0 0
      %1472 = vmatpush1.bf16.msra.mxu0 0
      %1473 = vmatprep.subr.bf16.mxu0 0
      %1474 = vmatpush1.bf16.msra.mxu0 0
      %1475 = vmatprep.subr.bf16.mxu0 0
      %1476 = vmatpush1.bf16.msra.mxu0 0
      %1477 = vmatprep.subr.bf16.mxu0 0
      %1478 = vmatpush1.bf16.msra.mxu0 0
      %1479 = vmatprep.mubr.bf16.mxu0 0
      %1480 = vmatmul.mubr.bf16.gmra.mrb[0].mxu0 %v1125
      %v1481 = vpop.f32.mrb[0].mxu0
      %v1482 = vadd.f32 %v1063, %v1481
      %v1483 = vpop.f32.mrb[0].mxu0
      %v1484 = vpop.f32.mrb[0].mxu0
      %v1485 = vpop.f32.mrb[0].mxu0
      %1486 = vdwg.mxu0
      %v1495 = vunpack.c.l.b16 %v968
      %v1496 = vunpack.c.l.b16 %v969
      %v1497 = vunpack.c.l.b16 %v970
      %v1498 = vunpack.c.l.b16 %v971
      %v1499 = vunpack.c.l.b16 %v972
      %v1500 = vunpack.c.l.b16 %v973
      %v1501 = vunpack.c.l.b16 %v974
      %v1502 = vunpack.c.l.b16 %v975
      %v1503 = vpack.c.b16 %v1496, %v1495
      %v1504 = vpack.c.b16 %v1498, %v1497
      %v1505 = vpack.c.b16 %v1500, %v1499
      %v1506 = vpack.c.b16 %v1502, %v1501
      %1511 = vmatprep.subr.bf16.mxu0 0
      %1512 = vmatpush1.bf16.msra.mxu0 %v1503
      %1513 = vmatprep.subr.bf16.mxu0 0
      %1514 = vmatpush1.bf16.msra.mxu0 %v1504
      %1515 = vmatprep.subr.bf16.mxu0 0
      %1516 = vmatpush1.bf16.msra.mxu0 %v1505
      %1517 = vmatprep.subr.bf16.mxu0 0
      %1518 = vmatpush1.bf16.msra.mxu0 %v1506
      %1519 = vmatprep.subr.bf16.mxu0 0
      %1520 = vmatpush1.bf16.msra.mxu0 0
      %1521 = vmatprep.subr.bf16.mxu0 0
      %1522 = vmatpush1.bf16.msra.mxu0 0
      %1523 = vmatprep.subr.bf16.mxu0 0
      %1524 = vmatpush1.bf16.msra.mxu0 0
      %1525 = vmatprep.subr.bf16.mxu0 0
      %1526 = vmatpush1.bf16.msra.mxu0 0
      %1527 = vmatprep.subr.bf16.mxu0 0
      %1528 = vmatpush1.bf16.msra.mxu0 0
      %1529 = vmatprep.subr.bf16.mxu0 0
      %1530 = vmatpush1.bf16.msra.mxu0 0
      %1531 = vmatprep.subr.bf16.mxu0 0
      %1532 = vmatpush1.bf16.msra.mxu0 0
      %1533 = vmatprep.subr.bf16.mxu0 0
      %1534 = vmatpush1.bf16.msra.mxu0 0
      %1535 = vmatprep.subr.bf16.mxu0 0
      %1536 = vmatpush1.bf16.msra.mxu0 0
      %1537 = vmatprep.subr.bf16.mxu0 0
      %1538 = vmatpush1.bf16.msra.mxu0 0
      %1539 = vmatprep.subr.bf16.mxu0 0
      %1540 = vmatpush1.bf16.msra.mxu0 0
      %1541 = vmatprep.subr.bf16.mxu0 0
      %1542 = vmatpush1.bf16.msra.mxu0 0
      %1543 = vmatprep.mubr.bf16.mxu0 0
      %1544 = vmatmul.mubr.bf16.gmra.mrb[0].mxu0 %v1125
      %v1545 = vpop.f32.mrb[0].mxu0
      %v1546 = vadd.f32 %v1067, %v1545
      %v1547 = vpop.f32.mrb[0].mxu0
      %v1548 = vpop.f32.mrb[0].mxu0
      %v1549 = vpop.f32.mrb[0].mxu0
      %1550 = vdwg.mxu0
      %v1559 = vunpack.c.l.b16 %v976
      %v1560 = vunpack.c.l.b16 %v977
      %v1561 = vunpack.c.l.b16 %v978
      %v1562 = vunpack.c.l.b16 %v979
      %v1563 = vunpack.c.l.b16 %v980
      %v1564 = vunpack.c.l.b16 %v981
      %v1565 = vunpack.c.l.b16 %v982
      %v1566 = vunpack.c.l.b16 %v983
      %v1567 = vpack.c.b16 %v1560, %v1559
      %v1568 = vpack.c.b16 %v1562, %v1561
      %v1569 = vpack.c.b16 %v1564, %v1563
      %v1570 = vpack.c.b16 %v1566, %v1565
      %1575 = vmatprep.subr.bf16.mxu0 0
      %1576 = vmatpush1.bf16.msra.mxu0 %v1567
      %1577 = vmatprep.subr.bf16.mxu0 0
      %1578 = vmatpush1.bf16.msra.mxu0 %v1568
      %1579 = vmatprep.subr.bf16.mxu0 0
      %1580 = vmatpush1.bf16.msra.mxu0 %v1569
      %1581 = vmatprep.subr.bf16.mxu0 0
      %1582 = vmatpush1.bf16.msra.mxu0 %v1570
      %1583 = vmatprep.subr.bf16.mxu0 0
      %1584 = vmatpush1.bf16.msra.mxu0 0
      %1585 = vmatprep.subr.bf16.mxu0 0
      %1586 = vmatpush1.bf16.msra.mxu0 0
      %1587 = vmatprep.subr.bf16.mxu0 0
      %1588 = vmatpush1.bf16.msra.mxu0 0
      %1589 = vmatprep.subr.bf16.mxu0 0
      %1590 = vmatpush1.bf16.msra.mxu0 0
      %1591 = vmatprep.subr.bf16.mxu0 0
      %1592 = vmatpush1.bf16.msra.mxu0 0
      %1593 = vmatprep.subr.bf16.mxu0 0
      %1594 = vmatpush1.bf16.msra.mxu0 0
      %1595 = vmatprep.subr.bf16.mxu0 0
      %1596 = vmatpush1.bf16.msra.mxu0 0
      %1597 = vmatprep.subr.bf16.mxu0 0
      %1598 = vmatpush1.bf16.msra.mxu0 0
      %1599 = vmatprep.subr.bf16.mxu0 0
      %1600 = vmatpush1.bf16.msra.mxu0 0
      %1601 = vmatprep.subr.bf16.mxu0 0
      %1602 = vmatpush1.bf16.msra.mxu0 0
      %1603 = vmatprep.subr.bf16.mxu0 0
      %1604 = vmatpush1.bf16.msra.mxu0 0
      %1605 = vmatprep.subr.bf16.mxu0 0
      %1606 = vmatpush1.bf16.msra.mxu0 0
      %1607 = vmatprep.mubr.bf16.mxu0 0
      %1608 = vmatmul.mubr.bf16.gmra.mrb[0].mxu0 %v1125
      %v1609 = vpop.f32.mrb[0].mxu0
      %v1610 = vadd.f32 %v1071, %v1609
      %v1611 = vpop.f32.mrb[0].mxu0
      %v1612 = vpop.f32.mrb[0].mxu0
      %v1613 = vpop.f32.mrb[0].mxu0
      %1614 = vdwg.mxu0
      %v1623 = vunpack.c.l.b16 %v984
      %v1624 = vunpack.c.l.b16 %v985
      %v1625 = vunpack.c.l.b16 %v986
      %v1626 = vunpack.c.l.b16 %v987
      %v1627 = vunpack.c.l.b16 %v988
      %v1628 = vunpack.c.l.b16 %v989
      %v1629 = vunpack.c.l.b16 %v990
      %v1630 = vunpack.c.l.b16 %v991
      %v1631 = vpack.c.b16 %v1624, %v1623
      %v1632 = vpack.c.b16 %v1626, %v1625
      %v1633 = vpack.c.b16 %v1628, %v1627
      %v1634 = vpack.c.b16 %v1630, %v1629
      %1639 = vmatprep.subr.bf16.mxu0 0
      %1640 = vmatpush1.bf16.msra.mxu0 %v1631
      %1641 = vmatprep.subr.bf16.mxu0 0
      %1642 = vmatpush1.bf16.msra.mxu0 %v1632
      %1643 = vmatprep.subr.bf16.mxu0 0
      %1644 = vmatpush1.bf16.msra.mxu0 %v1633
      %1645 = vmatprep.subr.bf16.mxu0 0
      %1646 = vmatpush1.bf16.msra.mxu0 %v1634
      %1647 = vmatprep.subr.bf16.mxu0 0
      %1648 = vmatpush1.bf16.msra.mxu0 0
      %1649 = vmatprep.subr.bf16.mxu0 0
      %1650 = vmatpush1.bf16.msra.mxu0 0
      %1651 = vmatprep.subr.bf16.mxu0 0
      %1652 = vmatpush1.bf16.msra.mxu0 0
      %1653 = vmatprep.subr.bf16.mxu0 0
      %1654 = vmatpush1.bf16.msra.mxu0 0
      %1655 = vmatprep.subr.bf16.mxu0 0
      %1656 = vmatpush1.bf16.msra.mxu0 0
      %1657 = vmatprep.subr.bf16.mxu0 0
      %1658 = vmatpush1.bf16.msra.mxu0 0
      %1659 = vmatprep.subr.bf16.mxu0 0
      %1660 = vmatpush1.bf16.msra.mxu0 0
      %1661 = vmatprep.subr.bf16.mxu0 0
      %1662 = vmatpush1.bf16.msra.mxu0 0
      %1663 = vmatprep.subr.bf16.mxu0 0
      %1664 = vmatpush1.bf16.msra.mxu0 0
      %1665 = vmatprep.subr.bf16.mxu0 0
      %1666 = vmatpush1.bf16.msra.mxu0 0
      %1667 = vmatprep.subr.bf16.mxu0 0
      %1668 = vmatpush1.bf16.msra.mxu0 0
      %1669 = vmatprep.subr.bf16.mxu0 0
      %1670 = vmatpush1.bf16.msra.mxu0 0
      %1671 = vmatprep.mubr.bf16.mxu0 0
      %1672 = vmatmul.mubr.bf16.gmra.mrb[0].mxu0 %v1125
      %v1673 = vpop.f32.mrb[0].mxu0
      %v1674 = vadd.f32 %v1075, %v1673
      %v1675 = vpop.f32.mrb[0].mxu0
      %v1676 = vpop.f32.mrb[0].mxu0
      %v1677 = vpop.f32.mrb[0].mxu0
      %1678 = vdwg.mxu0
      %v1687 = vunpack.c.l.b16 %v992
      %v1688 = vunpack.c.l.b16 %v993
      %v1689 = vunpack.c.l.b16 %v994
      %v1690 = vunpack.c.l.b16 %v995
      %v1691 = vunpack.c.l.b16 %v996
      %v1692 = vunpack.c.l.b16 %v997
      %v1693 = vunpack.c.l.b16 %v998
      %v1694 = vunpack.c.l.b16 %v999
      %v1695 = vpack.c.b16 %v1688, %v1687
      %v1696 = vpack.c.b16 %v1690, %v1689
      %v1697 = vpack.c.b16 %v1692, %v1691
      %v1698 = vpack.c.b16 %v1694, %v1693
      %1703 = vmatprep.subr.bf16.mxu0 0
      %1704 = vmatpush1.bf16.msra.mxu0 %v1695
      %1705 = vmatprep.subr.bf16.mxu0 0
      %1706 = vmatpush1.bf16.msra.mxu0 %v1696
      %1707 = vmatprep.subr.bf16.mxu0 0
      %1708 = vmatpush1.bf16.msra.mxu0 %v1697
      %1709 = vmatprep.subr.bf16.mxu0 0
      %1710 = vmatpush1.bf16.msra.mxu0 %v1698
      %1711 = vmatprep.subr.bf16.mxu0 0
      %1712 = vmatpush1.bf16.msra.mxu0 0
      %1713 = vmatprep.subr.bf16.mxu0 0
      %1714 = vmatpush1.bf16.msra.mxu0 0
      %1715 = vmatprep.subr.bf16.mxu0 0
      %1716 = vmatpush1.bf16.msra.mxu0 0
      %1717 = vmatprep.subr.bf16.mxu0 0
      %1718 = vmatpush1.bf16.msra.mxu0 0
      %1719 = vmatprep.subr.bf16.mxu0 0
      %1720 = vmatpush1.bf16.msra.mxu0 0
      %1721 = vmatprep.subr.bf16.mxu0 0
      %1722 = vmatpush1.bf16.msra.mxu0 0
      %1723 = vmatprep.subr.bf16.mxu0 0
      %1724 = vmatpush1.bf16.msra.mxu0 0
      %1725 = vmatprep.subr.bf16.mxu0 0
      %1726 = vmatpush1.bf16.msra.mxu0 0
      %1727 = vmatprep.subr.bf16.mxu0 0
      %1728 = vmatpush1.bf16.msra.mxu0 0
      %1729 = vmatprep.subr.bf16.mxu0 0
      %1730 = vmatpush1.bf16.msra.mxu0 0
      %1731 = vmatprep.subr.bf16.mxu0 0
      %1732 = vmatpush1.bf16.msra.mxu0 0
      %1733 = vmatprep.subr.bf16.mxu0 0
      %1734 = vmatpush1.bf16.msra.mxu0 0
      %1735 = vmatprep.mubr.bf16.mxu0 0
      %1736 = vmatmul.mubr.bf16.gmra.mrb[0].mxu0 %v1125
      %v1737 = vpop.f32.mrb[0].mxu0
      %v1738 = vadd.f32 %v1079, %v1737
      %v1739 = vpop.f32.mrb[0].mxu0
      %v1740 = vpop.f32.mrb[0].mxu0
      %v1741 = vpop.f32.mrb[0].mxu0
      %1742 = vdwg.mxu0
      %v1751 = vunpack.c.l.b16 %v1000
      %v1752 = vunpack.c.l.b16 %v1001
      %v1753 = vunpack.c.l.b16 %v1002
      %v1754 = vunpack.c.l.b16 %v1003
      %v1755 = vunpack.c.l.b16 %v1004
      %v1756 = vunpack.c.l.b16 %v1005
      %v1757 = vunpack.c.l.b16 %v1006
      %v1758 = vunpack.c.l.b16 %v1007
      %v1759 = vpack.c.b16 %v1752, %v1751
      %v1760 = vpack.c.b16 %v1754, %v1753
      %v1761 = vpack.c.b16 %v1756, %v1755
      %v1762 = vpack.c.b16 %v1758, %v1757
      %1767 = vmatprep.subr.bf16.mxu0 0
      %1768 = vmatpush1.bf16.msra.mxu0 %v1759
      %1769 = vmatprep.subr.bf16.mxu0 0
      %1770 = vmatpush1.bf16.msra.mxu0 %v1760
      %1771 = vmatprep.subr.bf16.mxu0 0
      %1772 = vmatpush1.bf16.msra.mxu0 %v1761
      %1773 = vmatprep.subr.bf16.mxu0 0
      %1774 = vmatpush1.bf16.msra.mxu0 %v1762
      %1775 = vmatprep.subr.bf16.mxu0 0
      %1776 = vmatpush1.bf16.msra.mxu0 0
      %1777 = vmatprep.subr.bf16.mxu0 0
      %1778 = vmatpush1.bf16.msra.mxu0 0
      %1779 = vmatprep.subr.bf16.mxu0 0
      %1780 = vmatpush1.bf16.msra.mxu0 0
      %1781 = vmatprep.subr.bf16.mxu0 0
      %1782 = vmatpush1.bf16.msra.mxu0 0
      %1783 = vmatprep.subr.bf16.mxu0 0
      %1784 = vmatpush1.bf16.msra.mxu0 0
      %1785 = vmatprep.subr.bf16.mxu0 0
      %1786 = vmatpush1.bf16.msra.mxu0 0
      %1787 = vmatprep.subr.bf16.mxu0 0
      %1788 = vmatpush1.bf16.msra.mxu0 0
      %1789 = vmatprep.subr.bf16.mxu0 0
      %1790 = vmatpush1.bf16.msra.mxu0 0
      %1791 = vmatprep.subr.bf16.mxu0 0
      %1792 = vmatpush1.bf16.msra.mxu0 0
      %1793 = vmatprep.subr.bf16.mxu0 0
      %1794 = vmatpush1.bf16.msra.mxu0 0
      %1795 = vmatprep.subr.bf16.mxu0 0
      %1796 = vmatpush1.bf16.msra.mxu0 0
      %1797 = vmatprep.subr.bf16.mxu0 0
      %1798 = vmatpush1.bf16.msra.mxu0 0
      %1799 = vmatprep.mubr.bf16.mxu0 0
      %1800 = vmatmul.mubr.bf16.gmra.mrb[0].mxu0 %v1125
      %v1801 = vpop.f32.mrb[0].mxu0
      %v1802 = vadd.f32 %v1083, %v1801
      %v1803 = vpop.f32.mrb[0].mxu0
      %v1804 = vpop.f32.mrb[0].mxu0
      %v1805 = vpop.f32.mrb[0].mxu0
      %1806 = vdwg.mxu0
      %v1815 = vunpack.c.l.b16 %v1008
      %v1816 = vunpack.c.l.b16 %v1009
      %v1817 = vunpack.c.l.b16 %v1010
      %v1818 = vunpack.c.l.b16 %v1011
      %v1819 = vunpack.c.l.b16 %v1012
      %v1820 = vunpack.c.l.b16 %v1013
      %v1821 = vunpack.c.l.b16 %v1014
      %v1822 = vunpack.c.l.b16 %v1015
      %v1823 = vpack.c.b16 %v1816, %v1815
      %v1824 = vpack.c.b16 %v1818, %v1817
      %v1825 = vpack.c.b16 %v1820, %v1819
      %v1826 = vpack.c.b16 %v1822, %v1821
      %1831 = vmatprep.subr.bf16.mxu0 0
      %1832 = vmatpush1.bf16.msra.mxu0 %v1823
      %1833 = vmatprep.subr.bf16.mxu0 0
      %1834 = vmatpush1.bf16.msra.mxu0 %v1824
      %1835 = vmatprep.subr.bf16.mxu0 0
      %1836 = vmatpush1.bf16.msra.mxu0 %v1825
      %1837 = vmatprep.subr.bf16.mxu0 0
      %1838 = vmatpush1.bf16.msra.mxu0 %v1826
      %1839 = vmatprep.subr.bf16.mxu0 0
      %1840 = vmatpush1.bf16.msra.mxu0 0
      %1841 = vmatprep.subr.bf16.mxu0 0
      %1842 = vmatpush1.bf16.msra.mxu0 0
      %1843 = vmatprep.subr.bf16.mxu0 0
      %1844 = vmatpush1.bf16.msra.mxu0 0
      %1845 = vmatprep.subr.bf16.mxu0 0
      %1846 = vmatpush1.bf16.msra.mxu0 0
      %1847 = vmatprep.subr.bf16.mxu0 0
      %1848 = vmatpush1.bf16.msra.mxu0 0
      %1849 = vmatprep.subr.bf16.mxu0 0
      %1850 = vmatpush1.bf16.msra.mxu0 0
      %1851 = vmatprep.subr.bf16.mxu0 0
      %1852 = vmatpush1.bf16.msra.mxu0 0
      %1853 = vmatprep.subr.bf16.mxu0 0
      %1854 = vmatpush1.bf16.msra.mxu0 0
      %1855 = vmatprep.subr.bf16.mxu0 0
      %1856 = vmatpush1.bf16.msra.mxu0 0
      %1857 = vmatprep.subr.bf16.mxu0 0
      %1858 = vmatpush1.bf16.msra.mxu0 0
      %1859 = vmatprep.subr.bf16.mxu0 0
      %1860 = vmatpush1.bf16.msra.mxu0 0
      %1861 = vmatprep.subr.bf16.mxu0 0
      %1862 = vmatpush1.bf16.msra.mxu0 0
      %1863 = vmatprep.mubr.bf16.mxu0 0
      %1864 = vmatmul.mubr.bf16.gmra.mrb[0].mxu0 %v1125
      %v1865 = vpop.f32.mrb[0].mxu0
      %v1866 = vadd.f32 %v1087, %v1865
      %v1867 = vpop.f32.mrb[0].mxu0
      %v1868 = vpop.f32.mrb[0].mxu0
      %v1869 = vpop.f32.mrb[0].mxu0
      %1870 = vdwg.mxu0
      %v1871 = vpack.c.bf16 %v1162, %v1162
      %v1872 = vpack.c.bf16 %v1226, %v1226
      %v1873 = vpack.c.bf16 %v1290, %v1290
      %v1874 = vpack.c.bf16 %v1354, %v1354
      %v1875 = vpack.c.bf16 %v1418, %v1418
      %v1876 = vpack.c.bf16 %v1482, %v1482
      %v1877 = vpack.c.bf16 %v1546, %v1546
      %v1878 = vpack.c.bf16 %v1610, %v1610
      %1879 = vmatprep.subr.bf16.mxu0 0
      %1880 = vmatpush1.bf16.xpose.msra.mxu0 %v1875
      %1881 = vmatprep.subr.bf16.mxu0 0
      %1882 = vmatpush1.bf16.xpose.msra.mxu0 0
      %1883 = vmatprep.subr.bf16.mxu0 0
      %1884 = vmatpush1.bf16.xpose.msra.mxu0 0
      %1885 = vmatprep.subr.bf16.mxu0 0
      %1886 = vmatpush1.bf16.xpose.msra.mxu0 0
      %1887 = vmatprep.subr.bf16.mxu0 0
      %1888 = vmatpush1.bf16.xpose.msra.mxu0 0
      %1889 = vmatprep.subr.bf16.mxu0 0
      %1890 = vmatpush1.bf16.xpose.msra.mxu0 0
      %1891 = vmatprep.subr.bf16.mxu0 0
      %1892 = vmatpush1.bf16.xpose.msra.mxu0 0
      %1893 = vmatprep.subr.bf16.mxu0 0
      %1894 = vmatpush1.bf16.xpose.msra.mxu0 0
      %1895 = vmatprep.subr.bf16.mxu0 0
      %1896 = vmatpush1.bf16.xpose.msra.mxu0 0
      %1897 = vmatprep.subr.bf16.mxu0 0
      %1898 = vmatpush1.bf16.xpose.msra.mxu0 0
      %1899 = vmatprep.subr.bf16.mxu0 0
      %1900 = vmatpush1.bf16.xpose.msra.mxu0 0
      %1901 = vmatprep.subr.bf16.mxu0 0
      %1902 = vmatpush1.bf16.xpose.msra.mxu0 0
      %1903 = vmatprep.subr.bf16.mxu0 0
      %1904 = vmatpush1.bf16.xpose.msra.mxu0 0
      %1905 = vmatprep.subr.bf16.mxu0 0
      %1906 = vmatpush1.bf16.xpose.msra.mxu0 0
      %1907 = vmatprep.subr.bf16.mxu0 0
      %1908 = vmatpush1.bf16.xpose.msra.mxu0 0
      %1909 = vmatprep.subr.bf16.mxu0 0
      %1910 = vmatpush1.bf16.xpose.msra.mxu0 0
      %1911 = vmatprep.mubr.bf16.mxu0 0
      %1912 = vmatmul.mubr.bf16.gmra.mrb[0].mxu0 %v1871
      %v1913 = vpop.f32.mrb[0].mxu0
      %v1914 = vadd.f32 0.0, %v1913
      %v1915 = vpop.f32.mrb[0].mxu0
      %v1916 = vpop.f32.mrb[0].mxu0
      %v1917 = vpop.f32.mrb[0].mxu0
      %1918 = vdwg.mxu0
      %1919 = vmatprep.subr.bf16.mxu0 0
      %1920 = vmatpush1.bf16.xpose.msra.mxu0 %v1876
      %1921 = vmatprep.subr.bf16.mxu0 0
      %1922 = vmatpush1.bf16.xpose.msra.mxu0 0
      %1923 = vmatprep.subr.bf16.mxu0 0
      %1924 = vmatpush1.bf16.xpose.msra.mxu0 0
      %1925 = vmatprep.subr.bf16.mxu0 0
      %1926 = vmatpush1.bf16.xpose.msra.mxu0 0
      %1927 = vmatprep.subr.bf16.mxu0 0
      %1928 = vmatpush1.bf16.xpose.msra.mxu0 0
      %1929 = vmatprep.subr.bf16.mxu0 0
      %1930 = vmatpush1.bf16.xpose.msra.mxu0 0
      %1931 = vmatprep.subr.bf16.mxu0 0
      %1932 = vmatpush1.bf16.xpose.msra.mxu0 0
      %1933 = vmatprep.subr.bf16.mxu0 0
      %1934 = vmatpush1.bf16.xpose.msra.mxu0 0
      %1935 = vmatprep.subr.bf16.mxu0 0
      %1936 = vmatpush1.bf16.xpose.msra.mxu0 0
      %1937 = vmatprep.subr.bf16.mxu0 0
      %1938 = vmatpush1.bf16.xpose.msra.mxu0 0
      %1939 = vmatprep.subr.bf16.mxu0 0
      %1940 = vmatpush1.bf16.xpose.msra.mxu0 0
      %1941 = vmatprep.subr.bf16.mxu0 0
      %1942 = vmatpush1.bf16.xpose.msra.mxu0 0
      %1943 = vmatprep.subr.bf16.mxu0 0
      %1944 = vmatpush1.bf16.xpose.msra.mxu0 0
      %1945 = vmatprep.subr.bf16.mxu0 0
      %1946 = vmatpush1.bf16.xpose.msra.mxu0 0
      %1947 = vmatprep.subr.bf16.mxu0 0
      %1948 = vmatpush1.bf16.xpose.msra.mxu0 0
      %1949 = vmatprep.subr.bf16.mxu0 0
      %1950 = vmatpush1.bf16.xpose.msra.mxu0 0
      %1951 = vmatprep.mubr.bf16.mxu0 0
      %1952 = vmatmul.mubr.bf16.gmra.mrb[0].mxu0 %v1872
      %v1953 = vpop.f32.mrb[0].mxu0
      %v1954 = vadd.f32 0.0, %v1953
      %v1955 = vpop.f32.mrb[0].mxu0
      %v1956 = vpop.f32.mrb[0].mxu0
      %v1957 = vpop.f32.mrb[0].mxu0
      %1958 = vdwg.mxu0
      %1959 = vmatprep.subr.bf16.mxu0 0
      %1960 = vmatpush1.bf16.xpose.msra.mxu0 %v1877
      %1961 = vmatprep.subr.bf16.mxu0 0
      %1962 = vmatpush1.bf16.xpose.msra.mxu0 0
      %1963 = vmatprep.subr.bf16.mxu0 0
      %1964 = vmatpush1.bf16.xpose.msra.mxu0 0
      %1965 = vmatprep.subr.bf16.mxu0 0
      %1966 = vmatpush1.bf16.xpose.msra.mxu0 0
      %1967 = vmatprep.subr.bf16.mxu0 0
      %1968 = vmatpush1.bf16.xpose.msra.mxu0 0
      %1969 = vmatprep.subr.bf16.mxu0 0
      %1970 = vmatpush1.bf16.xpose.msra.mxu0 0
      %1971 = vmatprep.subr.bf16.mxu0 0
      %1972 = vmatpush1.bf16.xpose.msra.mxu0 0
      %1973 = vmatprep.subr.bf16.mxu0 0
      %1974 = vmatpush1.bf16.xpose.msra.mxu0 0
      %1975 = vmatprep.subr.bf16.mxu0 0
      %1976 = vmatpush1.bf16.xpose.msra.mxu0 0
      %1977 = vmatprep.subr.bf16.mxu0 0
      %1978 = vmatpush1.bf16.xpose.msra.mxu0 0
      %1979 = vmatprep.subr.bf16.mxu0 0
      %1980 = vmatpush1.bf16.xpose.msra.mxu0 0
      %1981 = vmatprep.subr.bf16.mxu0 0
      %1982 = vmatpush1.bf16.xpose.msra.mxu0 0
      %1983 = vmatprep.subr.bf16.mxu0 0
      %1984 = vmatpush1.bf16.xpose.msra.mxu0 0
      %1985 = vmatprep.subr.bf16.mxu0 0
      %1986 = vmatpush1.bf16.xpose.msra.mxu0 0
      %1987 = vmatprep.subr.bf16.mxu0 0
      %1988 = vmatpush1.bf16.xpose.msra.mxu0 0
      %1989 = vmatprep.subr.bf16.mxu0 0
      %1990 = vmatpush1.bf16.xpose.msra.mxu0 0
      %1991 = vmatprep.mubr.bf16.mxu0 0
      %1992 = vmatmul.mubr.bf16.gmra.mrb[0].mxu0 %v1873
      %v1993 = vpop.f32.mrb[0].mxu0
      %v1994 = vadd.f32 0.0, %v1993
      %v1995 = vpop.f32.mrb[0].mxu0
      %v1996 = vpop.f32.mrb[0].mxu0
      %v1997 = vpop.f32.mrb[0].mxu0
      %1998 = vdwg.mxu0
      %1999 = vmatprep.subr.bf16.mxu0 0
      %2000 = vmatpush1.bf16.xpose.msra.mxu0 %v1878
      %2001 = vmatprep.subr.bf16.mxu0 0
      %2002 = vmatpush1.bf16.xpose.msra.mxu0 0
      %2003 = vmatprep.subr.bf16.mxu0 0
      %2004 = vmatpush1.bf16.xpose.msra.mxu0 0
      %2005 = vmatprep.subr.bf16.mxu0 0
      %2006 = vmatpush1.bf16.xpose.msra.mxu0 0
      %2007 = vmatprep.subr.bf16.mxu0 0
      %2008 = vmatpush1.bf16.xpose.msra.mxu0 0
      %2009 = vmatprep.subr.bf16.mxu0 0
      %2010 = vmatpush1.bf16.xpose.msra.mxu0 0
      %2011 = vmatprep.subr.bf16.mxu0 0
      %2012 = vmatpush1.bf16.xpose.msra.mxu0 0
      %2013 = vmatprep.subr.bf16.mxu0 0
      %2014 = vmatpush1.bf16.xpose.msra.mxu0 0
      %2015 = vmatprep.subr.bf16.mxu0 0
      %2016 = vmatpush1.bf16.xpose.msra.mxu0 0
      %2017 = vmatprep.subr.bf16.mxu0 0
      %2018 = vmatpush1.bf16.xpose.msra.mxu0 0
      %2019 = vmatprep.subr.bf16.mxu0 0
      %2020 = vmatpush1.bf16.xpose.msra.mxu0 0
      %2021 = vmatprep.subr.bf16.mxu0 0
      %2022 = vmatpush1.bf16.xpose.msra.mxu0 0
      %2023 = vmatprep.subr.bf16.mxu0 0
      %2024 = vmatpush1.bf16.xpose.msra.mxu0 0
      %2025 = vmatprep.subr.bf16.mxu0 0
      %2026 = vmatpush1.bf16.xpose.msra.mxu0 0
      %2027 = vmatprep.subr.bf16.mxu0 0
      %2028 = vmatpush1.bf16.xpose.msra.mxu0 0
      %2029 = vmatprep.subr.bf16.mxu0 0
      %2030 = vmatpush1.bf16.xpose.msra.mxu0 0
      %2031 = vmatprep.mubr.bf16.mxu0 0
      %2032 = vmatmul.mubr.bf16.gmra.mrb[0].mxu0 %v1874
      %v2033 = vpop.f32.mrb[0].mxu0
      %v2034 = vadd.f32 0.0, %v2033
      %v2035 = vpop.f32.mrb[0].mxu0
      %v2036 = vpop.f32.mrb[0].mxu0
      %v2037 = vpop.f32.mrb[0].mxu0
      %2038 = vdwg.mxu0
      %v2039 = vmul.f32 %v1914, 0.25
      %v2040 = vmul.f32 %v1954, 0.25
      %v2041 = vmul.f32 %v1994, 0.25
      %v2042 = vmul.f32 %v2034, 0.25
      %v2044 = vlaneseq
      %v2045 = vshrl.u32 %v2044, 7
      %v2046 = vsub.s32 0, %v2045
      %v2047 = vrot.slane %v918, %v2046
      %v2049 = vadd.f32 %v2039, %v2047
      %v2050 = vadd.f32 %v2040, %v2047
      %v2051 = vadd.f32 %v2041, %v2047
      %v2052 = vadd.f32 %v2042, %v2047
      %vm2053 = vcmask 64512
      %v2054 = vsel %vm2053, %v2049, -inf
      %2055 = vmax.xlane.f32.xlu0 %v2054
      %v2056 = vpop.xlane.xlu0 %2055
      %v2057 = vsel %vm2053, %v2050, -inf
      %2058 = vmax.xlane.f32.xlu0 %v2057
      %v2059 = vpop.xlane.xlu0 %2058
      %v2060 = vsel %vm2053, %v2051, -inf
      %2061 = vmax.xlane.f32.xlu0 %v2060
      %v2062 = vpop.xlane.xlu0 %2061
      %v2063 = vsel %vm2053, %v2052, -inf
      %2064 = vmax.xlane.f32.xlu0 %v2063
      %v2065 = vpop.xlane.xlu0 %2064
      %v2066 = vsub.f32 %v2049, %v2056
      %v2067 = vsub.f32 %v2050, %v2059
      %v2068 = vsub.f32 %v2051, %v2062
      %v2069 = vsub.f32 %v2052, %v2065
      %v2070 = vmul.f32 %v2066, 1.442695
      %v2071 = vpow.pop %v2070
      %v2072 = vmul.f32 %v2067, 1.442695
      %v2073 = vpow.pop %v2072
      %v2074 = vmul.f32 %v2068, 1.442695
      %v2075 = vpow.pop %v2074
      %v2076 = vmul.f32 %v2069, 1.442695
      %v2077 = vpow.pop %v2076
      %v2078 = vsel %vm2053, %v2071, 0.0
      %2079 = vadd.xlane.f32.xlu0 %v2078
      %v2080 = vpop.xlane.xlu0 %2079
      %v2081 = vsel %vm2053, %v2073, 0.0
      %2082 = vadd.xlane.f32.xlu0 %v2081
      %v2083 = vpop.xlane.xlu0 %2082
      %v2084 = vsel %vm2053, %v2075, 0.0
      %2085 = vadd.xlane.f32.xlu0 %v2084
      %v2086 = vpop.xlane.xlu0 %2085
      %v2087 = vsel %vm2053, %v2077, 0.0
      %2088 = vadd.xlane.f32.xlu0 %v2087
      %v2089 = vpop.xlane.xlu0 %2088
      %v2090 = vrcp.pop %v2080
      %v2091 = vrcp.pop %v2083
      %v2092 = vrcp.pop %v2086
      %v2093 = vrcp.pop %v2089
      %v2094 = vmul.f32 %v2071, %v2090
      %v2095 = vmul.f32 %v2073, %v2091
      %v2096 = vmul.f32 %v2075, %v2092
      %v2097 = vmul.f32 %v2077, %v2093
      %v2098 = vpack.c.bf16 %v2094, %v2094
      %v2099 = vpack.c.bf16 %v2095, %v2095
      %v2100 = vpack.c.bf16 %v2096, %v2096
      %v2101 = vpack.c.bf16 %v2097, %v2097
      %v2102 = vpack.c.bf16 %v1674, %v1674
      %v2103 = vpack.c.bf16 %v1738, %v1738
      %v2104 = vpack.c.bf16 %v1802, %v1802
      %v2105 = vpack.c.bf16 %v1866, %v1866
      %v2107 = vsel %vm2053, %v2098, 0
      %vm2109 = vcmask 1043456
      %v2111 = vsel %vm2109, %v2102, 0
      %2113 = vmatprep.subr.bf16.mxu0 0
      %2114 = vmatpush1.bf16.msra.mxu0 %v2111
      %2115 = vmatprep.subr.bf16.mxu0 0
      %2116 = vmatpush1.bf16.msra.mxu0 0
      %2117 = vmatprep.subr.bf16.mxu0 0
      %2118 = vmatpush1.bf16.msra.mxu0 0
      %2119 = vmatprep.subr.bf16.mxu0 0
      %2120 = vmatpush1.bf16.msra.mxu0 0
      %2121 = vmatprep.subr.bf16.mxu0 0
      %2122 = vmatpush1.bf16.msra.mxu0 0
      %2123 = vmatprep.subr.bf16.mxu0 0
      %2124 = vmatpush1.bf16.msra.mxu0 0
      %2125 = vmatprep.subr.bf16.mxu0 0
      %2126 = vmatpush1.bf16.msra.mxu0 0
      %2127 = vmatprep.subr.bf16.mxu0 0
      %2128 = vmatpush1.bf16.msra.mxu0 0
      %2129 = vmatprep.subr.bf16.mxu0 0
      %2130 = vmatpush1.bf16.msra.mxu0 0
      %2131 = vmatprep.subr.bf16.mxu0 0
      %2132 = vmatpush1.bf16.msra.mxu0 0
      %2133 = vmatprep.subr.bf16.mxu0 0
      %2134 = vmatpush1.bf16.msra.mxu0 0
      %2135 = vmatprep.subr.bf16.mxu0 0
      %2136 = vmatpush1.bf16.msra.mxu0 0
      %2137 = vmatprep.subr.bf16.mxu0 0
      %2138 = vmatpush1.bf16.msra.mxu0 0
      %2139 = vmatprep.subr.bf16.mxu0 0
      %2140 = vmatpush1.bf16.msra.mxu0 0
      %2141 = vmatprep.subr.bf16.mxu0 0
      %2142 = vmatpush1.bf16.msra.mxu0 0
      %2143 = vmatprep.subr.bf16.mxu0 0
      %2144 = vmatpush1.bf16.msra.mxu0 0
      %2145 = vmatprep.mubr.bf16.mxu0 0
      %2146 = vmatmul.mubr.bf16.gmra.mrb[0].mxu0 %v2107
      %v2147 = vpop.f32.mrb[0].mxu0
      %v2148 = vadd.f32 0.0, %v2147
      %v2149 = vpop.f32.mrb[0].mxu0
      %v2150 = vpop.f32.mrb[0].mxu0
      %v2151 = vpop.f32.mrb[0].mxu0
      %2152 = vdwg.mxu0
      %v2154 = vsel %vm2053, %v2099, 0
      %v2157 = vsel %vm2109, %v2103, 0
      %2159 = vmatprep.subr.bf16.mxu0 0
      %2160 = vmatpush1.bf16.msra.mxu0 %v2157
      %2161 = vmatprep.subr.bf16.mxu0 0
      %2162 = vmatpush1.bf16.msra.mxu0 0
      %2163 = vmatprep.subr.bf16.mxu0 0
      %2164 = vmatpush1.bf16.msra.mxu0 0
      %2165 = vmatprep.subr.bf16.mxu0 0
      %2166 = vmatpush1.bf16.msra.mxu0 0
      %2167 = vmatprep.subr.bf16.mxu0 0
      %2168 = vmatpush1.bf16.msra.mxu0 0
      %2169 = vmatprep.subr.bf16.mxu0 0
      %2170 = vmatpush1.bf16.msra.mxu0 0
      %2171 = vmatprep.subr.bf16.mxu0 0
      %2172 = vmatpush1.bf16.msra.mxu0 0
      %2173 = vmatprep.subr.bf16.mxu0 0
      %2174 = vmatpush1.bf16.msra.mxu0 0
      %2175 = vmatprep.subr.bf16.mxu0 0
      %2176 = vmatpush1.bf16.msra.mxu0 0
      %2177 = vmatprep.subr.bf16.mxu0 0
      %2178 = vmatpush1.bf16.msra.mxu0 0
      %2179 = vmatprep.subr.bf16.mxu0 0
      %2180 = vmatpush1.bf16.msra.mxu0 0
      %2181 = vmatprep.subr.bf16.mxu0 0
      %2182 = vmatpush1.bf16.msra.mxu0 0
      %2183 = vmatprep.subr.bf16.mxu0 0
      %2184 = vmatpush1.bf16.msra.mxu0 0
      %2185 = vmatprep.subr.bf16.mxu0 0
      %2186 = vmatpush1.bf16.msra.mxu0 0
      %2187 = vmatprep.subr.bf16.mxu0 0
      %2188 = vmatpush1.bf16.msra.mxu0 0
      %2189 = vmatprep.subr.bf16.mxu0 0
      %2190 = vmatpush1.bf16.msra.mxu0 0
      %2191 = vmatprep.mubr.bf16.mxu0 0
      %2192 = vmatmul.mubr.bf16.gmra.mrb[0].mxu0 %v2154
      %v2193 = vpop.f32.mrb[0].mxu0
      %v2194 = vadd.f32 0.0, %v2193
      %v2195 = vpop.f32.mrb[0].mxu0
      %v2196 = vpop.f32.mrb[0].mxu0
      %v2197 = vpop.f32.mrb[0].mxu0
      %2198 = vdwg.mxu0
      %v2200 = vsel %vm2053, %v2100, 0
      %v2203 = vsel %vm2109, %v2104, 0
      %2205 = vmatprep.subr.bf16.mxu0 0
      %2206 = vmatpush1.bf16.msra.mxu0 %v2203
      %2207 = vmatprep.subr.bf16.mxu0 0
      %2208 = vmatpush1.bf16.msra.mxu0 0
      %2209 = vmatprep.subr.bf16.mxu0 0
      %2210 = vmatpush1.bf16.msra.mxu0 0
      %2211 = vmatprep.subr.bf16.mxu0 0
      %2212 = vmatpush1.bf16.msra.mxu0 0
      %2213 = vmatprep.subr.bf16.mxu0 0
      %2214 = vmatpush1.bf16.msra.mxu0 0
      %2215 = vmatprep.subr.bf16.mxu0 0
      %2216 = vmatpush1.bf16.msra.mxu0 0
      %2217 = vmatprep.subr.bf16.mxu0 0
      %2218 = vmatpush1.bf16.msra.mxu0 0
      %2219 = vmatprep.subr.bf16.mxu0 0
      %2220 = vmatpush1.bf16.msra.mxu0 0
      %2221 = vmatprep.subr.bf16.mxu0 0
      %2222 = vmatpush1.bf16.msra.mxu0 0
      %2223 = vmatprep.subr.bf16.mxu0 0
      %2224 = vmatpush1.bf16.msra.mxu0 0
      %2225 = vmatprep.subr.bf16.mxu0 0
      %2226 = vmatpush1.bf16.msra.mxu0 0
      %2227 = vmatprep.subr.bf16.mxu0 0
      %2228 = vmatpush1.bf16.msra.mxu0 0
      %2229 = vmatprep.subr.bf16.mxu0 0
      %2230 = vmatpush1.bf16.msra.mxu0 0
      %2231 = vmatprep.subr.bf16.mxu0 0
      %2232 = vmatpush1.bf16.msra.mxu0 0
      %2233 = vmatprep.subr.bf16.mxu0 0
      %2234 = vmatpush1.bf16.msra.mxu0 0
      %2235 = vmatprep.subr.bf16.mxu0 0
      %2236 = vmatpush1.bf16.msra.mxu0 0
      %2237 = vmatprep.mubr.bf16.mxu0 0
      %2238 = vmatmul.mubr.bf16.gmra.mrb[0].mxu0 %v2200
      %v2239 = vpop.f32.mrb[0].mxu0
      %v2240 = vadd.f32 0.0, %v2239
      %v2241 = vpop.f32.mrb[0].mxu0
      %v2242 = vpop.f32.mrb[0].mxu0
      %v2243 = vpop.f32.mrb[0].mxu0
      %2244 = vdwg.mxu0
      %v2246 = vsel %vm2053, %v2101, 0
      %v2249 = vsel %vm2109, %v2105, 0
      %2251 = vmatprep.subr.bf16.mxu0 0
      %2252 = vmatpush1.bf16.msra.mxu0 %v2249
      %2253 = vmatprep.subr.bf16.mxu0 0
      %2254 = vmatpush1.bf16.msra.mxu0 0
      %2255 = vmatprep.subr.bf16.mxu0 0
      %2256 = vmatpush1.bf16.msra.mxu0 0
      %2257 = vmatprep.subr.bf16.mxu0 0
      %2258 = vmatpush1.bf16.msra.mxu0 0
      %2259 = vmatprep.subr.bf16.mxu0 0
      %2260 = vmatpush1.bf16.msra.mxu0 0
      %2261 = vmatprep.subr.bf16.mxu0 0
      %2262 = vmatpush1.bf16.msra.mxu0 0
      %2263 = vmatprep.subr.bf16.mxu0 0
      %2264 = vmatpush1.bf16.msra.mxu0 0
      %2265 = vmatprep.subr.bf16.mxu0 0
      %2266 = vmatpush1.bf16.msra.mxu0 0
      %2267 = vmatprep.subr.bf16.mxu0 0
      %2268 = vmatpush1.bf16.msra.mxu0 0
      %2269 = vmatprep.subr.bf16.mxu0 0
      %2270 = vmatpush1.bf16.msra.mxu0 0
      %2271 = vmatprep.subr.bf16.mxu0 0
      %2272 = vmatpush1.bf16.msra.mxu0 0
      %2273 = vmatprep.subr.bf16.mxu0 0
      %2274 = vmatpush1.bf16.msra.mxu0 0
      %2275 = vmatprep.subr.bf16.mxu0 0
      %2276 = vmatpush1.bf16.msra.mxu0 0
      %2277 = vmatprep.subr.bf16.mxu0 0
      %2278 = vmatpush1.bf16.msra.mxu0 0
      %2279 = vmatprep.subr.bf16.mxu0 0
      %2280 = vmatpush1.bf16.msra.mxu0 0
      %2281 = vmatprep.subr.bf16.mxu0 0
      %2282 = vmatpush1.bf16.msra.mxu0 0
      %2283 = vmatprep.mubr.bf16.mxu0 0
      %2284 = vmatmul.mubr.bf16.gmra.mrb[0].mxu0 %v2246
      %v2285 = vpop.f32.mrb[0].mxu0
      %v2286 = vadd.f32 0.0, %v2285
      %v2287 = vpop.f32.mrb[0].mxu0
      %v2288 = vpop.f32.mrb[0].mxu0
      %v2289 = vpop.f32.mrb[0].mxu0
      %2290 = vdwg.mxu0
      %v2291 = vpack.c.bf16 %v2148, %v2148
      %v2292 = vpack.c.bf16 %v2194, %v2194
      %v2293 = vpack.c.bf16 %v2240, %v2240
      %v2294 = vpack.c.bf16 %v2286, %v2286
      %v2295 = vld [vmem:[%s9] sm:$0xf]
      %v2296 = vld [vmem:[%s9 + $0x4] sm:$0xf]
      %v2297 = vld [vmem:[%s9 + $0x8] sm:$0xf]
      %v2298 = vld [vmem:[%s9 + $0xc] sm:$0xf]
      %v2299 = vld [vmem:[%s9 + $0x10] sm:$0xf]
      %v2300 = vld [vmem:[%s9 + $0x14] sm:$0xf]
      %v2301 = vld [vmem:[%s9 + $0x18] sm:$0xf]
      %v2302 = vld [vmem:[%s9 + $0x1c] sm:$0xf]
      %v2303 = vld [vmem:[%s9 + $0x20] sm:$0xf]
      %v2304 = vld [vmem:[%s9 + $0x24] sm:$0xf]
      %v2305 = vld [vmem:[%s9 + $0x28] sm:$0xf]
      %v2306 = vld [vmem:[%s9 + $0x2c] sm:$0xf]
      %v2307 = vld [vmem:[%s9 + $0x30] sm:$0xf]
      %v2308 = vld [vmem:[%s9 + $0x34] sm:$0xf]
      %v2309 = vld [vmem:[%s9 + $0x38] sm:$0xf]
      %v2310 = vld [vmem:[%s9 + $0x3c] sm:$0xf]
      %v2311 = vld [vmem:[%s9 + $0x40] sm:$0xf]
      %v2312 = vld [vmem:[%s9 + $0x44] sm:$0xf]
      %v2313 = vld [vmem:[%s9 + $0x48] sm:$0xf]
      %v2314 = vld [vmem:[%s9 + $0x4c] sm:$0xf]
      %v2315 = vld [vmem:[%s9 + $0x50] sm:$0xf]
      %v2316 = vld [vmem:[%s9 + $0x54] sm:$0xf]
      %v2317 = vld [vmem:[%s9 + $0x58] sm:$0xf]
      %v2318 = vld [vmem:[%s9 + $0x5c] sm:$0xf]
      %v2319 = vld [vmem:[%s9 + $0x60] sm:$0xf]
      %v2320 = vld [vmem:[%s9 + $0x64] sm:$0xf]
      %v2321 = vld [vmem:[%s9 + $0x68] sm:$0xf]
      %v2322 = vld [vmem:[%s9 + $0x6c] sm:$0xf]
      %v2323 = vld [vmem:[%s9 + $0x70] sm:$0xf]
      %v2324 = vld [vmem:[%s9 + $0x74] sm:$0xf]
      %v2325 = vld [vmem:[%s9 + $0x78] sm:$0xf]
      %v2326 = vld [vmem:[%s9 + $0x7c] sm:$0xf]
      %v2327 = vld [vmem:[%s9 + $0x80] sm:$0xf]
      %v2328 = vld [vmem:[%s9 + $0x84] sm:$0xf]
      %v2329 = vld [vmem:[%s9 + $0x88] sm:$0xf]
      %v2330 = vld [vmem:[%s9 + $0x8c] sm:$0xf]
      %v2331 = vld [vmem:[%s9 + $0x90] sm:$0xf]
      %v2332 = vld [vmem:[%s9 + $0x94] sm:$0xf]
      %v2333 = vld [vmem:[%s9 + $0x98] sm:$0xf]
      %v2334 = vld [vmem:[%s9 + $0x9c] sm:$0xf]
      %v2335 = vld [vmem:[%s9 + $0xa0] sm:$0xf]
      %v2336 = vld [vmem:[%s9 + $0xa4] sm:$0xf]
      %v2337 = vld [vmem:[%s9 + $0xa8] sm:$0xf]
      %v2338 = vld [vmem:[%s9 + $0xac] sm:$0xf]
      %v2339 = vld [vmem:[%s9 + $0xb0] sm:$0xf]
      %v2340 = vld [vmem:[%s9 + $0xb4] sm:$0xf]
      %v2341 = vld [vmem:[%s9 + $0xb8] sm:$0xf]
      %v2342 = vld [vmem:[%s9 + $0xbc] sm:$0xf]
      %v2343 = vld [vmem:[%s9 + $0xc0] sm:$0xf]
      %v2344 = vld [vmem:[%s9 + $0xc4] sm:$0xf]
      %v2345 = vld [vmem:[%s9 + $0xc8] sm:$0xf]
      %v2346 = vld [vmem:[%s9 + $0xcc] sm:$0xf]
      %v2347 = vld [vmem:[%s9 + $0xd0] sm:$0xf]
      %v2348 = vld [vmem:[%s9 + $0xd4] sm:$0xf]
      %v2349 = vld [vmem:[%s9 + $0xd8] sm:$0xf]
      %v2350 = vld [vmem:[%s9 + $0xdc] sm:$0xf]
      %v2351 = vld [vmem:[%s9 + $0xe0] sm:$0xf]
      %v2352 = vld [vmem:[%s9 + $0xe4] sm:$0xf]
      %v2353 = vld [vmem:[%s9 + $0xe8] sm:$0xf]
      %v2354 = vld [vmem:[%s9 + $0xec] sm:$0xf]
      %v2355 = vld [vmem:[%s9 + $0xf0] sm:$0xf]
      %v2356 = vld [vmem:[%s9 + $0xf4] sm:$0xf]
      %v2357 = vld [vmem:[%s9 + $0xf8] sm:$0xf]
      %v2358 = vld [vmem:[%s9 + $0xfc] sm:$0xf]
      %v2375 = vunpack.c.l.b16 %v2295
      %v2376 = vunpack.c.l.b16 %v2296
      %v2377 = vunpack.c.l.b16 %v2297
      %v2378 = vunpack.c.l.b16 %v2298
      %v2379 = vunpack.c.l.b16 %v2299
      %v2380 = vunpack.c.l.b16 %v2300
      %v2381 = vunpack.c.l.b16 %v2301
      %v2382 = vunpack.c.l.b16 %v2302
      %v2383 = vunpack.c.l.b16 %v2303
      %v2384 = vunpack.c.l.b16 %v2304
      %v2385 = vunpack.c.l.b16 %v2305
      %v2386 = vunpack.c.l.b16 %v2306
      %v2387 = vunpack.c.l.b16 %v2307
      %v2388 = vunpack.c.l.b16 %v2308
      %v2389 = vunpack.c.l.b16 %v2309
      %v2390 = vunpack.c.l.b16 %v2310
      %v2391 = vpack.c.b16 %v2376, %v2375
      %v2392 = vpack.c.b16 %v2378, %v2377
      %v2393 = vpack.c.b16 %v2380, %v2379
      %v2394 = vpack.c.b16 %v2382, %v2381
      %v2395 = vpack.c.b16 %v2384, %v2383
      %v2396 = vpack.c.b16 %v2386, %v2385
      %v2397 = vpack.c.b16 %v2388, %v2387
      %v2398 = vpack.c.b16 %v2390, %v2389
      %2407 = vmatprep.subr.bf16.mxu0 0
      %2408 = vmatpush1.bf16.msra.mxu0 %v2391
      %2409 = vmatprep.subr.bf16.mxu0 0
      %2410 = vmatpush1.bf16.msra.mxu0 %v2392
      %2411 = vmatprep.subr.bf16.mxu0 0
      %2412 = vmatpush1.bf16.msra.mxu0 %v2393
      %2413 = vmatprep.subr.bf16.mxu0 0
      %2414 = vmatpush1.bf16.msra.mxu0 %v2394
      %2415 = vmatprep.subr.bf16.mxu0 0
      %2416 = vmatpush1.bf16.msra.mxu0 %v2395
      %2417 = vmatprep.subr.bf16.mxu0 0
      %2418 = vmatpush1.bf16.msra.mxu0 %v2396
      %2419 = vmatprep.subr.bf16.mxu0 0
      %2420 = vmatpush1.bf16.msra.mxu0 %v2397
      %2421 = vmatprep.subr.bf16.mxu0 0
      %2422 = vmatpush1.bf16.msra.mxu0 %v2398
      %2423 = vmatprep.subr.bf16.mxu0 0
      %2424 = vmatpush1.bf16.msra.mxu0 0
      %2425 = vmatprep.subr.bf16.mxu0 0
      %2426 = vmatpush1.bf16.msra.mxu0 0
      %2427 = vmatprep.subr.bf16.mxu0 0
      %2428 = vmatpush1.bf16.msra.mxu0 0
      %2429 = vmatprep.subr.bf16.mxu0 0
      %2430 = vmatpush1.bf16.msra.mxu0 0
      %2431 = vmatprep.subr.bf16.mxu0 0
      %2432 = vmatpush1.bf16.msra.mxu0 0
      %2433 = vmatprep.subr.bf16.mxu0 0
      %2434 = vmatpush1.bf16.msra.mxu0 0
      %2435 = vmatprep.subr.bf16.mxu0 0
      %2436 = vmatpush1.bf16.msra.mxu0 0
      %2437 = vmatprep.subr.bf16.mxu0 0
      %2438 = vmatpush1.bf16.msra.mxu0 0
      %2439 = vmatprep.mubr.bf16.mxu0 0
      %2440 = vmatmul.mubr.bf16.gmra.mrb[0].mxu0 %v2291
      %v2441 = vpop.f32.mrb[0].mxu0
      %v2442 = vadd.f32 0.0, %v2441
      %v2443 = vpop.f32.mrb[0].mxu0
      %v2444 = vpop.f32.mrb[0].mxu0
      %v2445 = vpop.f32.mrb[0].mxu0
      %2446 = vdwg.mxu0
      %v2463 = vunpack.c.l.b16 %v2311
      %v2464 = vunpack.c.l.b16 %v2312
      %v2465 = vunpack.c.l.b16 %v2313
      %v2466 = vunpack.c.l.b16 %v2314
      %v2467 = vunpack.c.l.b16 %v2315
      %v2468 = vunpack.c.l.b16 %v2316
      %v2469 = vunpack.c.l.b16 %v2317
      %v2470 = vunpack.c.l.b16 %v2318
      %v2471 = vunpack.c.l.b16 %v2319
      %v2472 = vunpack.c.l.b16 %v2320
      %v2473 = vunpack.c.l.b16 %v2321
      %v2474 = vunpack.c.l.b16 %v2322
      %v2475 = vunpack.c.l.b16 %v2323
      %v2476 = vunpack.c.l.b16 %v2324
      %v2477 = vunpack.c.l.b16 %v2325
      %v2478 = vunpack.c.l.b16 %v2326
      %v2479 = vpack.c.b16 %v2464, %v2463
      %v2480 = vpack.c.b16 %v2466, %v2465
      %v2481 = vpack.c.b16 %v2468, %v2467
      %v2482 = vpack.c.b16 %v2470, %v2469
      %v2483 = vpack.c.b16 %v2472, %v2471
      %v2484 = vpack.c.b16 %v2474, %v2473
      %v2485 = vpack.c.b16 %v2476, %v2475
      %v2486 = vpack.c.b16 %v2478, %v2477
      %2495 = vmatprep.subr.bf16.mxu0 0
      %2496 = vmatpush1.bf16.msra.mxu0 %v2479
      %2497 = vmatprep.subr.bf16.mxu0 0
      %2498 = vmatpush1.bf16.msra.mxu0 %v2480
      %2499 = vmatprep.subr.bf16.mxu0 0
      %2500 = vmatpush1.bf16.msra.mxu0 %v2481
      %2501 = vmatprep.subr.bf16.mxu0 0
      %2502 = vmatpush1.bf16.msra.mxu0 %v2482
      %2503 = vmatprep.subr.bf16.mxu0 0
      %2504 = vmatpush1.bf16.msra.mxu0 %v2483
      %2505 = vmatprep.subr.bf16.mxu0 0
      %2506 = vmatpush1.bf16.msra.mxu0 %v2484
      %2507 = vmatprep.subr.bf16.mxu0 0
      %2508 = vmatpush1.bf16.msra.mxu0 %v2485
      %2509 = vmatprep.subr.bf16.mxu0 0
      %2510 = vmatpush1.bf16.msra.mxu0 %v2486
      %2511 = vmatprep.subr.bf16.mxu0 0
      %2512 = vmatpush1.bf16.msra.mxu0 0
      %2513 = vmatprep.subr.bf16.mxu0 0
      %2514 = vmatpush1.bf16.msra.mxu0 0
      %2515 = vmatprep.subr.bf16.mxu0 0
      %2516 = vmatpush1.bf16.msra.mxu0 0
      %2517 = vmatprep.subr.bf16.mxu0 0
      %2518 = vmatpush1.bf16.msra.mxu0 0
      %2519 = vmatprep.subr.bf16.mxu0 0
      %2520 = vmatpush1.bf16.msra.mxu0 0
      %2521 = vmatprep.subr.bf16.mxu0 0
      %2522 = vmatpush1.bf16.msra.mxu0 0
      %2523 = vmatprep.subr.bf16.mxu0 0
      %2524 = vmatpush1.bf16.msra.mxu0 0
      %2525 = vmatprep.subr.bf16.mxu0 0
      %2526 = vmatpush1.bf16.msra.mxu0 0
      %2527 = vmatprep.mubr.bf16.mxu0 0
      %2528 = vmatmul.mubr.bf16.gmra.mrb[0].mxu0 %v2292
      %v2529 = vpop.f32.mrb[0].mxu0
      %v2530 = vadd.f32 0.0, %v2529
      %v2531 = vpop.f32.mrb[0].mxu0
      %v2532 = vpop.f32.mrb[0].mxu0
      %v2533 = vpop.f32.mrb[0].mxu0
      %2534 = vdwg.mxu0
      %v2551 = vunpack.c.l.b16 %v2327
      %v2552 = vunpack.c.l.b16 %v2328
      %v2553 = vunpack.c.l.b16 %v2329
      %v2554 = vunpack.c.l.b16 %v2330
      %v2555 = vunpack.c.l.b16 %v2331
      %v2556 = vunpack.c.l.b16 %v2332
      %v2557 = vunpack.c.l.b16 %v2333
      %v2558 = vunpack.c.l.b16 %v2334
      %v2559 = vunpack.c.l.b16 %v2335
      %v2560 = vunpack.c.l.b16 %v2336
      %v2561 = vunpack.c.l.b16 %v2337
      %v2562 = vunpack.c.l.b16 %v2338
      %v2563 = vunpack.c.l.b16 %v2339
      %v2564 = vunpack.c.l.b16 %v2340
      %v2565 = vunpack.c.l.b16 %v2341
      %v2566 = vunpack.c.l.b16 %v2342
      %v2567 = vpack.c.b16 %v2552, %v2551
      %v2568 = vpack.c.b16 %v2554, %v2553
      %v2569 = vpack.c.b16 %v2556, %v2555
      %v2570 = vpack.c.b16 %v2558, %v2557
      %v2571 = vpack.c.b16 %v2560, %v2559
      %v2572 = vpack.c.b16 %v2562, %v2561
      %v2573 = vpack.c.b16 %v2564, %v2563
      %v2574 = vpack.c.b16 %v2566, %v2565
      %2583 = vmatprep.subr.bf16.mxu0 0
      %2584 = vmatpush1.bf16.msra.mxu0 %v2567
      %2585 = vmatprep.subr.bf16.mxu0 0
      %2586 = vmatpush1.bf16.msra.mxu0 %v2568
      %2587 = vmatprep.subr.bf16.mxu0 0
      %2588 = vmatpush1.bf16.msra.mxu0 %v2569
      %2589 = vmatprep.subr.bf16.mxu0 0
      %2590 = vmatpush1.bf16.msra.mxu0 %v2570
      %2591 = vmatprep.subr.bf16.mxu0 0
      %2592 = vmatpush1.bf16.msra.mxu0 %v2571
      %2593 = vmatprep.subr.bf16.mxu0 0
      %2594 = vmatpush1.bf16.msra.mxu0 %v2572
      %2595 = vmatprep.subr.bf16.mxu0 0
      %2596 = vmatpush1.bf16.msra.mxu0 %v2573
      %2597 = vmatprep.subr.bf16.mxu0 0
      %2598 = vmatpush1.bf16.msra.mxu0 %v2574
      %2599 = vmatprep.subr.bf16.mxu0 0
      %2600 = vmatpush1.bf16.msra.mxu0 0
      %2601 = vmatprep.subr.bf16.mxu0 0
      %2602 = vmatpush1.bf16.msra.mxu0 0
      %2603 = vmatprep.subr.bf16.mxu0 0
      %2604 = vmatpush1.bf16.msra.mxu0 0
      %2605 = vmatprep.subr.bf16.mxu0 0
      %2606 = vmatpush1.bf16.msra.mxu0 0
      %2607 = vmatprep.subr.bf16.mxu0 0
      %2608 = vmatpush1.bf16.msra.mxu0 0
      %2609 = vmatprep.subr.bf16.mxu0 0
      %2610 = vmatpush1.bf16.msra.mxu0 0
      %2611 = vmatprep.subr.bf16.mxu0 0
      %2612 = vmatpush1.bf16.msra.mxu0 0
      %2613 = vmatprep.subr.bf16.mxu0 0
      %2614 = vmatpush1.bf16.msra.mxu0 0
      %2615 = vmatprep.mubr.bf16.mxu0 0
      %2616 = vmatmul.mubr.bf16.gmra.mrb[0].mxu0 %v2293
      %v2617 = vpop.f32.mrb[0].mxu0
      %v2618 = vadd.f32 0.0, %v2617
      %v2619 = vpop.f32.mrb[0].mxu0
      %v2620 = vpop.f32.mrb[0].mxu0
      %v2621 = vpop.f32.mrb[0].mxu0
      %2622 = vdwg.mxu0
      %v2639 = vunpack.c.l.b16 %v2343
      %v2640 = vunpack.c.l.b16 %v2344
      %v2641 = vunpack.c.l.b16 %v2345
      %v2642 = vunpack.c.l.b16 %v2346
      %v2643 = vunpack.c.l.b16 %v2347
      %v2644 = vunpack.c.l.b16 %v2348
      %v2645 = vunpack.c.l.b16 %v2349
      %v2646 = vunpack.c.l.b16 %v2350
      %v2647 = vunpack.c.l.b16 %v2351
      %v2648 = vunpack.c.l.b16 %v2352
      %v2649 = vunpack.c.l.b16 %v2353
      %v2650 = vunpack.c.l.b16 %v2354
      %v2651 = vunpack.c.l.b16 %v2355
      %v2652 = vunpack.c.l.b16 %v2356
      %v2653 = vunpack.c.l.b16 %v2357
      %v2654 = vunpack.c.l.b16 %v2358
      %v2655 = vpack.c.b16 %v2640, %v2639
      %v2656 = vpack.c.b16 %v2642, %v2641
      %v2657 = vpack.c.b16 %v2644, %v2643
      %v2658 = vpack.c.b16 %v2646, %v2645
      %v2659 = vpack.c.b16 %v2648, %v2647
      %v2660 = vpack.c.b16 %v2650, %v2649
      %v2661 = vpack.c.b16 %v2652, %v2651
      %v2662 = vpack.c.b16 %v2654, %v2653
      %2671 = vmatprep.subr.bf16.mxu0 0
      %2672 = vmatpush1.bf16.msra.mxu0 %v2655
      %2673 = vmatprep.subr.bf16.mxu0 0
      %2674 = vmatpush1.bf16.msra.mxu0 %v2656
      %2675 = vmatprep.subr.bf16.mxu0 0
      %2676 = vmatpush1.bf16.msra.mxu0 %v2657
      %2677 = vmatprep.subr.bf16.mxu0 0
      %2678 = vmatpush1.bf16.msra.mxu0 %v2658
      %2679 = vmatprep.subr.bf16.mxu0 0
      %2680 = vmatpush1.bf16.msra.mxu0 %v2659
      %2681 = vmatprep.subr.bf16.mxu0 0
      %2682 = vmatpush1.bf16.msra.mxu0 %v2660
      %2683 = vmatprep.subr.bf16.mxu0 0
      %2684 = vmatpush1.bf16.msra.mxu0 %v2661
      %2685 = vmatprep.subr.bf16.mxu0 0
      %2686 = vmatpush1.bf16.msra.mxu0 %v2662
      %2687 = vmatprep.subr.bf16.mxu0 0
      %2688 = vmatpush1.bf16.msra.mxu0 0
      %2689 = vmatprep.subr.bf16.mxu0 0
      %2690 = vmatpush1.bf16.msra.mxu0 0
      %2691 = vmatprep.subr.bf16.mxu0 0
      %2692 = vmatpush1.bf16.msra.mxu0 0
      %2693 = vmatprep.subr.bf16.mxu0 0
      %2694 = vmatpush1.bf16.msra.mxu0 0
      %2695 = vmatprep.subr.bf16.mxu0 0
      %2696 = vmatpush1.bf16.msra.mxu0 0
      %2697 = vmatprep.subr.bf16.mxu0 0
      %2698 = vmatpush1.bf16.msra.mxu0 0
      %2699 = vmatprep.subr.bf16.mxu0 0
      %2700 = vmatpush1.bf16.msra.mxu0 0
      %2701 = vmatprep.subr.bf16.mxu0 0
      %2702 = vmatpush1.bf16.msra.mxu0 0
      %2703 = vmatprep.mubr.bf16.mxu0 0
      %2704 = vmatmul.mubr.bf16.gmra.mrb[0].mxu0 %v2294
      %v2705 = vpop.f32.mrb[0].mxu0
      %v2706 = vadd.f32 0.0, %v2705
      %v2707 = vpop.f32.mrb[0].mxu0
      %v2708 = vpop.f32.mrb[0].mxu0
      %v2709 = vpop.f32.mrb[0].mxu0
      %2710 = vdwg.mxu0
      %v2711 = vld [vmem:[%s13] sm:$0x1]
      %v2712 = vld [vmem:[%s13 + $0x1] sm:$0x1]
      %v2713 = vld [vmem:[%s13 + $0x2] sm:$0x1]
      %v2714 = vld [vmem:[%s13 + $0x3] sm:$0x1]
      %v2715 = vld [vmem:[%s13 + $0x4] sm:$0x1]
      %v2716 = vld [vmem:[%s13 + $0x5] sm:$0x1]
      %v2717 = vsel %vm725, %v2442, 0.0
      %v2718 = vsel %vm725, %v2530, 0.0
      %v2719 = vadd.f32 %v2717, %v2718
      %v2720 = vsel %vm725, %v2618, 0.0
      %v2721 = vadd.f32 %v2719, %v2720
      %v2722 = vsel %vm725, %v2706, 0.0
      %v2723 = vadd.f32 %v2721, %v2722
      %v2725 = vlaneseq
      %v2726 = vshrl.u32 %v2725, 7
      %v2727 = vsub.s32 0, %v2726
      %v2728 = vrot.slane %v2711, %v2727
      %v2730 = vadd.f32 %v2723, %v2728
      %v2731 = vadd.f32 %v917, %v2730
      %v2732 = vsel %vm725, %v2731, 0.0
      %2733 = vadd.xlane.f32.xlu0 %v2732
      %v2734 = vpop.xlane.xlu0 %2733
      %v2735 = vmul.f32 %v2734, %v893
      %v2736 = vsub.f32 %v2731, %v2735
      %v2737 = vmul.f32 %v2736, %v2736
      %v2738 = vsel %vm725, %v2737, 0.0
      %2739 = vadd.xlane.f32.xlu0 %v2738
      %v2740 = vpop.xlane.xlu0 %2739
      %v2741 = vmul.f32 %v2740, %v893
      %v2742 = vadd.f32 %v2741, 1e-05
      %v2743 = vrsqrt.pop %v2742
      %v2744 = vmul.f32 %v2736, %v2743
      %v2746 = vlaneseq
      %v2747 = vshrl.u32 %v2746, 7
      %v2748 = vsub.s32 0, %v2747
      %v2749 = vrot.slane %v2712, %v2748
      %v2751 = vmul.f32 %v2744, %v2749
      %v2753 = vlaneseq
      %v2754 = vshrl.u32 %v2753, 7
      %v2755 = vsub.s32 0, %v2754
      %v2756 = vrot.slane %v2713, %v2755
      %v2758 = vadd.f32 %v2751, %v2756
      %v2759 = vpack.c.bf16 %v2758, %v2758
      %v2760 = vld [vmem:[%s10] sm:$0xf]
      %v2761 = vld [vmem:[%s10 + $0x4] sm:$0xf]
      %v2762 = vld [vmem:[%s10 + $0x8] sm:$0xf]
      %v2763 = vld [vmem:[%s10 + $0xc] sm:$0xf]
      %v2764 = vld [vmem:[%s10 + $0x10] sm:$0xf]
      %v2765 = vld [vmem:[%s10 + $0x14] sm:$0xf]
      %v2766 = vld [vmem:[%s10 + $0x18] sm:$0xf]
      %v2767 = vld [vmem:[%s10 + $0x1c] sm:$0xf]
      %v2768 = vld [vmem:[%s11] sm:$0x1]
      %v2770 = vlaneseq
      %v2771 = vshrl.u32 %v2770, 7
      %v2772 = vsub.s32 0, %v2771
      %v2773 = vrot.slane %v2768, %v2772
      %v2783 = vunpack.c.l.b16 %v2760
      %v2784 = vunpack.c.l.b16 %v2761
      %v2785 = vunpack.c.l.b16 %v2762
      %v2786 = vunpack.c.l.b16 %v2763
      %v2787 = vunpack.c.l.b16 %v2764
      %v2788 = vunpack.c.l.b16 %v2765
      %v2789 = vunpack.c.l.b16 %v2766
      %v2790 = vunpack.c.l.b16 %v2767
      %v2791 = vpack.c.b16 %v2784, %v2783
      %v2792 = vpack.c.b16 %v2786, %v2785
      %v2793 = vpack.c.b16 %v2788, %v2787
      %v2794 = vpack.c.b16 %v2790, %v2789
      %v2800 = vsel %vm725, %v2759, 0
      %2802 = vmatprep.subr.bf16.mxu0 0
      %2803 = vmatpush1.bf16.msra.mxu0 %v2791
      %2804 = vmatprep.subr.bf16.mxu0 0
      %2805 = vmatpush1.bf16.msra.mxu0 %v2792
      %2806 = vmatprep.subr.bf16.mxu0 0
      %2807 = vmatpush1.bf16.msra.mxu0 %v2793
      %2808 = vmatprep.subr.bf16.mxu0 0
      %2809 = vmatpush1.bf16.msra.mxu0 %v2794
      %2810 = vmatprep.subr.bf16.mxu0 0
      %2811 = vmatpush1.bf16.msra.mxu0 0
      %2812 = vmatprep.subr.bf16.mxu0 0
      %2813 = vmatpush1.bf16.msra.mxu0 0
      %2814 = vmatprep.subr.bf16.mxu0 0
      %2815 = vmatpush1.bf16.msra.mxu0 0
      %2816 = vmatprep.subr.bf16.mxu0 0
      %2817 = vmatpush1.bf16.msra.mxu0 0
      %2818 = vmatprep.subr.bf16.mxu0 0
      %2819 = vmatpush1.bf16.msra.mxu0 0
      %2820 = vmatprep.subr.bf16.mxu0 0
      %2821 = vmatpush1.bf16.msra.mxu0 0
      %2822 = vmatprep.subr.bf16.mxu0 0
      %2823 = vmatpush1.bf16.msra.mxu0 0
      %2824 = vmatprep.subr.bf16.mxu0 0
      %2825 = vmatpush1.bf16.msra.mxu0 0
      %2826 = vmatprep.subr.bf16.mxu0 0
      %2827 = vmatpush1.bf16.msra.mxu0 0
      %2828 = vmatprep.subr.bf16.mxu0 0
      %2829 = vmatpush1.bf16.msra.mxu0 0
      %2830 = vmatprep.subr.bf16.mxu0 0
      %2831 = vmatpush1.bf16.msra.mxu0 0
      %2832 = vmatprep.subr.bf16.mxu0 0
      %2833 = vmatpush1.bf16.msra.mxu0 0
      %2834 = vmatprep.mubr.bf16.mxu0 0
      %2835 = vmatmul.mubr.bf16.gmra.mrb[0].mxu0 %v2800
      %v2836 = vpop.f32.mrb[0].mxu0
      %v2837 = vadd.f32 %v2773, %v2836
      %v2838 = vpop.f32.mrb[0].mxu0
      %v2839 = vpop.f32.mrb[0].mxu0
      %v2840 = vpop.f32.mrb[0].mxu0
      %2841 = vdwg.mxu0
      %v2842 = vmul.f32 %v2837, %v2837
      %v2843 = vmul.f32 %v2837, %v2842
      %v2844 = vmul.f32 %v2843, 0.044715
      %v2845 = vadd.f32 %v2837, %v2844
      %v2846 = vmul.f32 %v2845, 0.7978846
      %v2847 = vtanh.pop %v2846
      %v2848 = vadd.f32 %v2847, 1.0
      %v2849 = vmul.f32 %v2848, 0.5
      %v2850 = vmul.f32 %v2837, %v2849
      %v2851 = vpack.c.bf16 %v2850, %v2850
      %v2852 = vld [vmem:[%s12] sm:$0xf]
      %v2853 = vld [vmem:[%s12 + $0x4] sm:$0xf]
      %v2854 = vld [vmem:[%s12 + $0x8] sm:$0xf]
      %v2855 = vld [vmem:[%s12 + $0xc] sm:$0xf]
      %v2856 = vld [vmem:[%s12 + $0x10] sm:$0xf]
      %v2857 = vld [vmem:[%s12 + $0x14] sm:$0xf]
      %v2858 = vld [vmem:[%s12 + $0x18] sm:$0xf]
      %v2859 = vld [vmem:[%s12 + $0x1c] sm:$0xf]
      %v2860 = vld [vmem:[%s12 + $0x20] sm:$0xf]
      %v2861 = vld [vmem:[%s12 + $0x24] sm:$0xf]
      %v2862 = vld [vmem:[%s12 + $0x28] sm:$0xf]
      %v2863 = vld [vmem:[%s12 + $0x2c] sm:$0xf]
      %v2864 = vld [vmem:[%s12 + $0x30] sm:$0xf]
      %v2865 = vld [vmem:[%s12 + $0x34] sm:$0xf]
      %v2866 = vld [vmem:[%s12 + $0x38] sm:$0xf]
      %v2867 = vld [vmem:[%s12 + $0x3c] sm:$0xf]
      %v2869 = vlaneseq
      %v2870 = vshrl.u32 %v2869, 7
      %v2871 = vsub.s32 0, %v2870
      %v2872 = vrot.slane %v2714, %v2871
      %v2890 = vunpack.c.l.b16 %v2852
      %v2891 = vunpack.c.l.b16 %v2853
      %v2892 = vunpack.c.l.b16 %v2854
      %v2893 = vunpack.c.l.b16 %v2855
      %v2894 = vunpack.c.l.b16 %v2856
      %v2895 = vunpack.c.l.b16 %v2857
      %v2896 = vunpack.c.l.b16 %v2858
      %v2897 = vunpack.c.l.b16 %v2859
      %v2898 = vunpack.c.l.b16 %v2860
      %v2899 = vunpack.c.l.b16 %v2861
      %v2900 = vunpack.c.l.b16 %v2862
      %v2901 = vunpack.c.l.b16 %v2863
      %v2902 = vunpack.c.l.b16 %v2864
      %v2903 = vunpack.c.l.b16 %v2865
      %v2904 = vunpack.c.l.b16 %v2866
      %v2905 = vunpack.c.l.b16 %v2867
      %v2906 = vpack.c.b16 %v2891, %v2890
      %v2907 = vpack.c.b16 %v2893, %v2892
      %v2908 = vpack.c.b16 %v2895, %v2894
      %v2909 = vpack.c.b16 %v2897, %v2896
      %v2910 = vpack.c.b16 %v2899, %v2898
      %v2911 = vpack.c.b16 %v2901, %v2900
      %v2912 = vpack.c.b16 %v2903, %v2902
      %v2913 = vpack.c.b16 %v2905, %v2904
      %2922 = vmatprep.subr.bf16.mxu0 0
      %2923 = vmatpush1.bf16.msra.mxu0 %v2906
      %2924 = vmatprep.subr.bf16.mxu0 0
      %2925 = vmatpush1.bf16.msra.mxu0 %v2907
      %2926 = vmatprep.subr.bf16.mxu0 0
      %2927 = vmatpush1.bf16.msra.mxu0 %v2908
      %2928 = vmatprep.subr.bf16.mxu0 0
      %2929 = vmatpush1.bf16.msra.mxu0 %v2909
      %2930 = vmatprep.subr.bf16.mxu0 0
      %2931 = vmatpush1.bf16.msra.mxu0 %v2910
      %2932 = vmatprep.subr.bf16.mxu0 0
      %2933 = vmatpush1.bf16.msra.mxu0 %v2911
      %2934 = vmatprep.subr.bf16.mxu0 0
      %2935 = vmatpush1.bf16.msra.mxu0 %v2912
      %2936 = vmatprep.subr.bf16.mxu0 0
      %2937 = vmatpush1.bf16.msra.mxu0 %v2913
      %2938 = vmatprep.subr.bf16.mxu0 0
      %2939 = vmatpush1.bf16.msra.mxu0 0
      %2940 = vmatprep.subr.bf16.mxu0 0
      %2941 = vmatpush1.bf16.msra.mxu0 0
      %2942 = vmatprep.subr.bf16.mxu0 0
      %2943 = vmatpush1.bf16.msra.mxu0 0
      %2944 = vmatprep.subr.bf16.mxu0 0
      %2945 = vmatpush1.bf16.msra.mxu0 0
      %2946 = vmatprep.subr.bf16.mxu0 0
      %2947 = vmatpush1.bf16.msra.mxu0 0
      %2948 = vmatprep.subr.bf16.mxu0 0
      %2949 = vmatpush1.bf16.msra.mxu0 0
      %2950 = vmatprep.subr.bf16.mxu0 0
      %2951 = vmatpush1.bf16.msra.mxu0 0
      %2952 = vmatprep.subr.bf16.mxu0 0
      %2953 = vmatpush1.bf16.msra.mxu0 0
      %2954 = vmatprep.mubr.bf16.mxu0 0
      %2955 = vmatmul.mubr.bf16.gmra.mrb[0].mxu0 %v2851
      %v2956 = vpop.f32.mrb[0].mxu0
      %v2957 = vadd.f32 %v2872, %v2956
      %v2958 = vpop.f32.mrb[0].mxu0
      %v2959 = vpop.f32.mrb[0].mxu0
      %v2960 = vpop.f32.mrb[0].mxu0
      %2961 = vdwg.mxu0
      %v2962 = vadd.f32 %v2758, %v2957
      %v2963 = vsel %vm725, %v2962, 0.0
      %2964 = vadd.xlane.f32.xlu0 %v2963
      %v2965 = vpop.xlane.xlu0 %2964
      %v2966 = vmul.f32 %v2965, %v893
      %v2967 = vsub.f32 %v2962, %v2966
      %v2968 = vmul.f32 %v2967, %v2967
      %v2969 = vsel %vm725, %v2968, 0.0
      %2970 = vadd.xlane.f32.xlu0 %v2969
      %v2971 = vpop.xlane.xlu0 %2970
      %v2972 = vmul.f32 %v2971, %v893
      %v2973 = vadd.f32 %v2972, 1e-05
      %v2974 = vrsqrt.pop %v2973
      %v2975 = vmul.f32 %v2967, %v2974
      %v2977 = vlaneseq
      %v2978 = vshrl.u32 %v2977, 7
      %v2979 = vsub.s32 0, %v2978
      %v2980 = vrot.slane %v2715, %v2979
      %v2982 = vmul.f32 %v2975, %v2980
      %v2984 = vlaneseq
      %v2985 = vshrl.u32 %v2984, 7
      %v2986 = vsub.s32 0, %v2985
      %v2987 = vrot.slane %v2716, %v2986
      %v2989 = vadd.f32 %v2982, %v2987
      %v2990 = vpack.c.bf16 %v2989, %v2989
      %s2991 = scalar_lea.vmem %s7, 384
      %v2992 = vld [vmem:[%s2991] sm:$0xf]
      %v2993 = vld [vmem:[%s2991 + $0x4] sm:$0xf]
      %v2994 = vld [vmem:[%s2991 + $0x8] sm:$0xf]
      %v2995 = vld [vmem:[%s2991 + $0xc] sm:$0xf]
      %v2996 = vld [vmem:[%s2991 + $0x10] sm:$0xf]
      %v2997 = vld [vmem:[%s2991 + $0x14] sm:$0xf]
      %v2998 = vld [vmem:[%s2991 + $0x18] sm:$0xf]
      %v2999 = vld [vmem:[%s2991 + $0x1c] sm:$0xf]
      %v3000 = vld [vmem:[%s2991 + $0x20] sm:$0xf]
      %v3001 = vld [vmem:[%s2991 + $0x24] sm:$0xf]
      %v3002 = vld [vmem:[%s2991 + $0x28] sm:$0xf]
      %v3003 = vld [vmem:[%s2991 + $0x2c] sm:$0xf]
      %v3004 = vld [vmem:[%s2991 + $0x30] sm:$0xf]
      %v3005 = vld [vmem:[%s2991 + $0x34] sm:$0xf]
      %v3006 = vld [vmem:[%s2991 + $0x38] sm:$0xf]
      %v3007 = vld [vmem:[%s2991 + $0x3c] sm:$0xf]
      %v3008 = vld [vmem:[%s2991 + $0x40] sm:$0xf]
      %v3009 = vld [vmem:[%s2991 + $0x44] sm:$0xf]
      %v3010 = vld [vmem:[%s2991 + $0x48] sm:$0xf]
      %v3011 = vld [vmem:[%s2991 + $0x4c] sm:$0xf]
      %v3012 = vld [vmem:[%s2991 + $0x50] sm:$0xf]
      %v3013 = vld [vmem:[%s2991 + $0x54] sm:$0xf]
      %v3014 = vld [vmem:[%s2991 + $0x58] sm:$0xf]
      %v3015 = vld [vmem:[%s2991 + $0x5c] sm:$0xf]
      %v3016 = vld [vmem:[%s2991 + $0x60] sm:$0xf]
      %v3017 = vld [vmem:[%s2991 + $0x64] sm:$0xf]
      %v3018 = vld [vmem:[%s2991 + $0x68] sm:$0xf]
      %v3019 = vld [vmem:[%s2991 + $0x6c] sm:$0xf]
      %v3020 = vld [vmem:[%s2991 + $0x70] sm:$0xf]
      %v3021 = vld [vmem:[%s2991 + $0x74] sm:$0xf]
      %v3022 = vld [vmem:[%s2991 + $0x78] sm:$0xf]
      %v3023 = vld [vmem:[%s2991 + $0x7c] sm:$0xf]
      %v3024 = vld [vmem:[%s2991 + $0x80] sm:$0xf]
      %v3025 = vld [vmem:[%s2991 + $0x84] sm:$0xf]
      %v3026 = vld [vmem:[%s2991 + $0x88] sm:$0xf]
      %v3027 = vld [vmem:[%s2991 + $0x8c] sm:$0xf]
      %v3028 = vld [vmem:[%s2991 + $0x90] sm:$0xf]
      %v3029 = vld [vmem:[%s2991 + $0x94] sm:$0xf]
      %v3030 = vld [vmem:[%s2991 + $0x98] sm:$0xf]
      %v3031 = vld [vmem:[%s2991 + $0x9c] sm:$0xf]
      %v3032 = vld [vmem:[%s2991 + $0xa0] sm:$0xf]
      %v3033 = vld [vmem:[%s2991 + $0xa4] sm:$0xf]
      %v3034 = vld [vmem:[%s2991 + $0xa8] sm:$0xf]
      %v3035 = vld [vmem:[%s2991 + $0xac] sm:$0xf]
      %v3036 = vld [vmem:[%s2991 + $0xb0] sm:$0xf]
      %v3037 = vld [vmem:[%s2991 + $0xb4] sm:$0xf]
      %v3038 = vld [vmem:[%s2991 + $0xb8] sm:$0xf]
      %v3039 = vld [vmem:[%s2991 + $0xbc] sm:$0xf]
      %v3040 = vld [vmem:[%s2991 + $0xc0] sm:$0xf]
      %v3041 = vld [vmem:[%s2991 + $0xc4] sm:$0xf]
      %v3042 = vld [vmem:[%s2991 + $0xc8] sm:$0xf]
      %v3043 = vld [vmem:[%s2991 + $0xcc] sm:$0xf]
      %v3044 = vld [vmem:[%s2991 + $0xd0] sm:$0xf]
      %v3045 = vld [vmem:[%s2991 + $0xd4] sm:$0xf]
      %v3046 = vld [vmem:[%s2991 + $0xd8] sm:$0xf]
      %v3047 = vld [vmem:[%s2991 + $0xdc] sm:$0xf]
      %v3048 = vld [vmem:[%s2991 + $0xe0] sm:$0xf]
      %v3049 = vld [vmem:[%s2991 + $0xe4] sm:$0xf]
      %v3050 = vld [vmem:[%s2991 + $0xe8] sm:$0xf]
      %v3051 = vld [vmem:[%s2991 + $0xec] sm:$0xf]
      %v3052 = vld [vmem:[%s2991 + $0xf0] sm:$0xf]
      %v3053 = vld [vmem:[%s2991 + $0xf4] sm:$0xf]
      %v3054 = vld [vmem:[%s2991 + $0xf8] sm:$0xf]
      %v3055 = vld [vmem:[%s2991 + $0xfc] sm:$0xf]
      %v3056 = vld [vmem:[%s2991 + $0x100] sm:$0xf]
      %v3057 = vld [vmem:[%s2991 + $0x104] sm:$0xf]
      %v3058 = vld [vmem:[%s2991 + $0x108] sm:$0xf]
      %v3059 = vld [vmem:[%s2991 + $0x10c] sm:$0xf]
      %v3060 = vld [vmem:[%s2991 + $0x110] sm:$0xf]
      %v3061 = vld [vmem:[%s2991 + $0x114] sm:$0xf]
      %v3062 = vld [vmem:[%s2991 + $0x118] sm:$0xf]
      %v3063 = vld [vmem:[%s2991 + $0x11c] sm:$0xf]
      %v3064 = vld [vmem:[%s2991 + $0x120] sm:$0xf]
      %v3065 = vld [vmem:[%s2991 + $0x124] sm:$0xf]
      %v3066 = vld [vmem:[%s2991 + $0x128] sm:$0xf]
      %v3067 = vld [vmem:[%s2991 + $0x12c] sm:$0xf]
      %v3068 = vld [vmem:[%s2991 + $0x130] sm:$0xf]
      %v3069 = vld [vmem:[%s2991 + $0x134] sm:$0xf]
      %v3070 = vld [vmem:[%s2991 + $0x138] sm:$0xf]
      %v3071 = vld [vmem:[%s2991 + $0x13c] sm:$0xf]
      %v3072 = vld [vmem:[%s2991 + $0x140] sm:$0xf]
      %v3073 = vld [vmem:[%s2991 + $0x144] sm:$0xf]
      %v3074 = vld [vmem:[%s2991 + $0x148] sm:$0xf]
      %v3075 = vld [vmem:[%s2991 + $0x14c] sm:$0xf]
      %v3076 = vld [vmem:[%s2991 + $0x150] sm:$0xf]
      %v3077 = vld [vmem:[%s2991 + $0x154] sm:$0xf]
      %v3078 = vld [vmem:[%s2991 + $0x158] sm:$0xf]
      %v3079 = vld [vmem:[%s2991 + $0x15c] sm:$0xf]
      %v3080 = vld [vmem:[%s2991 + $0x160] sm:$0xf]
      %v3081 = vld [vmem:[%s2991 + $0x164] sm:$0xf]
      %v3082 = vld [vmem:[%s2991 + $0x168] sm:$0xf]
      %v3083 = vld [vmem:[%s2991 + $0x16c] sm:$0xf]
      %v3084 = vld [vmem:[%s2991 + $0x170] sm:$0xf]
      %v3085 = vld [vmem:[%s2991 + $0x174] sm:$0xf]
      %v3086 = vld [vmem:[%s2991 + $0x178] sm:$0xf]
      %v3087 = vld [vmem:[%s2991 + $0x17c] sm:$0xf]
      %s3088 = scalar_lea.vmem %s8, 12
      %v3089 = vld [vmem:[%s3088] sm:$0x1]
      %v3090 = vld [vmem:[%s3088 + $0x1] sm:$0x1]
      %v3091 = vld [vmem:[%s3088 + $0x2] sm:$0x1]
      %v3092 = vld [vmem:[%s3088 + $0x3] sm:$0x1]
      %v3093 = vld [vmem:[%s3088 + $0x4] sm:$0x1]
      %v3094 = vld [vmem:[%s3088 + $0x5] sm:$0x1]
      %v3095 = vld [vmem:[%s3088 + $0x6] sm:$0x1]
      %v3096 = vld [vmem:[%s3088 + $0x7] sm:$0x1]
      %v3097 = vld [vmem:[%s3088 + $0x8] sm:$0x1]
      %v3098 = vld [vmem:[%s3088 + $0x9] sm:$0x1]
      %v3099 = vld [vmem:[%s3088 + $0xa] sm:$0x1]
      %v3100 = vld [vmem:[%s3088 + $0xb] sm:$0x1]
      %v3113 = vlaneseq
      %v3114 = vshrl.u32 %v3113, 7
      %v3115 = vsub.s32 0, %v3114
      %v3116 = vrot.slane %v3089, %v3115
      %v3117 = vlaneseq
      %v3118 = vshrl.u32 %v3117, 7
      %v3119 = vsub.s32 0, %v3118
      %v3120 = vrot.slane %v3090, %v3119
      %v3121 = vlaneseq
      %v3122 = vshrl.u32 %v3121, 7
      %v3123 = vsub.s32 0, %v3122
      %v3124 = vrot.slane %v3091, %v3123
      %v3125 = vlaneseq
      %v3126 = vshrl.u32 %v3125, 7
      %v3127 = vsub.s32 0, %v3126
      %v3128 = vrot.slane %v3092, %v3127
      %v3129 = vlaneseq
      %v3130 = vshrl.u32 %v3129, 7
      %v3131 = vsub.s32 0, %v3130
      %v3132 = vrot.slane %v3093, %v3131
      %v3133 = vlaneseq
      %v3134 = vshrl.u32 %v3133, 7
      %v3135 = vsub.s32 0, %v3134
      %v3136 = vrot.slane %v3094, %v3135
      %v3137 = vlaneseq
      %v3138 = vshrl.u32 %v3137, 7
      %v3139 = vsub.s32 0, %v3138
      %v3140 = vrot.slane %v3095, %v3139
      %v3141 = vlaneseq
      %v3142 = vshrl.u32 %v3141, 7
      %v3143 = vsub.s32 0, %v3142
      %v3144 = vrot.slane %v3096, %v3143
      %v3145 = vlaneseq
      %v3146 = vshrl.u32 %v3145, 7
      %v3147 = vsub.s32 0, %v3146
      %v3148 = vrot.slane %v3097, %v3147
      %v3149 = vlaneseq
      %v3150 = vshrl.u32 %v3149, 7
      %v3151 = vsub.s32 0, %v3150
      %v3152 = vrot.slane %v3098, %v3151
      %v3153 = vlaneseq
      %v3154 = vshrl.u32 %v3153, 7
      %v3155 = vsub.s32 0, %v3154
      %v3156 = vrot.slane %v3099, %v3155
      %v3157 = vlaneseq
      %v3158 = vshrl.u32 %v3157, 7
      %v3159 = vsub.s32 0, %v3158
      %v3160 = vrot.slane %v3100, %v3159
      %v3181 = vunpack.c.l.b16 %v2992
      %v3182 = vunpack.c.l.b16 %v2993
      %v3183 = vunpack.c.l.b16 %v2994
      %v3184 = vunpack.c.l.b16 %v2995
      %v3185 = vunpack.c.l.b16 %v2996
      %v3186 = vunpack.c.l.b16 %v2997
      %v3187 = vunpack.c.l.b16 %v2998
      %v3188 = vunpack.c.l.b16 %v2999
      %v3189 = vpack.c.b16 %v3182, %v3181
      %v3190 = vpack.c.b16 %v3184, %v3183
      %v3191 = vpack.c.b16 %v3186, %v3185
      %v3192 = vpack.c.b16 %v3188, %v3187
      %v3198 = vsel %vm725, %v2990, 0
      %3200 = vmatprep.subr.bf16.mxu0 0
      %3201 = vmatpush1.bf16.msra.mxu0 %v3189
      %3202 = vmatprep.subr.bf16.mxu0 0
      %3203 = vmatpush1.bf16.msra.mxu0 %v3190
      %3204 = vmatprep.subr.bf16.mxu0 0
      %3205 = vmatpush1.bf16.msra.mxu0 %v3191
      %3206 = vmatprep.subr.bf16.mxu0 0
      %3207 = vmatpush1.bf16.msra.mxu0 %v3192
      %3208 = vmatprep.subr.bf16.mxu0 0
      %3209 = vmatpush1.bf16.msra.mxu0 0
      %3210 = vmatprep.subr.bf16.mxu0 0
      %3211 = vmatpush1.bf16.msra.mxu0 0
      %3212 = vmatprep.subr.bf16.mxu0 0
      %3213 = vmatpush1.bf16.msra.mxu0 0
      %3214 = vmatprep.subr.bf16.mxu0 0
      %3215 = vmatpush1.bf16.msra.mxu0 0
      %3216 = vmatprep.subr.bf16.mxu0 0
      %3217 = vmatpush1.bf16.msra.mxu0 0
      %3218 = vmatprep.subr.bf16.mxu0 0
      %3219 = vmatpush1.bf16.msra.mxu0 0
      %3220 = vmatprep.subr.bf16.mxu0 0
      %3221 = vmatpush1.bf16.msra.mxu0 0
      %3222 = vmatprep.subr.bf16.mxu0 0
      %3223 = vmatpush1.bf16.msra.mxu0 0
      %3224 = vmatprep.subr.bf16.mxu0 0
      %3225 = vmatpush1.bf16.msra.mxu0 0
      %3226 = vmatprep.subr.bf16.mxu0 0
      %3227 = vmatpush1.bf16.msra.mxu0 0
      %3228 = vmatprep.subr.bf16.mxu0 0
      %3229 = vmatpush1.bf16.msra.mxu0 0
      %3230 = vmatprep.subr.bf16.mxu0 0
      %3231 = vmatpush1.bf16.msra.mxu0 0
      %3232 = vmatprep.mubr.bf16.mxu0 0
      %3233 = vmatmul.mubr.bf16.gmra.mrb[0].mxu0 %v3198
      %v3234 = vpop.f32.mrb[0].mxu0
      %v3235 = vadd.f32 %v3116, %v3234
      %v3236 = vpop.f32.mrb[0].mxu0
      %v3237 = vpop.f32.mrb[0].mxu0
      %v3238 = vpop.f32.mrb[0].mxu0
      %3239 = vdwg.mxu0
      %v3248 = vunpack.c.l.b16 %v3000
      %v3249 = vunpack.c.l.b16 %v3001
      %v3250 = vunpack.c.l.b16 %v3002
      %v3251 = vunpack.c.l.b16 %v3003
      %v3252 = vunpack.c.l.b16 %v3004
      %v3253 = vunpack.c.l.b16 %v3005
      %v3254 = vunpack.c.l.b16 %v3006
      %v3255 = vunpack.c.l.b16 %v3007
      %v3256 = vpack.c.b16 %v3249, %v3248
      %v3257 = vpack.c.b16 %v3251, %v3250
      %v3258 = vpack.c.b16 %v3253, %v3252
      %v3259 = vpack.c.b16 %v3255, %v3254
      %3264 = vmatprep.subr.bf16.mxu0 0
      %3265 = vmatpush1.bf16.msra.mxu0 %v3256
      %3266 = vmatprep.subr.bf16.mxu0 0
      %3267 = vmatpush1.bf16.msra.mxu0 %v3257
      %3268 = vmatprep.subr.bf16.mxu0 0
      %3269 = vmatpush1.bf16.msra.mxu0 %v3258
      %3270 = vmatprep.subr.bf16.mxu0 0
      %3271 = vmatpush1.bf16.msra.mxu0 %v3259
      %3272 = vmatprep.subr.bf16.mxu0 0
      %3273 = vmatpush1.bf16.msra.mxu0 0
      %3274 = vmatprep.subr.bf16.mxu0 0
      %3275 = vmatpush1.bf16.msra.mxu0 0
      %3276 = vmatprep.subr.bf16.mxu0 0
      %3277 = vmatpush1.bf16.msra.mxu0 0
      %3278 = vmatprep.subr.bf16.mxu0 0
      %3279 = vmatpush1.bf16.msra.mxu0 0
      %3280 = vmatprep.subr.bf16.mxu0 0
      %3281 = vmatpush1.bf16.msra.mxu0 0
      %3282 = vmatprep.subr.bf16.mxu0 0
      %3283 = vmatpush1.bf16.msra.mxu0 0
      %3284 = vmatprep.subr.bf16.mxu0 0
      %3285 = vmatpush1.bf16.msra.mxu0 0
      %3286 = vmatprep.subr.bf16.mxu0 0
      %3287 = vmatpush1.bf16.msra.mxu0 0
      %3288 = vmatprep.subr.bf16.mxu0 0
      %3289 = vmatpush1.bf16.msra.mxu0 0
      %3290 = vmatprep.subr.bf16.mxu0 0
      %3291 = vmatpush1.bf16.msra.mxu0 0
      %3292 = vmatprep.subr.bf16.mxu0 0
      %3293 = vmatpush1.bf16.msra.mxu0 0
      %3294 = vmatprep.subr.bf16.mxu0 0
      %3295 = vmatpush1.bf16.msra.mxu0 0
      %3296 = vmatprep.mubr.bf16.mxu0 0
      %3297 = vmatmul.mubr.bf16.gmra.mrb[0].mxu0 %v3198
      %v3298 = vpop.f32.mrb[0].mxu0
      %v3299 = vadd.f32 %v3120, %v3298
      %v3300 = vpop.f32.mrb[0].mxu0
      %v3301 = vpop.f32.mrb[0].mxu0
      %v3302 = vpop.f32.mrb[0].mxu0
      %3303 = vdwg.mxu0
      %v3312 = vunpack.c.l.b16 %v3008
      %v3313 = vunpack.c.l.b16 %v3009
      %v3314 = vunpack.c.l.b16 %v3010
      %v3315 = vunpack.c.l.b16 %v3011
      %v3316 = vunpack.c.l.b16 %v3012
      %v3317 = vunpack.c.l.b16 %v3013
      %v3318 = vunpack.c.l.b16 %v3014
      %v3319 = vunpack.c.l.b16 %v3015
      %v3320 = vpack.c.b16 %v3313, %v3312
      %v3321 = vpack.c.b16 %v3315, %v3314
      %v3322 = vpack.c.b16 %v3317, %v3316
      %v3323 = vpack.c.b16 %v3319, %v3318
      %3328 = vmatprep.subr.bf16.mxu0 0
      %3329 = vmatpush1.bf16.msra.mxu0 %v3320
      %3330 = vmatprep.subr.bf16.mxu0 0
      %3331 = vmatpush1.bf16.msra.mxu0 %v3321
      %3332 = vmatprep.subr.bf16.mxu0 0
      %3333 = vmatpush1.bf16.msra.mxu0 %v3322
      %3334 = vmatprep.subr.bf16.mxu0 0
      %3335 = vmatpush1.bf16.msra.mxu0 %v3323
      %3336 = vmatprep.subr.bf16.mxu0 0
      %3337 = vmatpush1.bf16.msra.mxu0 0
      %3338 = vmatprep.subr.bf16.mxu0 0
      %3339 = vmatpush1.bf16.msra.mxu0 0
      %3340 = vmatprep.subr.bf16.mxu0 0
      %3341 = vmatpush1.bf16.msra.mxu0 0
      %3342 = vmatprep.subr.bf16.mxu0 0
      %3343 = vmatpush1.bf16.msra.mxu0 0
      %3344 = vmatprep.subr.bf16.mxu0 0
      %3345 = vmatpush1.bf16.msra.mxu0 0
      %3346 = vmatprep.subr.bf16.mxu0 0
      %3347 = vmatpush1.bf16.msra.mxu0 0
      %3348 = vmatprep.subr.bf16.mxu0 0
      %3349 = vmatpush1.bf16.msra.mxu0 0
      %3350 = vmatprep.subr.bf16.mxu0 0
      %3351 = vmatpush1.bf16.msra.mxu0 0
      %3352 = vmatprep.subr.bf16.mxu0 0
      %3353 = vmatpush1.bf16.msra.mxu0 0
      %3354 = vmatprep.subr.bf16.mxu0 0
      %3355 = vmatpush1.bf16.msra.mxu0 0
      %3356 = vmatprep.subr.bf16.mxu0 0
      %3357 = vmatpush1.bf16.msra.mxu0 0
      %3358 = vmatprep.subr.bf16.mxu0 0
      %3359 = vmatpush1.bf16.msra.mxu0 0
      %3360 = vmatprep.mubr.bf16.mxu0 0
      %3361 = vmatmul.mubr.bf16.gmra.mrb[0].mxu0 %v3198
      %v3362 = vpop.f32.mrb[0].mxu0
      %v3363 = vadd.f32 %v3124, %v3362
      %v3364 = vpop.f32.mrb[0].mxu0
      %v3365 = vpop.f32.mrb[0].mxu0
      %v3366 = vpop.f32.mrb[0].mxu0
      %3367 = vdwg.mxu0
      %v3376 = vunpack.c.l.b16 %v3016
      %v3377 = vunpack.c.l.b16 %v3017
      %v3378 = vunpack.c.l.b16 %v3018
      %v3379 = vunpack.c.l.b16 %v3019
      %v3380 = vunpack.c.l.b16 %v3020
      %v3381 = vunpack.c.l.b16 %v3021
      %v3382 = vunpack.c.l.b16 %v3022
      %v3383 = vunpack.c.l.b16 %v3023
      %v3384 = vpack.c.b16 %v3377, %v3376
      %v3385 = vpack.c.b16 %v3379, %v3378
      %v3386 = vpack.c.b16 %v3381, %v3380
      %v3387 = vpack.c.b16 %v3383, %v3382
      %3392 = vmatprep.subr.bf16.mxu0 0
      %3393 = vmatpush1.bf16.msra.mxu0 %v3384
      %3394 = vmatprep.subr.bf16.mxu0 0
      %3395 = vmatpush1.bf16.msra.mxu0 %v3385
      %3396 = vmatprep.subr.bf16.mxu0 0
      %3397 = vmatpush1.bf16.msra.mxu0 %v3386
      %3398 = vmatprep.subr.bf16.mxu0 0
      %3399 = vmatpush1.bf16.msra.mxu0 %v3387
      %3400 = vmatprep.subr.bf16.mxu0 0
      %3401 = vmatpush1.bf16.msra.mxu0 0
      %3402 = vmatprep.subr.bf16.mxu0 0
      %3403 = vmatpush1.bf16.msra.mxu0 0
      %3404 = vmatprep.subr.bf16.mxu0 0
      %3405 = vmatpush1.bf16.msra.mxu0 0
      %3406 = vmatprep.subr.bf16.mxu0 0
      %3407 = vmatpush1.bf16.msra.mxu0 0
      %3408 = vmatprep.subr.bf16.mxu0 0
      %3409 = vmatpush1.bf16.msra.mxu0 0
      %3410 = vmatprep.subr.bf16.mxu0 0
      %3411 = vmatpush1.bf16.msra.mxu0 0
      %3412 = vmatprep.subr.bf16.mxu0 0
      %3413 = vmatpush1.bf16.msra.mxu0 0
      %3414 = vmatprep.subr.bf16.mxu0 0
      %3415 = vmatpush1.bf16.msra.mxu0 0
      %3416 = vmatprep.subr.bf16.mxu0 0
      %3417 = vmatpush1.bf16.msra.mxu0 0
      %3418 = vmatprep.subr.bf16.mxu0 0
      %3419 = vmatpush1.bf16.msra.mxu0 0
      %3420 = vmatprep.subr.bf16.mxu0 0
      %3421 = vmatpush1.bf16.msra.mxu0 0
      %3422 = vmatprep.subr.bf16.mxu0 0
      %3423 = vmatpush1.bf16.msra.mxu0 0
      %3424 = vmatprep.mubr.bf16.mxu0 0
      %3425 = vmatmul.mubr.bf16.gmra.mrb[0].mxu0 %v3198
      %v3426 = vpop.f32.mrb[0].mxu0
      %v3427 = vadd.f32 %v3128, %v3426
      %v3428 = vpop.f32.mrb[0].mxu0
      %v3429 = vpop.f32.mrb[0].mxu0
      %v3430 = vpop.f32.mrb[0].mxu0
      %3431 = vdwg.mxu0
      %v3440 = vunpack.c.l.b16 %v3024
      %v3441 = vunpack.c.l.b16 %v3025
      %v3442 = vunpack.c.l.b16 %v3026
      %v3443 = vunpack.c.l.b16 %v3027
      %v3444 = vunpack.c.l.b16 %v3028
      %v3445 = vunpack.c.l.b16 %v3029
      %v3446 = vunpack.c.l.b16 %v3030
      %v3447 = vunpack.c.l.b16 %v3031
      %v3448 = vpack.c.b16 %v3441, %v3440
      %v3449 = vpack.c.b16 %v3443, %v3442
      %v3450 = vpack.c.b16 %v3445, %v3444
      %v3451 = vpack.c.b16 %v3447, %v3446
      %3456 = vmatprep.subr.bf16.mxu0 0
      %3457 = vmatpush1.bf16.msra.mxu0 %v3448
      %3458 = vmatprep.subr.bf16.mxu0 0
      %3459 = vmatpush1.bf16.msra.mxu0 %v3449
      %3460 = vmatprep.subr.bf16.mxu0 0
      %3461 = vmatpush1.bf16.msra.mxu0 %v3450
      %3462 = vmatprep.subr.bf16.mxu0 0
      %3463 = vmatpush1.bf16.msra.mxu0 %v3451
      %3464 = vmatprep.subr.bf16.mxu0 0
      %3465 = vmatpush1.bf16.msra.mxu0 0
      %3466 = vmatprep.subr.bf16.mxu0 0
      %3467 = vmatpush1.bf16.msra.mxu0 0
      %3468 = vmatprep.subr.bf16.mxu0 0
      %3469 = vmatpush1.bf16.msra.mxu0 0
      %3470 = vmatprep.subr.bf16.mxu0 0
      %3471 = vmatpush1.bf16.msra.mxu0 0
      %3472 = vmatprep.subr.bf16.mxu0 0
      %3473 = vmatpush1.bf16.msra.mxu0 0
      %3474 = vmatprep.subr.bf16.mxu0 0
      %3475 = vmatpush1.bf16.msra.mxu0 0
      %3476 = vmatprep.subr.bf16.mxu0 0
      %3477 = vmatpush1.bf16.msra.mxu0 0
      %3478 = vmatprep.subr.bf16.mxu0 0
      %3479 = vmatpush1.bf16.msra.mxu0 0
      %3480 = vmatprep.subr.bf16.mxu0 0
      %3481 = vmatpush1.bf16.msra.mxu0 0
      %3482 = vmatprep.subr.bf16.mxu0 0
      %3483 = vmatpush1.bf16.msra.mxu0 0
      %3484 = vmatprep.subr.bf16.mxu0 0
      %3485 = vmatpush1.bf16.msra.mxu0 0
      %3486 = vmatprep.subr.bf16.mxu0 0
      %3487 = vmatpush1.bf16.msra.mxu0 0
      %3488 = vmatprep.mubr.bf16.mxu0 0
      %3489 = vmatmul.mubr.bf16.gmra.mrb[0].mxu0 %v3198
      %v3490 = vpop.f32.mrb[0].mxu0
      %v3491 = vadd.f32 %v3132, %v3490
      %v3492 = vpop.f32.mrb[0].mxu0
      %v3493 = vpop.f32.mrb[0].mxu0
      %v3494 = vpop.f32.mrb[0].mxu0
      %3495 = vdwg.mxu0
      %v3504 = vunpack.c.l.b16 %v3032
      %v3505 = vunpack.c.l.b16 %v3033
      %v3506 = vunpack.c.l.b16 %v3034
      %v3507 = vunpack.c.l.b16 %v3035
      %v3508 = vunpack.c.l.b16 %v3036
      %v3509 = vunpack.c.l.b16 %v3037
      %v3510 = vunpack.c.l.b16 %v3038
      %v3511 = vunpack.c.l.b16 %v3039
      %v3512 = vpack.c.b16 %v3505, %v3504
      %v3513 = vpack.c.b16 %v3507, %v3506
      %v3514 = vpack.c.b16 %v3509, %v3508
      %v3515 = vpack.c.b16 %v3511, %v3510
      %3520 = vmatprep.subr.bf16.mxu0 0
      %3521 = vmatpush1.bf16.msra.mxu0 %v3512
      %3522 = vmatprep.subr.bf16.mxu0 0
      %3523 = vmatpush1.bf16.msra.mxu0 %v3513
      %3524 = vmatprep.subr.bf16.mxu0 0
      %3525 = vmatpush1.bf16.msra.mxu0 %v3514
      %3526 = vmatprep.subr.bf16.mxu0 0
      %3527 = vmatpush1.bf16.msra.mxu0 %v3515
      %3528 = vmatprep.subr.bf16.mxu0 0
      %3529 = vmatpush1.bf16.msra.mxu0 0
      %3530 = vmatprep.subr.bf16.mxu0 0
      %3531 = vmatpush1.bf16.msra.mxu0 0
      %3532 = vmatprep.subr.bf16.mxu0 0
      %3533 = vmatpush1.bf16.msra.mxu0 0
      %3534 = vmatprep.subr.bf16.mxu0 0
      %3535 = vmatpush1.bf16.msra.mxu0 0
      %3536 = vmatprep.subr.bf16.mxu0 0
      %3537 = vmatpush1.bf16.msra.mxu0 0
      %3538 = vmatprep.subr.bf16.mxu0 0
      %3539 = vmatpush1.bf16.msra.mxu0 0
      %3540 = vmatprep.subr.bf16.mxu0 0
      %3541 = vmatpush1.bf16.msra.mxu0 0
      %3542 = vmatprep.subr.bf16.mxu0 0
      %3543 = vmatpush1.bf16.msra.mxu0 0
      %3544 = vmatprep.subr.bf16.mxu0 0
      %3545 = vmatpush1.bf16.msra.mxu0 0
      %3546 = vmatprep.subr.bf16.mxu0 0
      %3547 = vmatpush1.bf16.msra.mxu0 0
      %3548 = vmatprep.subr.bf16.mxu0 0
      %3549 = vmatpush1.bf16.msra.mxu0 0
      %3550 = vmatprep.subr.bf16.mxu0 0
      %3551 = vmatpush1.bf16.msra.mxu0 0
      %3552 = vmatprep.mubr.bf16.mxu0 0
      %3553 = vmatmul.mubr.bf16.gmra.mrb[0].mxu0 %v3198
      %v3554 = vpop.f32.mrb[0].mxu0
      %v3555 = vadd.f32 %v3136, %v3554
      %v3556 = vpop.f32.mrb[0].mxu0
      %v3557 = vpop.f32.mrb[0].mxu0
      %v3558 = vpop.f32.mrb[0].mxu0
      %3559 = vdwg.mxu0
      %v3568 = vunpack.c.l.b16 %v3040
      %v3569 = vunpack.c.l.b16 %v3041
      %v3570 = vunpack.c.l.b16 %v3042
      %v3571 = vunpack.c.l.b16 %v3043
      %v3572 = vunpack.c.l.b16 %v3044
      %v3573 = vunpack.c.l.b16 %v3045
      %v3574 = vunpack.c.l.b16 %v3046
      %v3575 = vunpack.c.l.b16 %v3047
      %v3576 = vpack.c.b16 %v3569, %v3568
      %v3577 = vpack.c.b16 %v3571, %v3570
      %v3578 = vpack.c.b16 %v3573, %v3572
      %v3579 = vpack.c.b16 %v3575, %v3574
      %3584 = vmatprep.subr.bf16.mxu0 0
      %3585 = vmatpush1.bf16.msra.mxu0 %v3576
      %3586 = vmatprep.subr.bf16.mxu0 0
      %3587 = vmatpush1.bf16.msra.mxu0 %v3577
      %3588 = vmatprep.subr.bf16.mxu0 0
      %3589 = vmatpush1.bf16.msra.mxu0 %v3578
      %3590 = vmatprep.subr.bf16.mxu0 0
      %3591 = vmatpush1.bf16.msra.mxu0 %v3579
      %3592 = vmatprep.subr.bf16.mxu0 0
      %3593 = vmatpush1.bf16.msra.mxu0 0
      %3594 = vmatprep.subr.bf16.mxu0 0
      %3595 = vmatpush1.bf16.msra.mxu0 0
      %3596 = vmatprep.subr.bf16.mxu0 0
      %3597 = vmatpush1.bf16.msra.mxu0 0
      %3598 = vmatprep.subr.bf16.mxu0 0
      %3599 = vmatpush1.bf16.msra.mxu0 0
      %3600 = vmatprep.subr.bf16.mxu0 0
      %3601 = vmatpush1.bf16.msra.mxu0 0
      %3602 = vmatprep.subr.bf16.mxu0 0
      %3603 = vmatpush1.bf16.msra.mxu0 0
      %3604 = vmatprep.subr.bf16.mxu0 0
      %3605 = vmatpush1.bf16.msra.mxu0 0
      %3606 = vmatprep.subr.bf16.mxu0 0
      %3607 = vmatpush1.bf16.msra.mxu0 0
      %3608 = vmatprep.subr.bf16.mxu0 0
      %3609 = vmatpush1.bf16.msra.mxu0 0
      %3610 = vmatprep.subr.bf16.mxu0 0
      %3611 = vmatpush1.bf16.msra.mxu0 0
      %3612 = vmatprep.subr.bf16.mxu0 0
      %3613 = vmatpush1.bf16.msra.mxu0 0
      %3614 = vmatprep.subr.bf16.mxu0 0
      %3615 = vmatpush1.bf16.msra.mxu0 0
      %3616 = vmatprep.mubr.bf16.mxu0 0
      %3617 = vmatmul.mubr.bf16.gmra.mrb[0].mxu0 %v3198
      %v3618 = vpop.f32.mrb[0].mxu0
      %v3619 = vadd.f32 %v3140, %v3618
      %v3620 = vpop.f32.mrb[0].mxu0
      %v3621 = vpop.f32.mrb[0].mxu0
      %v3622 = vpop.f32.mrb[0].mxu0
      %3623 = vdwg.mxu0
      %v3632 = vunpack.c.l.b16 %v3048
      %v3633 = vunpack.c.l.b16 %v3049
      %v3634 = vunpack.c.l.b16 %v3050
      %v3635 = vunpack.c.l.b16 %v3051
      %v3636 = vunpack.c.l.b16 %v3052
      %v3637 = vunpack.c.l.b16 %v3053
      %v3638 = vunpack.c.l.b16 %v3054
      %v3639 = vunpack.c.l.b16 %v3055
      %v3640 = vpack.c.b16 %v3633, %v3632
      %v3641 = vpack.c.b16 %v3635, %v3634
      %v3642 = vpack.c.b16 %v3637, %v3636
      %v3643 = vpack.c.b16 %v3639, %v3638
      %3648 = vmatprep.subr.bf16.mxu0 0
      %3649 = vmatpush1.bf16.msra.mxu0 %v3640
      %3650 = vmatprep.subr.bf16.mxu0 0
      %3651 = vmatpush1.bf16.msra.mxu0 %v3641
      %3652 = vmatprep.subr.bf16.mxu0 0
      %3653 = vmatpush1.bf16.msra.mxu0 %v3642
      %3654 = vmatprep.subr.bf16.mxu0 0
      %3655 = vmatpush1.bf16.msra.mxu0 %v3643
      %3656 = vmatprep.subr.bf16.mxu0 0
      %3657 = vmatpush1.bf16.msra.mxu0 0
      %3658 = vmatprep.subr.bf16.mxu0 0
      %3659 = vmatpush1.bf16.msra.mxu0 0
      %3660 = vmatprep.subr.bf16.mxu0 0
      %3661 = vmatpush1.bf16.msra.mxu0 0
      %3662 = vmatprep.subr.bf16.mxu0 0
      %3663 = vmatpush1.bf16.msra.mxu0 0
      %3664 = vmatprep.subr.bf16.mxu0 0
      %3665 = vmatpush1.bf16.msra.mxu0 0
      %3666 = vmatprep.subr.bf16.mxu0 0
      %3667 = vmatpush1.bf16.msra.mxu0 0
      %3668 = vmatprep.subr.bf16.mxu0 0
      %3669 = vmatpush1.bf16.msra.mxu0 0
      %3670 = vmatprep.subr.bf16.mxu0 0
      %3671 = vmatpush1.bf16.msra.mxu0 0
      %3672 = vmatprep.subr.bf16.mxu0 0
      %3673 = vmatpush1.bf16.msra.mxu0 0
      %3674 = vmatprep.subr.bf16.mxu0 0
      %3675 = vmatpush1.bf16.msra.mxu0 0
      %3676 = vmatprep.subr.bf16.mxu0 0
      %3677 = vmatpush1.bf16.msra.mxu0 0
      %3678 = vmatprep.subr.bf16.mxu0 0
      %3679 = vmatpush1.bf16.msra.mxu0 0
      %3680 = vmatprep.mubr.bf16.mxu0 0
      %3681 = vmatmul.mubr.bf16.gmra.mrb[0].mxu0 %v3198
      %v3682 = vpop.f32.mrb[0].mxu0
      %v3683 = vadd.f32 %v3144, %v3682
      %v3684 = vpop.f32.mrb[0].mxu0
      %v3685 = vpop.f32.mrb[0].mxu0
      %v3686 = vpop.f32.mrb[0].mxu0
      %3687 = vdwg.mxu0
      %v3696 = vunpack.c.l.b16 %v3056
      %v3697 = vunpack.c.l.b16 %v3057
      %v3698 = vunpack.c.l.b16 %v3058
      %v3699 = vunpack.c.l.b16 %v3059
      %v3700 = vunpack.c.l.b16 %v3060
      %v3701 = vunpack.c.l.b16 %v3061
      %v3702 = vunpack.c.l.b16 %v3062
      %v3703 = vunpack.c.l.b16 %v3063
      %v3704 = vpack.c.b16 %v3697, %v3696
      %v3705 = vpack.c.b16 %v3699, %v3698
      %v3706 = vpack.c.b16 %v3701, %v3700
      %v3707 = vpack.c.b16 %v3703, %v3702
      %3712 = vmatprep.subr.bf16.mxu0 0
      %3713 = vmatpush1.bf16.msra.mxu0 %v3704
      %3714 = vmatprep.subr.bf16.mxu0 0
      %3715 = vmatpush1.bf16.msra.mxu0 %v3705
      %3716 = vmatprep.subr.bf16.mxu0 0
      %3717 = vmatpush1.bf16.msra.mxu0 %v3706
      %3718 = vmatprep.subr.bf16.mxu0 0
      %3719 = vmatpush1.bf16.msra.mxu0 %v3707
      %3720 = vmatprep.subr.bf16.mxu0 0
      %3721 = vmatpush1.bf16.msra.mxu0 0
      %3722 = vmatprep.subr.bf16.mxu0 0
      %3723 = vmatpush1.bf16.msra.mxu0 0
      %3724 = vmatprep.subr.bf16.mxu0 0
      %3725 = vmatpush1.bf16.msra.mxu0 0
      %3726 = vmatprep.subr.bf16.mxu0 0
      %3727 = vmatpush1.bf16.msra.mxu0 0
      %3728 = vmatprep.subr.bf16.mxu0 0
      %3729 = vmatpush1.bf16.msra.mxu0 0
      %3730 = vmatprep.subr.bf16.mxu0 0
      %3731 = vmatpush1.bf16.msra.mxu0 0
      %3732 = vmatprep.subr.bf16.mxu0 0
      %3733 = vmatpush1.bf16.msra.mxu0 0
      %3734 = vmatprep.subr.bf16.mxu0 0
      %3735 = vmatpush1.bf16.msra.mxu0 0
      %3736 = vmatprep.subr.bf16.mxu0 0
      %3737 = vmatpush1.bf16.msra.mxu0 0
      %3738 = vmatprep.subr.bf16.mxu0 0
      %3739 = vmatpush1.bf16.msra.mxu0 0
      %3740 = vmatprep.subr.bf16.mxu0 0
      %3741 = vmatpush1.bf16.msra.mxu0 0
      %3742 = vmatprep.subr.bf16.mxu0 0
      %3743 = vmatpush1.bf16.msra.mxu0 0
      %3744 = vmatprep.mubr.bf16.mxu0 0
      %3745 = vmatmul.mubr.bf16.gmra.mrb[0].mxu0 %v3198
      %v3746 = vpop.f32.mrb[0].mxu0
      %v3747 = vadd.f32 %v3148, %v3746
      %v3748 = vpop.f32.mrb[0].mxu0
      %v3749 = vpop.f32.mrb[0].mxu0
      %v3750 = vpop.f32.mrb[0].mxu0
      %3751 = vdwg.mxu0
      %v3760 = vunpack.c.l.b16 %v3064
      %v3761 = vunpack.c.l.b16 %v3065
      %v3762 = vunpack.c.l.b16 %v3066
      %v3763 = vunpack.c.l.b16 %v3067
      %v3764 = vunpack.c.l.b16 %v3068
      %v3765 = vunpack.c.l.b16 %v3069
      %v3766 = vunpack.c.l.b16 %v3070
      %v3767 = vunpack.c.l.b16 %v3071
      %v3768 = vpack.c.b16 %v3761, %v3760
      %v3769 = vpack.c.b16 %v3763, %v3762
      %v3770 = vpack.c.b16 %v3765, %v3764
      %v3771 = vpack.c.b16 %v3767, %v3766
      %3776 = vmatprep.subr.bf16.mxu0 0
      %3777 = vmatpush1.bf16.msra.mxu0 %v3768
      %3778 = vmatprep.subr.bf16.mxu0 0
      %3779 = vmatpush1.bf16.msra.mxu0 %v3769
      %3780 = vmatprep.subr.bf16.mxu0 0
      %3781 = vmatpush1.bf16.msra.mxu0 %v3770
      %3782 = vmatprep.subr.bf16.mxu0 0
      %3783 = vmatpush1.bf16.msra.mxu0 %v3771
      %3784 = vmatprep.subr.bf16.mxu0 0
      %3785 = vmatpush1.bf16.msra.mxu0 0
      %3786 = vmatprep.subr.bf16.mxu0 0
      %3787 = vmatpush1.bf16.msra.mxu0 0
      %3788 = vmatprep.subr.bf16.mxu0 0
      %3789 = vmatpush1.bf16.msra.mxu0 0
      %3790 = vmatprep.subr.bf16.mxu0 0
      %3791 = vmatpush1.bf16.msra.mxu0 0
      %3792 = vmatprep.subr.bf16.mxu0 0
      %3793 = vmatpush1.bf16.msra.mxu0 0
      %3794 = vmatprep.subr.bf16.mxu0 0
      %3795 = vmatpush1.bf16.msra.mxu0 0
      %3796 = vmatprep.subr.bf16.mxu0 0
      %3797 = vmatpush1.bf16.msra.mxu0 0
      %3798 = vmatprep.subr.bf16.mxu0 0
      %3799 = vmatpush1.bf16.msra.mxu0 0
      %3800 = vmatprep.subr.bf16.mxu0 0
      %3801 = vmatpush1.bf16.msra.mxu0 0
      %3802 = vmatprep.subr.bf16.mxu0 0
      %3803 = vmatpush1.bf16.msra.mxu0 0
      %3804 = vmatprep.subr.bf16.mxu0 0
      %3805 = vmatpush1.bf16.msra.mxu0 0
      %3806 = vmatprep.subr.bf16.mxu0 0
      %3807 = vmatpush1.bf16.msra.mxu0 0
      %3808 = vmatprep.mubr.bf16.mxu0 0
      %3809 = vmatmul.mubr.bf16.gmra.mrb[0].mxu0 %v3198
      %v3810 = vpop.f32.mrb[0].mxu0
      %v3811 = vadd.f32 %v3152, %v3810
      %v3812 = vpop.f32.mrb[0].mxu0
      %v3813 = vpop.f32.mrb[0].mxu0
      %v3814 = vpop.f32.mrb[0].mxu0
      %3815 = vdwg.mxu0
      %v3824 = vunpack.c.l.b16 %v3072
      %v3825 = vunpack.c.l.b16 %v3073
      %v3826 = vunpack.c.l.b16 %v3074
      %v3827 = vunpack.c.l.b16 %v3075
      %v3828 = vunpack.c.l.b16 %v3076
      %v3829 = vunpack.c.l.b16 %v3077
      %v3830 = vunpack.c.l.b16 %v3078
      %v3831 = vunpack.c.l.b16 %v3079
      %v3832 = vpack.c.b16 %v3825, %v3824
      %v3833 = vpack.c.b16 %v3827, %v3826
      %v3834 = vpack.c.b16 %v3829, %v3828
      %v3835 = vpack.c.b16 %v3831, %v3830
      %3840 = vmatprep.subr.bf16.mxu0 0
      %3841 = vmatpush1.bf16.msra.mxu0 %v3832
      %3842 = vmatprep.subr.bf16.mxu0 0
      %3843 = vmatpush1.bf16.msra.mxu0 %v3833
      %3844 = vmatprep.subr.bf16.mxu0 0
      %3845 = vmatpush1.bf16.msra.mxu0 %v3834
      %3846 = vmatprep.subr.bf16.mxu0 0
      %3847 = vmatpush1.bf16.msra.mxu0 %v3835
      %3848 = vmatprep.subr.bf16.mxu0 0
      %3849 = vmatpush1.bf16.msra.mxu0 0
      %3850 = vmatprep.subr.bf16.mxu0 0
      %3851 = vmatpush1.bf16.msra.mxu0 0
      %3852 = vmatprep.subr.bf16.mxu0 0
      %3853 = vmatpush1.bf16.msra.mxu0 0
      %3854 = vmatprep.subr.bf16.mxu0 0
      %3855 = vmatpush1.bf16.msra.mxu0 0
      %3856 = vmatprep.subr.bf16.mxu0 0
      %3857 = vmatpush1.bf16.msra.mxu0 0
      %3858 = vmatprep.subr.bf16.mxu0 0
      %3859 = vmatpush1.bf16.msra.mxu0 0
      %3860 = vmatprep.subr.bf16.mxu0 0
      %3861 = vmatpush1.bf16.msra.mxu0 0
      %3862 = vmatprep.subr.bf16.mxu0 0
      %3863 = vmatpush1.bf16.msra.mxu0 0
      %3864 = vmatprep.subr.bf16.mxu0 0
      %3865 = vmatpush1.bf16.msra.mxu0 0
      %3866 = vmatprep.subr.bf16.mxu0 0
      %3867 = vmatpush1.bf16.msra.mxu0 0
      %3868 = vmatprep.subr.bf16.mxu0 0
      %3869 = vmatpush1.bf16.msra.mxu0 0
      %3870 = vmatprep.subr.bf16.mxu0 0
      %3871 = vmatpush1.bf16.msra.mxu0 0
      %3872 = vmatprep.mubr.bf16.mxu0 0
      %3873 = vmatmul.mubr.bf16.gmra.mrb[0].mxu0 %v3198
      %v3874 = vpop.f32.mrb[0].mxu0
      %v3875 = vadd.f32 %v3156, %v3874
      %v3876 = vpop.f32.mrb[0].mxu0
      %v3877 = vpop.f32.mrb[0].mxu0
      %v3878 = vpop.f32.mrb[0].mxu0
      %3879 = vdwg.mxu0
      %v3888 = vunpack.c.l.b16 %v3080
      %v3889 = vunpack.c.l.b16 %v3081
      %v3890 = vunpack.c.l.b16 %v3082
      %v3891 = vunpack.c.l.b16 %v3083
      %v3892 = vunpack.c.l.b16 %v3084
      %v3893 = vunpack.c.l.b16 %v3085
      %v3894 = vunpack.c.l.b16 %v3086
      %v3895 = vunpack.c.l.b16 %v3087
      %v3896 = vpack.c.b16 %v3889, %v3888
      %v3897 = vpack.c.b16 %v3891, %v3890
      %v3898 = vpack.c.b16 %v3893, %v3892
      %v3899 = vpack.c.b16 %v3895, %v3894
      %3904 = vmatprep.subr.bf16.mxu0 0
      %3905 = vmatpush1.bf16.msra.mxu0 %v3896
      %3906 = vmatprep.subr.bf16.mxu0 0
      %3907 = vmatpush1.bf16.msra.mxu0 %v3897
      %3908 = vmatprep.subr.bf16.mxu0 0
      %3909 = vmatpush1.bf16.msra.mxu0 %v3898
      %3910 = vmatprep.subr.bf16.mxu0 0
      %3911 = vmatpush1.bf16.msra.mxu0 %v3899
      %3912 = vmatprep.subr.bf16.mxu0 0
      %3913 = vmatpush1.bf16.msra.mxu0 0
      %3914 = vmatprep.subr.bf16.mxu0 0
      %3915 = vmatpush1.bf16.msra.mxu0 0
      %3916 = vmatprep.subr.bf16.mxu0 0
      %3917 = vmatpush1.bf16.msra.mxu0 0
      %3918 = vmatprep.subr.bf16.mxu0 0
      %3919 = vmatpush1.bf16.msra.mxu0 0
      %3920 = vmatprep.subr.bf16.mxu0 0
      %3921 = vmatpush1.bf16.msra.mxu0 0
      %3922 = vmatprep.subr.bf16.mxu0 0
      %3923 = vmatpush1.bf16.msra.mxu0 0
      %3924 = vmatprep.subr.bf16.mxu0 0
      %3925 = vmatpush1.bf16.msra.mxu0 0
      %3926 = vmatprep.subr.bf16.mxu0 0
      %3927 = vmatpush1.bf16.msra.mxu0 0
      %3928 = vmatprep.subr.bf16.mxu0 0
      %3929 = vmatpush1.bf16.msra.mxu0 0
      %3930 = vmatprep.subr.bf16.mxu0 0
      %3931 = vmatpush1.bf16.msra.mxu0 0
      %3932 = vmatprep.subr.bf16.mxu0 0
      %3933 = vmatpush1.bf16.msra.mxu0 0
      %3934 = vmatprep.subr.bf16.mxu0 0
      %3935 = vmatpush1.bf16.msra.mxu0 0
      %3936 = vmatprep.mubr.bf16.mxu0 0
      %3937 = vmatmul.mubr.bf16.gmra.mrb[0].mxu0 %v3198
      %v3938 = vpop.f32.mrb[0].mxu0
      %v3939 = vadd.f32 %v3160, %v3938
      %v3940 = vpop.f32.mrb[0].mxu0
      %v3941 = vpop.f32.mrb[0].mxu0
      %v3942 = vpop.f32.mrb[0].mxu0
      %3943 = vdwg.mxu0
      %v3944 = vpack.c.bf16 %v3235, %v3235
      %v3945 = vpack.c.bf16 %v3299, %v3299
      %v3946 = vpack.c.bf16 %v3363, %v3363
      %v3947 = vpack.c.bf16 %v3427, %v3427
      %v3948 = vpack.c.bf16 %v3491, %v3491
      %v3949 = vpack.c.bf16 %v3555, %v3555
      %v3950 = vpack.c.bf16 %v3619, %v3619
      %v3951 = vpack.c.bf16 %v3683, %v3683
      %3952 = vmatprep.subr.bf16.mxu0 0
      %3953 = vmatpush1.bf16.xpose.msra.mxu0 %v3948
      %3954 = vmatprep.subr.bf16.mxu0 0
      %3955 = vmatpush1.bf16.xpose.msra.mxu0 0
      %3956 = vmatprep.subr.bf16.mxu0 0
      %3957 = vmatpush1.bf16.xpose.msra.mxu0 0
      %3958 = vmatprep.subr.bf16.mxu0 0
      %3959 = vmatpush1.bf16.xpose.msra.mxu0 0
      %3960 = vmatprep.subr.bf16.mxu0 0
      %3961 = vmatpush1.bf16.xpose.msra.mxu0 0
      %3962 = vmatprep.subr.bf16.mxu0 0
      %3963 = vmatpush1.bf16.xpose.msra.mxu0 0
      %3964 = vmatprep.subr.bf16.mxu0 0
      %3965 = vmatpush1.bf16.xpose.msra.mxu0 0
      %3966 = vmatprep.subr.bf16.mxu0 0
      %3967 = vmatpush1.bf16.xpose.msra.mxu0 0
      %3968 = vmatprep.subr.bf16.mxu0 0
      %3969 = vmatpush1.bf16.xpose.msra.mxu0 0
      %3970 = vmatprep.subr.bf16.mxu0 0
      %3971 = vmatpush1.bf16.xpose.msra.mxu0 0
      %3972 = vmatprep.subr.bf16.mxu0 0
      %3973 = vmatpush1.bf16.xpose.msra.mxu0 0
      %3974 = vmatprep.subr.bf16.mxu0 0
      %3975 = vmatpush1.bf16.xpose.msra.mxu0 0
      %3976 = vmatprep.subr.bf16.mxu0 0
      %3977 = vmatpush1.bf16.xpose.msra.mxu0 0
      %3978 = vmatprep.subr.bf16.mxu0 0
      %3979 = vmatpush1.bf16.xpose.msra.mxu0 0
      %3980 = vmatprep.subr.bf16.mxu0 0
      %3981 = vmatpush1.bf16.xpose.msra.mxu0 0
      %3982 = vmatprep.subr.bf16.mxu0 0
      %3983 = vmatpush1.bf16.xpose.msra.mxu0 0
      %3984 = vmatprep.mubr.bf16.mxu0 0
      %3985 = vmatmul.mubr.bf16.gmra.mrb[0].mxu0 %v3944
      %v3986 = vpop.f32.mrb[0].mxu0
      %v3987 = vadd.f32 0.0, %v3986
      %v3988 = vpop.f32.mrb[0].mxu0
      %v3989 = vpop.f32.mrb[0].mxu0
      %v3990 = vpop.f32.mrb[0].mxu0
      %3991 = vdwg.mxu0
      %3992 = vmatprep.subr.bf16.mxu0 0
      %3993 = vmatpush1.bf16.xpose.msra.mxu0 %v3949
      %3994 = vmatprep.subr.bf16.mxu0 0
      %3995 = vmatpush1.bf16.xpose.msra.mxu0 0
      %3996 = vmatprep.subr.bf16.mxu0 0
      %3997 = vmatpush1.bf16.xpose.msra.mxu0 0
      %3998 = vmatprep.subr.bf16.mxu0 0
      %3999 = vmatpush1.bf16.xpose.msra.mxu0 0
      %4000 = vmatprep.subr.bf16.mxu0 0
      %4001 = vmatpush1.bf16.xpose.msra.mxu0 0
      %4002 = vmatprep.subr.bf16.mxu0 0
      %4003 = vmatpush1.bf16.xpose.msra.mxu0 0
      %4004 = vmatprep.subr.bf16.mxu0 0
      %4005 = vmatpush1.bf16.xpose.msra.mxu0 0
      %4006 = vmatprep.subr.bf16.mxu0 0
      %4007 = vmatpush1.bf16.xpose.msra.mxu0 0
      %4008 = vmatprep.subr.bf16.mxu0 0
      %4009 = vmatpush1.bf16.xpose.msra.mxu0 0
      %4010 = vmatprep.subr.bf16.mxu0 0
      %4011 = vmatpush1.bf16.xpose.msra.mxu0 0
      %4012 = vmatprep.subr.bf16.mxu0 0
      %4013 = vmatpush1.bf16.xpose.msra.mxu0 0
      %4014 = vmatprep.subr.bf16.mxu0 0
      %4015 = vmatpush1.bf16.xpose.msra.mxu0 0
      %4016 = vmatprep.subr.bf16.mxu0 0
      %4017 = vmatpush1.bf16.xpose.msra.mxu0 0
      %4018 = vmatprep.subr.bf16.mxu0 0
      %4019 = vmatpush1.bf16.xpose.msra.mxu0 0
      %4020 = vmatprep.subr.bf16.mxu0 0
      %4021 = vmatpush1.bf16.xpose.msra.mxu0 0
      %4022 = vmatprep.subr.bf16.mxu0 0
      %4023 = vmatpush1.bf16.xpose.msra.mxu0 0
      %4024 = vmatprep.mubr.bf16.mxu0 0
      %4025 = vmatmul.mubr.bf16.gmra.mrb[0].mxu0 %v3945
      %v4026 = vpop.f32.mrb[0].mxu0
      %v4027 = vadd.f32 0.0, %v4026
      %v4028 = vpop.f32.mrb[0].mxu0
      %v4029 = vpop.f32.mrb[0].mxu0
      %v4030 = vpop.f32.mrb[0].mxu0
      %4031 = vdwg.mxu0
      %4032 = vmatprep.subr.bf16.mxu0 0
      %4033 = vmatpush1.bf16.xpose.msra.mxu0 %v3950
      %4034 = vmatprep.subr.bf16.mxu0 0
      %4035 = vmatpush1.bf16.xpose.msra.mxu0 0
      %4036 = vmatprep.subr.bf16.mxu0 0
      %4037 = vmatpush1.bf16.xpose.msra.mxu0 0
      %4038 = vmatprep.subr.bf16.mxu0 0
      %4039 = vmatpush1.bf16.xpose.msra.mxu0 0
      %4040 = vmatprep.subr.bf16.mxu0 0
      %4041 = vmatpush1.bf16.xpose.msra.mxu0 0
      %4042 = vmatprep.subr.bf16.mxu0 0
      %4043 = vmatpush1.bf16.xpose.msra.mxu0 0
      %4044 = vmatprep.subr.bf16.mxu0 0
      %4045 = vmatpush1.bf16.xpose.msra.mxu0 0
      %4046 = vmatprep.subr.bf16.mxu0 0
      %4047 = vmatpush1.bf16.xpose.msra.mxu0 0
      %4048 = vmatprep.subr.bf16.mxu0 0
      %4049 = vmatpush1.bf16.xpose.msra.mxu0 0
      %4050 = vmatprep.subr.bf16.mxu0 0
      %4051 = vmatpush1.bf16.xpose.msra.mxu0 0
      %4052 = vmatprep.subr.bf16.mxu0 0
      %4053 = vmatpush1.bf16.xpose.msra.mxu0 0
      %4054 = vmatprep.subr.bf16.mxu0 0
      %4055 = vmatpush1.bf16.xpose.msra.mxu0 0
      %4056 = vmatprep.subr.bf16.mxu0 0
      %4057 = vmatpush1.bf16.xpose.msra.mxu0 0
      %4058 = vmatprep.subr.bf16.mxu0 0
      %4059 = vmatpush1.bf16.xpose.msra.mxu0 0
      %4060 = vmatprep.subr.bf16.mxu0 0
      %4061 = vmatpush1.bf16.xpose.msra.mxu0 0
      %4062 = vmatprep.subr.bf16.mxu0 0
      %4063 = vmatpush1.bf16.xpose.msra.mxu0 0
      %4064 = vmatprep.mubr.bf16.mxu0 0
      %4065 = vmatmul.mubr.bf16.gmra.mrb[0].mxu0 %v3946
      %v4066 = vpop.f32.mrb[0].mxu0
      %v4067 = vadd.f32 0.0, %v4066
      %v4068 = vpop.f32.mrb[0].mxu0
      %v4069 = vpop.f32.mrb[0].mxu0
      %v4070 = vpop.f32.mrb[0].mxu0
      %4071 = vdwg.mxu0
      %4072 = vmatprep.subr.bf16.mxu0 0
      %4073 = vmatpush1.bf16.xpose.msra.mxu0 %v3951
      %4074 = vmatprep.subr.bf16.mxu0 0
      %4075 = vmatpush1.bf16.xpose.msra.mxu0 0
      %4076 = vmatprep.subr.bf16.mxu0 0
      %4077 = vmatpush1.bf16.xpose.msra.mxu0 0
      %4078 = vmatprep.subr.bf16.mxu0 0
      %4079 = vmatpush1.bf16.xpose.msra.mxu0 0
      %4080 = vmatprep.subr.bf16.mxu0 0
      %4081 = vmatpush1.bf16.xpose.msra.mxu0 0
      %4082 = vmatprep.subr.bf16.mxu0 0
      %4083 = vmatpush1.bf16.xpose.msra.mxu0 0
      %4084 = vmatprep.subr.bf16.mxu0 0
      %4085 = vmatpush1.bf16.xpose.msra.mxu0 0
      %4086 = vmatprep.subr.bf16.mxu0 0
      %4087 = vmatpush1.bf16.xpose.msra.mxu0 0
      %4088 = vmatprep.subr.bf16.mxu0 0
      %4089 = vmatpush1.bf16.xpose.msra.mxu0 0
      %4090 = vmatprep.subr.bf16.mxu0 0
      %4091 = vmatpush1.bf16.xpose.msra.mxu0 0
      %4092 = vmatprep.subr.bf16.mxu0 0
      %4093 = vmatpush1.bf16.xpose.msra.mxu0 0
      %4094 = vmatprep.subr.bf16.mxu0 0
      %4095 = vmatpush1.bf16.xpose.msra.mxu0 0
      %4096 = vmatprep.subr.bf16.mxu0 0
      %4097 = vmatpush1.bf16.xpose.msra.mxu0 0
      %4098 = vmatprep.subr.bf16.mxu0 0
      %4099 = vmatpush1.bf16.xpose.msra.mxu0 0
      %4100 = vmatprep.subr.bf16.mxu0 0
      %4101 = vmatpush1.bf16.xpose.msra.mxu0 0
      %4102 = vmatprep.subr.bf16.mxu0 0
      %4103 = vmatpush1.bf16.xpose.msra.mxu0 0
      %4104 = vmatprep.mubr.bf16.mxu0 0
      %4105 = vmatmul.mubr.bf16.gmra.mrb[0].mxu0 %v3947
      %v4106 = vpop.f32.mrb[0].mxu0
      %v4107 = vadd.f32 0.0, %v4106
      %v4108 = vpop.f32.mrb[0].mxu0
      %v4109 = vpop.f32.mrb[0].mxu0
      %v4110 = vpop.f32.mrb[0].mxu0
      %4111 = vdwg.mxu0
      %v4112 = vmul.f32 %v3987, 0.25
      %v4113 = vmul.f32 %v4027, 0.25
      %v4114 = vmul.f32 %v4067, 0.25
      %v4115 = vmul.f32 %v4107, 0.25
      %v4116 = vadd.f32 %v4112, %v2047
      %v4117 = vadd.f32 %v4113, %v2047
      %v4118 = vadd.f32 %v4114, %v2047
      %v4119 = vadd.f32 %v4115, %v2047
      %v4120 = vsel %vm2053, %v4116, -inf
      %4121 = vmax.xlane.f32.xlu0 %v4120
      %v4122 = vpop.xlane.xlu0 %4121
      %v4123 = vsel %vm2053, %v4117, -inf
      %4124 = vmax.xlane.f32.xlu0 %v4123
      %v4125 = vpop.xlane.xlu0 %4124
      %v4126 = vsel %vm2053, %v4118, -inf
      %4127 = vmax.xlane.f32.xlu0 %v4126
      %v4128 = vpop.xlane.xlu0 %4127
      %v4129 = vsel %vm2053, %v4119, -inf
      %4130 = vmax.xlane.f32.xlu0 %v4129
      %v4131 = vpop.xlane.xlu0 %4130
      %v4132 = vsub.f32 %v4116, %v4122
      %v4133 = vsub.f32 %v4117, %v4125
      %v4134 = vsub.f32 %v4118, %v4128
      %v4135 = vsub.f32 %v4119, %v4131
      %v4136 = vmul.f32 %v4132, 1.442695
      %v4137 = vpow.pop %v4136
      %v4138 = vmul.f32 %v4133, 1.442695
      %v4139 = vpow.pop %v4138
      %v4140 = vmul.f32 %v4134, 1.442695
      %v4141 = vpow.pop %v4140
      %v4142 = vmul.f32 %v4135, 1.442695
      %v4143 = vpow.pop %v4142
      %v4144 = vsel %vm2053, %v4137, 0.0
      %4145 = vadd.xlane.f32.xlu0 %v4144
      %v4146 = vpop.xlane.xlu0 %4145
      %v4147 = vsel %vm2053, %v4139, 0.0
      %4148 = vadd.xlane.f32.xlu0 %v4147
      %v4149 = vpop.xlane.xlu0 %4148
      %v4150 = vsel %vm2053, %v4141, 0.0
      %4151 = vadd.xlane.f32.xlu0 %v4150
      %v4152 = vpop.xlane.xlu0 %4151
      %v4153 = vsel %vm2053, %v4143, 0.0
      %4154 = vadd.xlane.f32.xlu0 %v4153
      %v4155 = vpop.xlane.xlu0 %4154
      %v4156 = vrcp.pop %v4146
      %v4157 = vrcp.pop %v4149
      %v4158 = vrcp.pop %v4152
      %v4159 = vrcp.pop %v4155
      %v4160 = vmul.f32 %v4137, %v4156
      %v4161 = vmul.f32 %v4139, %v4157
      %v4162 = vmul.f32 %v4141, %v4158
      %v4163 = vmul.f32 %v4143, %v4159
      %v4164 = vpack.c.bf16 %v4160, %v4160
      %v4165 = vpack.c.bf16 %v4161, %v4161
      %v4166 = vpack.c.bf16 %v4162, %v4162
      %v4167 = vpack.c.bf16 %v4163, %v4163
      %v4168 = vpack.c.bf16 %v3747, %v3747
      %v4169 = vpack.c.bf16 %v3811, %v3811
      %v4170 = vpack.c.bf16 %v3875, %v3875
      %v4171 = vpack.c.bf16 %v3939, %v3939
      %v4173 = vsel %vm2053, %v4164, 0
      %v4176 = vsel %vm2109, %v4168, 0
      %4178 = vmatprep.subr.bf16.mxu0 0
      %4179 = vmatpush1.bf16.msra.mxu0 %v4176
      %4180 = vmatprep.subr.bf16.mxu0 0
      %4181 = vmatpush1.bf16.msra.mxu0 0
      %4182 = vmatprep.subr.bf16.mxu0 0
      %4183 = vmatpush1.bf16.msra.mxu0 0
      %4184 = vmatprep.subr.bf16.mxu0 0
      %4185 = vmatpush1.bf16.msra.mxu0 0
      %4186 = vmatprep.subr.bf16.mxu0 0
      %4187 = vmatpush1.bf16.msra.mxu0 0
      %4188 = vmatprep.subr.bf16.mxu0 0
      %4189 = vmatpush1.bf16.msra.mxu0 0
      %4190 = vmatprep.subr.bf16.mxu0 0
      %4191 = vmatpush1.bf16.msra.mxu0 0
      %4192 = vmatprep.subr.bf16.mxu0 0
      %4193 = vmatpush1.bf16.msra.mxu0 0
      %4194 = vmatprep.subr.bf16.mxu0 0
      %4195 = vmatpush1.bf16.msra.mxu0 0
      %4196 = vmatprep.subr.bf16.mxu0 0
      %4197 = vmatpush1.bf16.msra.mxu0 0
      %4198 = vmatprep.subr.bf16.mxu0 0
      %4199 = vmatpush1.bf16.msra.mxu0 0
      %4200 = vmatprep.subr.bf16.mxu0 0
      %4201 = vmatpush1.bf16.msra.mxu0 0
      %4202 = vmatprep.subr.bf16.mxu0 0
      %4203 = vmatpush1.bf16.msra.mxu0 0
      %4204 = vmatprep.subr.bf16.mxu0 0
      %4205 = vmatpush1.bf16.msra.mxu0 0
      %4206 = vmatprep.subr.bf16.mxu0 0
      %4207 = vmatpush1.bf16.msra.mxu0 0
      %4208 = vmatprep.subr.bf16.mxu0 0
      %4209 = vmatpush1.bf16.msra.mxu0 0
      %4210 = vmatprep.mubr.bf16.mxu0 0
      %4211 = vmatmul.mubr.bf16.gmra.mrb[0].mxu0 %v4173
      %v4212 = vpop.f32.mrb[0].mxu0
      %v4213 = vadd.f32 0.0, %v4212
      %v4214 = vpop.f32.mrb[0].mxu0
      %v4215 = vpop.f32.mrb[0].mxu0
      %v4216 = vpop.f32.mrb[0].mxu0
      %4217 = vdwg.mxu0
      %v4219 = vsel %vm2053, %v4165, 0
      %v4222 = vsel %vm2109, %v4169, 0
      %4224 = vmatprep.subr.bf16.mxu0 0
      %4225 = vmatpush1.bf16.msra.mxu0 %v4222
      %4226 = vmatprep.subr.bf16.mxu0 0
      %4227 = vmatpush1.bf16.msra.mxu0 0
      %4228 = vmatprep.subr.bf16.mxu0 0
      %4229 = vmatpush1.bf16.msra.mxu0 0
      %4230 = vmatprep.subr.bf16.mxu0 0
      %4231 = vmatpush1.bf16.msra.mxu0 0
      %4232 = vmatprep.subr.bf16.mxu0 0
      %4233 = vmatpush1.bf16.msra.mxu0 0
      %4234 = vmatprep.subr.bf16.mxu0 0
      %4235 = vmatpush1.bf16.msra.mxu0 0
      %4236 = vmatprep.subr.bf16.mxu0 0
      %4237 = vmatpush1.bf16.msra.mxu0 0
      %4238 = vmatprep.subr.bf16.mxu0 0
      %4239 = vmatpush1.bf16.msra.mxu0 0
      %4240 = vmatprep.subr.bf16.mxu0 0
      %4241 = vmatpush1.bf16.msra.mxu0 0
      %4242 = vmatprep.subr.bf16.mxu0 0
      %4243 = vmatpush1.bf16.msra.mxu0 0
      %4244 = vmatprep.subr.bf16.mxu0 0
      %4245 = vmatpush1.bf16.msra.mxu0 0
      %4246 = vmatprep.subr.bf16.mxu0 0
      %4247 = vmatpush1.bf16.msra.mxu0 0
      %4248 = vmatprep.subr.bf16.mxu0 0
      %4249 = vmatpush1.bf16.msra.mxu0 0
      %4250 = vmatprep.subr.bf16.mxu0 0
      %4251 = vmatpush1.bf16.msra.mxu0 0
      %4252 = vmatprep.subr.bf16.mxu0 0
      %4253 = vmatpush1.bf16.msra.mxu0 0
      %4254 = vmatprep.subr.bf16.mxu0 0
      %4255 = vmatpush1.bf16.msra.mxu0 0
      %4256 = vmatprep.mubr.bf16.mxu0 0
      %4257 = vmatmul.mubr.bf16.gmra.mrb[0].mxu0 %v4219
      %v4258 = vpop.f32.mrb[0].mxu0
      %v4259 = vadd.f32 0.0, %v4258
      %v4260 = vpop.f32.mrb[0].mxu0
      %v4261 = vpop.f32.mrb[0].mxu0
      %v4262 = vpop.f32.mrb[0].mxu0
      %4263 = vdwg.mxu0
      %v4265 = vsel %vm2053, %v4166, 0
      %v4268 = vsel %vm2109, %v4170, 0
      %4270 = vmatprep.subr.bf16.mxu0 0
      %4271 = vmatpush1.bf16.msra.mxu0 %v4268
      %4272 = vmatprep.subr.bf16.mxu0 0
      %4273 = vmatpush1.bf16.msra.mxu0 0
      %4274 = vmatprep.subr.bf16.mxu0 0
      %4275 = vmatpush1.bf16.msra.mxu0 0
      %4276 = vmatprep.subr.bf16.mxu0 0
      %4277 = vmatpush1.bf16.msra.mxu0 0
      %4278 = vmatprep.subr.bf16.mxu0 0
      %4279 = vmatpush1.bf16.msra.mxu0 0
      %4280 = vmatprep.subr.bf16.mxu0 0
      %4281 = vmatpush1.bf16.msra.mxu0 0
      %4282 = vmatprep.subr.bf16.mxu0 0
      %4283 = vmatpush1.bf16.msra.mxu0 0
      %4284 = vmatprep.subr.bf16.mxu0 0
      %4285 = vmatpush1.bf16.msra.mxu0 0
      %4286 = vmatprep.subr.bf16.mxu0 0
      %4287 = vmatpush1.bf16.msra.mxu0 0
      %4288 = vmatprep.subr.bf16.mxu0 0
      %4289 = vmatpush1.bf16.msra.mxu0 0
      %4290 = vmatprep.subr.bf16.mxu0 0
      %4291 = vmatpush1.bf16.msra.mxu0 0
      %4292 = vmatprep.subr.bf16.mxu0 0
      %4293 = vmatpush1.bf16.msra.mxu0 0
      %4294 = vmatprep.subr.bf16.mxu0 0
      %4295 = vmatpush1.bf16.msra.mxu0 0
      %4296 = vmatprep.subr.bf16.mxu0 0
      %4297 = vmatpush1.bf16.msra.mxu0 0
      %4298 = vmatprep.subr.bf16.mxu0 0
      %4299 = vmatpush1.bf16.msra.mxu0 0
      %4300 = vmatprep.subr.bf16.mxu0 0
      %4301 = vmatpush1.bf16.msra.mxu0 0
      %4302 = vmatprep.mubr.bf16.mxu0 0
      %4303 = vmatmul.mubr.bf16.gmra.mrb[0].mxu0 %v4265
      %v4304 = vpop.f32.mrb[0].mxu0
      %v4305 = vadd.f32 0.0, %v4304
      %v4306 = vpop.f32.mrb[0].mxu0
      %v4307 = vpop.f32.mrb[0].mxu0
      %v4308 = vpop.f32.mrb[0].mxu0
      %4309 = vdwg.mxu0
      %v4311 = vsel %vm2053, %v4167, 0
      %v4314 = vsel %vm2109, %v4171, 0
      %4316 = vmatprep.subr.bf16.mxu0 0
      %4317 = vmatpush1.bf16.msra.mxu0 %v4314
      %4318 = vmatprep.subr.bf16.mxu0 0
      %4319 = vmatpush1.bf16.msra.mxu0 0
      %4320 = vmatprep.subr.bf16.mxu0 0
      %4321 = vmatpush1.bf16.msra.mxu0 0
      %4322 = vmatprep.subr.bf16.mxu0 0
      %4323 = vmatpush1.bf16.msra.mxu0 0
      %4324 = vmatprep.subr.bf16.mxu0 0
      %4325 = vmatpush1.bf16.msra.mxu0 0
      %4326 = vmatprep.subr.bf16.mxu0 0
      %4327 = vmatpush1.bf16.msra.mxu0 0
      %4328 = vmatprep.subr.bf16.mxu0 0
      %4329 = vmatpush1.bf16.msra.mxu0 0
      %4330 = vmatprep.subr.bf16.mxu0 0
      %4331 = vmatpush1.bf16.msra.mxu0 0
      %4332 = vmatprep.subr.bf16.mxu0 0
      %4333 = vmatpush1.bf16.msra.mxu0 0
      %4334 = vmatprep.subr.bf16.mxu0 0
      %4335 = vmatpush1.bf16.msra.mxu0 0
      %4336 = vmatprep.subr.bf16.mxu0 0
      %4337 = vmatpush1.bf16.msra.mxu0 0
      %4338 = vmatprep.subr.bf16.mxu0 0
      %4339 = vmatpush1.bf16.msra.mxu0 0
      %4340 = vmatprep.subr.bf16.mxu0 0
      %4341 = vmatpush1.bf16.msra.mxu0 0
      %4342 = vmatprep.subr.bf16.mxu0 0
      %4343 = vmatpush1.bf16.msra.mxu0 0
      %4344 = vmatprep.subr.bf16.mxu0 0
      %4345 = vmatpush1.bf16.msra.mxu0 0
      %4346 = vmatprep.subr.bf16.mxu0 0
      %4347 = vmatpush1.bf16.msra.mxu0 0
      %4348 = vmatprep.mubr.bf16.mxu0 0
      %4349 = vmatmul.mubr.bf16.gmra.mrb[0].mxu0 %v4311
      %v4350 = vpop.f32.mrb[0].mxu0
      %v4351 = vadd.f32 0.0, %v4350
      %v4352 = vpop.f32.mrb[0].mxu0
      %v4353 = vpop.f32.mrb[0].mxu0
      %v4354 = vpop.f32.mrb[0].mxu0
      %4355 = vdwg.mxu0
      %v4356 = vpack.c.bf16 %v4213, %v4213
      %v4357 = vpack.c.bf16 %v4259, %v4259
      %v4358 = vpack.c.bf16 %v4305, %v4305
      %v4359 = vpack.c.bf16 %v4351, %v4351
      %s4360 = scalar_lea.vmem %s9, 256
      %v4361 = vld [vmem:[%s4360] sm:$0xf]
      %v4362 = vld [vmem:[%s4360 + $0x4] sm:$0xf]
      %v4363 = vld [vmem:[%s4360 + $0x8] sm:$0xf]
      %v4364 = vld [vmem:[%s4360 + $0xc] sm:$0xf]
      %v4365 = vld [vmem:[%s4360 + $0x10] sm:$0xf]
      %v4366 = vld [vmem:[%s4360 + $0x14] sm:$0xf]
      %v4367 = vld [vmem:[%s4360 + $0x18] sm:$0xf]
      %v4368 = vld [vmem:[%s4360 + $0x1c] sm:$0xf]
      %v4369 = vld [vmem:[%s4360 + $0x20] sm:$0xf]
      %v4370 = vld [vmem:[%s4360 + $0x24] sm:$0xf]
      %v4371 = vld [vmem:[%s4360 + $0x28] sm:$0xf]
      %v4372 = vld [vmem:[%s4360 + $0x2c] sm:$0xf]
      %v4373 = vld [vmem:[%s4360 + $0x30] sm:$0xf]
      %v4374 = vld [vmem:[%s4360 + $0x34] sm:$0xf]
      %v4375 = vld [vmem:[%s4360 + $0x38] sm:$0xf]
      %v4376 = vld [vmem:[%s4360 + $0x3c] sm:$0xf]
      %v4377 = vld [vmem:[%s4360 + $0x40] sm:$0xf]
      %v4378 = vld [vmem:[%s4360 + $0x44] sm:$0xf]
      %v4379 = vld [vmem:[%s4360 + $0x48] sm:$0xf]
      %v4380 = vld [vmem:[%s4360 + $0x4c] sm:$0xf]
      %v4381 = vld [vmem:[%s4360 + $0x50] sm:$0xf]
      %v4382 = vld [vmem:[%s4360 + $0x54] sm:$0xf]
      %v4383 = vld [vmem:[%s4360 + $0x58] sm:$0xf]
      %v4384 = vld [vmem:[%s4360 + $0x5c] sm:$0xf]
      %v4385 = vld [vmem:[%s4360 + $0x60] sm:$0xf]
      %v4386 = vld [vmem:[%s4360 + $0x64] sm:$0xf]
      %v4387 = vld [vmem:[%s4360 + $0x68] sm:$0xf]
      %v4388 = vld [vmem:[%s4360 + $0x6c] sm:$0xf]
      %v4389 = vld [vmem:[%s4360 + $0x70] sm:$0xf]
      %v4390 = vld [vmem:[%s4360 + $0x74] sm:$0xf]
      %v4391 = vld [vmem:[%s4360 + $0x78] sm:$0xf]
      %v4392 = vld [vmem:[%s4360 + $0x7c] sm:$0xf]
      %v4393 = vld [vmem:[%s4360 + $0x80] sm:$0xf]
      %v4394 = vld [vmem:[%s4360 + $0x84] sm:$0xf]
      %v4395 = vld [vmem:[%s4360 + $0x88] sm:$0xf]
      %v4396 = vld [vmem:[%s4360 + $0x8c] sm:$0xf]
      %v4397 = vld [vmem:[%s4360 + $0x90] sm:$0xf]
      %v4398 = vld [vmem:[%s4360 + $0x94] sm:$0xf]
      %v4399 = vld [vmem:[%s4360 + $0x98] sm:$0xf]
      %v4400 = vld [vmem:[%s4360 + $0x9c] sm:$0xf]
      %v4401 = vld [vmem:[%s4360 + $0xa0] sm:$0xf]
      %v4402 = vld [vmem:[%s4360 + $0xa4] sm:$0xf]
      %v4403 = vld [vmem:[%s4360 + $0xa8] sm:$0xf]
      %v4404 = vld [vmem:[%s4360 + $0xac] sm:$0xf]
      %v4405 = vld [vmem:[%s4360 + $0xb0] sm:$0xf]
      %v4406 = vld [vmem:[%s4360 + $0xb4] sm:$0xf]
      %v4407 = vld [vmem:[%s4360 + $0xb8] sm:$0xf]
      %v4408 = vld [vmem:[%s4360 + $0xbc] sm:$0xf]
      %v4409 = vld [vmem:[%s4360 + $0xc0] sm:$0xf]
      %v4410 = vld [vmem:[%s4360 + $0xc4] sm:$0xf]
      %v4411 = vld [vmem:[%s4360 + $0xc8] sm:$0xf]
      %v4412 = vld [vmem:[%s4360 + $0xcc] sm:$0xf]
      %v4413 = vld [vmem:[%s4360 + $0xd0] sm:$0xf]
      %v4414 = vld [vmem:[%s4360 + $0xd4] sm:$0xf]
      %v4415 = vld [vmem:[%s4360 + $0xd8] sm:$0xf]
      %v4416 = vld [vmem:[%s4360 + $0xdc] sm:$0xf]
      %v4417 = vld [vmem:[%s4360 + $0xe0] sm:$0xf]
      %v4418 = vld [vmem:[%s4360 + $0xe4] sm:$0xf]
      %v4419 = vld [vmem:[%s4360 + $0xe8] sm:$0xf]
      %v4420 = vld [vmem:[%s4360 + $0xec] sm:$0xf]
      %v4421 = vld [vmem:[%s4360 + $0xf0] sm:$0xf]
      %v4422 = vld [vmem:[%s4360 + $0xf4] sm:$0xf]
      %v4423 = vld [vmem:[%s4360 + $0xf8] sm:$0xf]
      %v4424 = vld [vmem:[%s4360 + $0xfc] sm:$0xf]
      %v4441 = vunpack.c.l.b16 %v4361
      %v4442 = vunpack.c.l.b16 %v4362
      %v4443 = vunpack.c.l.b16 %v4363
      %v4444 = vunpack.c.l.b16 %v4364
      %v4445 = vunpack.c.l.b16 %v4365
      %v4446 = vunpack.c.l.b16 %v4366
      %v4447 = vunpack.c.l.b16 %v4367
      %v4448 = vunpack.c.l.b16 %v4368
      %v4449 = vunpack.c.l.b16 %v4369
      %v4450 = vunpack.c.l.b16 %v4370
      %v4451 = vunpack.c.l.b16 %v4371
      %v4452 = vunpack.c.l.b16 %v4372
      %v4453 = vunpack.c.l.b16 %v4373
      %v4454 = vunpack.c.l.b16 %v4374
      %v4455 = vunpack.c.l.b16 %v4375
      %v4456 = vunpack.c.l.b16 %v4376
      %v4457 = vpack.c.b16 %v4442, %v4441
      %v4458 = vpack.c.b16 %v4444, %v4443
      %v4459 = vpack.c.b16 %v4446, %v4445
      %v4460 = vpack.c.b16 %v4448, %v4447
      %v4461 = vpack.c.b16 %v4450, %v4449
      %v4462 = vpack.c.b16 %v4452, %v4451
      %v4463 = vpack.c.b16 %v4454, %v4453
      %v4464 = vpack.c.b16 %v4456, %v4455
      %4473 = vmatprep.subr.bf16.mxu0 0
      %4474 = vmatpush1.bf16.msra.mxu0 %v4457
      %4475 = vmatprep.subr.bf16.mxu0 0
      %4476 = vmatpush1.bf16.msra.mxu0 %v4458
      %4477 = vmatprep.subr.bf16.mxu0 0
      %4478 = vmatpush1.bf16.msra.mxu0 %v4459
      %4479 = vmatprep.subr.bf16.mxu0 0
      %4480 = vmatpush1.bf16.msra.mxu0 %v4460
      %4481 = vmatprep.subr.bf16.mxu0 0
      %4482 = vmatpush1.bf16.msra.mxu0 %v4461
      %4483 = vmatprep.subr.bf16.mxu0 0
      %4484 = vmatpush1.bf16.msra.mxu0 %v4462
      %4485 = vmatprep.subr.bf16.mxu0 0
      %4486 = vmatpush1.bf16.msra.mxu0 %v4463
      %4487 = vmatprep.subr.bf16.mxu0 0
      %4488 = vmatpush1.bf16.msra.mxu0 %v4464
      %4489 = vmatprep.subr.bf16.mxu0 0
      %4490 = vmatpush1.bf16.msra.mxu0 0
      %4491 = vmatprep.subr.bf16.mxu0 0
      %4492 = vmatpush1.bf16.msra.mxu0 0
      %4493 = vmatprep.subr.bf16.mxu0 0
      %4494 = vmatpush1.bf16.msra.mxu0 0
      %4495 = vmatprep.subr.bf16.mxu0 0
      %4496 = vmatpush1.bf16.msra.mxu0 0
      %4497 = vmatprep.subr.bf16.mxu0 0
      %4498 = vmatpush1.bf16.msra.mxu0 0
      %4499 = vmatprep.subr.bf16.mxu0 0
      %4500 = vmatpush1.bf16.msra.mxu0 0
      %4501 = vmatprep.subr.bf16.mxu0 0
      %4502 = vmatpush1.bf16.msra.mxu0 0
      %4503 = vmatprep.subr.bf16.mxu0 0
      %4504 = vmatpush1.bf16.msra.mxu0 0
      %4505 = vmatprep.mubr.bf16.mxu0 0
      %4506 = vmatmul.mubr.bf16.gmra.mrb[0].mxu0 %v4356
      %v4507 = vpop.f32.mrb[0].mxu0
      %v4508 = vadd.f32 0.0, %v4507
      %v4509 = vpop.f32.mrb[0].mxu0
      %v4510 = vpop.f32.mrb[0].mxu0
      %v4511 = vpop.f32.mrb[0].mxu0
      %4512 = vdwg.mxu0
      %v4529 = vunpack.c.l.b16 %v4377
      %v4530 = vunpack.c.l.b16 %v4378
      %v4531 = vunpack.c.l.b16 %v4379
      %v4532 = vunpack.c.l.b16 %v4380
      %v4533 = vunpack.c.l.b16 %v4381
      %v4534 = vunpack.c.l.b16 %v4382
      %v4535 = vunpack.c.l.b16 %v4383
      %v4536 = vunpack.c.l.b16 %v4384
      %v4537 = vunpack.c.l.b16 %v4385
      %v4538 = vunpack.c.l.b16 %v4386
      %v4539 = vunpack.c.l.b16 %v4387
      %v4540 = vunpack.c.l.b16 %v4388
      %v4541 = vunpack.c.l.b16 %v4389
      %v4542 = vunpack.c.l.b16 %v4390
      %v4543 = vunpack.c.l.b16 %v4391
      %v4544 = vunpack.c.l.b16 %v4392
      %v4545 = vpack.c.b16 %v4530, %v4529
      %v4546 = vpack.c.b16 %v4532, %v4531
      %v4547 = vpack.c.b16 %v4534, %v4533
      %v4548 = vpack.c.b16 %v4536, %v4535
      %v4549 = vpack.c.b16 %v4538, %v4537
      %v4550 = vpack.c.b16 %v4540, %v4539
      %v4551 = vpack.c.b16 %v4542, %v4541
      %v4552 = vpack.c.b16 %v4544, %v4543
      %4561 = vmatprep.subr.bf16.mxu0 0
      %4562 = vmatpush1.bf16.msra.mxu0 %v4545
      %4563 = vmatprep.subr.bf16.mxu0 0
      %4564 = vmatpush1.bf16.msra.mxu0 %v4546
      %4565 = vmatprep.subr.bf16.mxu0 0
      %4566 = vmatpush1.bf16.msra.mxu0 %v4547
      %4567 = vmatprep.subr.bf16.mxu0 0
      %4568 = vmatpush1.bf16.msra.mxu0 %v4548
      %4569 = vmatprep.subr.bf16.mxu0 0
      %4570 = vmatpush1.bf16.msra.mxu0 %v4549
      %4571 = vmatprep.subr.bf16.mxu0 0
      %4572 = vmatpush1.bf16.msra.mxu0 %v4550
      %4573 = vmatprep.subr.bf16.mxu0 0
      %4574 = vmatpush1.bf16.msra.mxu0 %v4551
      %4575 = vmatprep.subr.bf16.mxu0 0
      %4576 = vmatpush1.bf16.msra.mxu0 %v4552
      %4577 = vmatprep.subr.bf16.mxu0 0
      %4578 = vmatpush1.bf16.msra.mxu0 0
      %4579 = vmatprep.subr.bf16.mxu0 0
      %4580 = vmatpush1.bf16.msra.mxu0 0
      %4581 = vmatprep.subr.bf16.mxu0 0
      %4582 = vmatpush1.bf16.msra.mxu0 0
      %4583 = vmatprep.subr.bf16.mxu0 0
      %4584 = vmatpush1.bf16.msra.mxu0 0
      %4585 = vmatprep.subr.bf16.mxu0 0
      %4586 = vmatpush1.bf16.msra.mxu0 0
      %4587 = vmatprep.subr.bf16.mxu0 0
      %4588 = vmatpush1.bf16.msra.mxu0 0
      %4589 = vmatprep.subr.bf16.mxu0 0
      %4590 = vmatpush1.bf16.msra.mxu0 0
      %4591 = vmatprep.subr.bf16.mxu0 0
      %4592 = vmatpush1.bf16.msra.mxu0 0
      %4593 = vmatprep.mubr.bf16.mxu0 0
      %4594 = vmatmul.mubr.bf16.gmra.mrb[0].mxu0 %v4357
      %v4595 = vpop.f32.mrb[0].mxu0
      %v4596 = vadd.f32 0.0, %v4595
      %v4597 = vpop.f32.mrb[0].mxu0
      %v4598 = vpop.f32.mrb[0].mxu0
      %v4599 = vpop.f32.mrb[0].mxu0
      %4600 = vdwg.mxu0
      %v4617 = vunpack.c.l.b16 %v4393
      %v4618 = vunpack.c.l.b16 %v4394
      %v4619 = vunpack.c.l.b16 %v4395
      %v4620 = vunpack.c.l.b16 %v4396
      %v4621 = vunpack.c.l.b16 %v4397
      %v4622 = vunpack.c.l.b16 %v4398
      %v4623 = vunpack.c.l.b16 %v4399
      %v4624 = vunpack.c.l.b16 %v4400
      %v4625 = vunpack.c.l.b16 %v4401
      %v4626 = vunpack.c.l.b16 %v4402
      %v4627 = vunpack.c.l.b16 %v4403
      %v4628 = vunpack.c.l.b16 %v4404
      %v4629 = vunpack.c.l.b16 %v4405
      %v4630 = vunpack.c.l.b16 %v4406
      %v4631 = vunpack.c.l.b16 %v4407
      %v4632 = vunpack.c.l.b16 %v4408
      %v4633 = vpack.c.b16 %v4618, %v4617
      %v4634 = vpack.c.b16 %v4620, %v4619
      %v4635 = vpack.c.b16 %v4622, %v4621
      %v4636 = vpack.c.b16 %v4624, %v4623
      %v4637 = vpack.c.b16 %v4626, %v4625
      %v4638 = vpack.c.b16 %v4628, %v4627
      %v4639 = vpack.c.b16 %v4630, %v4629
      %v4640 = vpack.c.b16 %v4632, %v4631
      %4649 = vmatprep.subr.bf16.mxu0 0
      %4650 = vmatpush1.bf16.msra.mxu0 %v4633
      %4651 = vmatprep.subr.bf16.mxu0 0
      %4652 = vmatpush1.bf16.msra.mxu0 %v4634
      %4653 = vmatprep.subr.bf16.mxu0 0
      %4654 = vmatpush1.bf16.msra.mxu0 %v4635
      %4655 = vmatprep.subr.bf16.mxu0 0
      %4656 = vmatpush1.bf16.msra.mxu0 %v4636
      %4657 = vmatprep.subr.bf16.mxu0 0
      %4658 = vmatpush1.bf16.msra.mxu0 %v4637
      %4659 = vmatprep.subr.bf16.mxu0 0
      %4660 = vmatpush1.bf16.msra.mxu0 %v4638
      %4661 = vmatprep.subr.bf16.mxu0 0
      %4662 = vmatpush1.bf16.msra.mxu0 %v4639
      %4663 = vmatprep.subr.bf16.mxu0 0
      %4664 = vmatpush1.bf16.msra.mxu0 %v4640
      %4665 = vmatprep.subr.bf16.mxu0 0
      %4666 = vmatpush1.bf16.msra.mxu0 0
      %4667 = vmatprep.subr.bf16.mxu0 0
      %4668 = vmatpush1.bf16.msra.mxu0 0
      %4669 = vmatprep.subr.bf16.mxu0 0
      %4670 = vmatpush1.bf16.msra.mxu0 0
      %4671 = vmatprep.subr.bf16.mxu0 0
      %4672 = vmatpush1.bf16.msra.mxu0 0
      %4673 = vmatprep.subr.bf16.mxu0 0
      %4674 = vmatpush1.bf16.msra.mxu0 0
      %4675 = vmatprep.subr.bf16.mxu0 0
      %4676 = vmatpush1.bf16.msra.mxu0 0
      %4677 = vmatprep.subr.bf16.mxu0 0
      %4678 = vmatpush1.bf16.msra.mxu0 0
      %4679 = vmatprep.subr.bf16.mxu0 0
      %4680 = vmatpush1.bf16.msra.mxu0 0
      %4681 = vmatprep.mubr.bf16.mxu0 0
      %4682 = vmatmul.mubr.bf16.gmra.mrb[0].mxu0 %v4358
      %v4683 = vpop.f32.mrb[0].mxu0
      %v4684 = vadd.f32 0.0, %v4683
      %v4685 = vpop.f32.mrb[0].mxu0
      %v4686 = vpop.f32.mrb[0].mxu0
      %v4687 = vpop.f32.mrb[0].mxu0
      %4688 = vdwg.mxu0
      %v4705 = vunpack.c.l.b16 %v4409
      %v4706 = vunpack.c.l.b16 %v4410
      %v4707 = vunpack.c.l.b16 %v4411
      %v4708 = vunpack.c.l.b16 %v4412
      %v4709 = vunpack.c.l.b16 %v4413
      %v4710 = vunpack.c.l.b16 %v4414
      %v4711 = vunpack.c.l.b16 %v4415
      %v4712 = vunpack.c.l.b16 %v4416
      %v4713 = vunpack.c.l.b16 %v4417
      %v4714 = vunpack.c.l.b16 %v4418
      %v4715 = vunpack.c.l.b16 %v4419
      %v4716 = vunpack.c.l.b16 %v4420
      %v4717 = vunpack.c.l.b16 %v4421
      %v4718 = vunpack.c.l.b16 %v4422
      %v4719 = vunpack.c.l.b16 %v4423
      %v4720 = vunpack.c.l.b16 %v4424
      %v4721 = vpack.c.b16 %v4706, %v4705
      %v4722 = vpack.c.b16 %v4708, %v4707
      %v4723 = vpack.c.b16 %v4710, %v4709
      %v4724 = vpack.c.b16 %v4712, %v4711
      %v4725 = vpack.c.b16 %v4714, %v4713
      %v4726 = vpack.c.b16 %v4716, %v4715
      %v4727 = vpack.c.b16 %v4718, %v4717
      %v4728 = vpack.c.b16 %v4720, %v4719
      %4737 = vmatprep.subr.bf16.mxu0 0
      %4738 = vmatpush1.bf16.msra.mxu0 %v4721
      %4739 = vmatprep.subr.bf16.mxu0 0
      %4740 = vmatpush1.bf16.msra.mxu0 %v4722
      %4741 = vmatprep.subr.bf16.mxu0 0
      %4742 = vmatpush1.bf16.msra.mxu0 %v4723
      %4743 = vmatprep.subr.bf16.mxu0 0
      %4744 = vmatpush1.bf16.msra.mxu0 %v4724
      %4745 = vmatprep.subr.bf16.mxu0 0
      %4746 = vmatpush1.bf16.msra.mxu0 %v4725
      %4747 = vmatprep.subr.bf16.mxu0 0
      %4748 = vmatpush1.bf16.msra.mxu0 %v4726
      %4749 = vmatprep.subr.bf16.mxu0 0
      %4750 = vmatpush1.bf16.msra.mxu0 %v4727
      %4751 = vmatprep.subr.bf16.mxu0 0
      %4752 = vmatpush1.bf16.msra.mxu0 %v4728
      %4753 = vmatprep.subr.bf16.mxu0 0
      %4754 = vmatpush1.bf16.msra.mxu0 0
      %4755 = vmatprep.subr.bf16.mxu0 0
      %4756 = vmatpush1.bf16.msra.mxu0 0
      %4757 = vmatprep.subr.bf16.mxu0 0
      %4758 = vmatpush1.bf16.msra.mxu0 0
      %4759 = vmatprep.subr.bf16.mxu0 0
      %4760 = vmatpush1.bf16.msra.mxu0 0
      %4761 = vmatprep.subr.bf16.mxu0 0
      %4762 = vmatpush1.bf16.msra.mxu0 0
      %4763 = vmatprep.subr.bf16.mxu0 0
      %4764 = vmatpush1.bf16.msra.mxu0 0
      %4765 = vmatprep.subr.bf16.mxu0 0
      %4766 = vmatpush1.bf16.msra.mxu0 0
      %4767 = vmatprep.subr.bf16.mxu0 0
      %4768 = vmatpush1.bf16.msra.mxu0 0
      %4769 = vmatprep.mubr.bf16.mxu0 0
      %4770 = vmatmul.mubr.bf16.gmra.mrb[0].mxu0 %v4359
      %v4771 = vpop.f32.mrb[0].mxu0
      %v4772 = vadd.f32 0.0, %v4771
      %v4773 = vpop.f32.mrb[0].mxu0
      %v4774 = vpop.f32.mrb[0].mxu0
      %v4775 = vpop.f32.mrb[0].mxu0
      %4776 = vdwg.mxu0
      %s4777 = scalar_lea.vmem %s13, 6
      %v4778 = vld [vmem:[%s4777] sm:$0x1]
      %v4779 = vld [vmem:[%s4777 + $0x1] sm:$0x1]
      %v4780 = vld [vmem:[%s4777 + $0x2] sm:$0x1]
      %v4781 = vld [vmem:[%s4777 + $0x3] sm:$0x1]
      %v4782 = vld [vmem:[%s4777 + $0x4] sm:$0x1]
      %v4783 = vld [vmem:[%s4777 + $0x5] sm:$0x1]
      %v4784 = vsel %vm725, %v4508, 0.0
      %v4785 = vsel %vm725, %v4596, 0.0
      %v4786 = vadd.f32 %v4784, %v4785
      %v4787 = vsel %vm725, %v4684, 0.0
      %v4788 = vadd.f32 %v4786, %v4787
      %v4789 = vsel %vm725, %v4772, 0.0
      %v4790 = vadd.f32 %v4788, %v4789
      %v4792 = vlaneseq
      %v4793 = vshrl.u32 %v4792, 7
      %v4794 = vsub.s32 0, %v4793
      %v4795 = vrot.slane %v4778, %v4794
      %v4797 = vadd.f32 %v4790, %v4795
      %v4798 = vadd.f32 %v2989, %v4797
      %v4799 = vsel %vm725, %v4798, 0.0
      %4800 = vadd.xlane.f32.xlu0 %v4799
      %v4801 = vpop.xlane.xlu0 %4800
      %v4802 = vmul.f32 %v4801, %v893
      %v4803 = vsub.f32 %v4798, %v4802
      %v4804 = vmul.f32 %v4803, %v4803
      %v4805 = vsel %vm725, %v4804, 0.0
      %4806 = vadd.xlane.f32.xlu0 %v4805
      %v4807 = vpop.xlane.xlu0 %4806
      %v4808 = vmul.f32 %v4807, %v893
      %v4809 = vadd.f32 %v4808, 1e-05
      %v4810 = vrsqrt.pop %v4809
      %v4811 = vmul.f32 %v4803, %v4810
      %v4813 = vlaneseq
      %v4814 = vshrl.u32 %v4813, 7
      %v4815 = vsub.s32 0, %v4814
      %v4816 = vrot.slane %v4779, %v4815
      %v4818 = vmul.f32 %v4811, %v4816
      %v4820 = vlaneseq
      %v4821 = vshrl.u32 %v4820, 7
      %v4822 = vsub.s32 0, %v4821
      %v4823 = vrot.slane %v4780, %v4822
      %v4825 = vadd.f32 %v4818, %v4823
      %v4826 = vpack.c.bf16 %v4825, %v4825
      %s4827 = scalar_lea.vmem %s10, 32
      %v4828 = vld [vmem:[%s4827] sm:$0xf]
      %v4829 = vld [vmem:[%s4827 + $0x4] sm:$0xf]
      %v4830 = vld [vmem:[%s4827 + $0x8] sm:$0xf]
      %v4831 = vld [vmem:[%s4827 + $0xc] sm:$0xf]
      %v4832 = vld [vmem:[%s4827 + $0x10] sm:$0xf]
      %v4833 = vld [vmem:[%s4827 + $0x14] sm:$0xf]
      %v4834 = vld [vmem:[%s4827 + $0x18] sm:$0xf]
      %v4835 = vld [vmem:[%s4827 + $0x1c] sm:$0xf]
      %s4836 = scalar_lea.vmem %s11, 1
      %v4837 = vld [vmem:[%s4836] sm:$0x1]
      %v4839 = vlaneseq
      %v4840 = vshrl.u32 %v4839, 7
      %v4841 = vsub.s32 0, %v4840
      %v4842 = vrot.slane %v4837, %v4841
      %v4852 = vunpack.c.l.b16 %v4828
      %v4853 = vunpack.c.l.b16 %v4829
      %v4854 = vunpack.c.l.b16 %v4830
      %v4855 = vunpack.c.l.b16 %v4831
      %v4856 = vunpack.c.l.b16 %v4832
      %v4857 = vunpack.c.l.b16 %v4833
      %v4858 = vunpack.c.l.b16 %v4834
      %v4859 = vunpack.c.l.b16 %v4835
      %v4860 = vpack.c.b16 %v4853, %v4852
      %v4861 = vpack.c.b16 %v4855, %v4854
      %v4862 = vpack.c.b16 %v4857, %v4856
      %v4863 = vpack.c.b16 %v4859, %v4858
      %v4869 = vsel %vm725, %v4826, 0
      %4871 = vmatprep.subr.bf16.mxu0 0
      %4872 = vmatpush1.bf16.msra.mxu0 %v4860
      %4873 = vmatprep.subr.bf16.mxu0 0
      %4874 = vmatpush1.bf16.msra.mxu0 %v4861
      %4875 = vmatprep.subr.bf16.mxu0 0
      %4876 = vmatpush1.bf16.msra.mxu0 %v4862
      %4877 = vmatprep.subr.bf16.mxu0 0
      %4878 = vmatpush1.bf16.msra.mxu0 %v4863
      %4879 = vmatprep.subr.bf16.mxu0 0
      %4880 = vmatpush1.bf16.msra.mxu0 0
      %4881 = vmatprep.subr.bf16.mxu0 0
      %4882 = vmatpush1.bf16.msra.mxu0 0
      %4883 = vmatprep.subr.bf16.mxu0 0
      %4884 = vmatpush1.bf16.msra.mxu0 0
      %4885 = vmatprep.subr.bf16.mxu0 0
      %4886 = vmatpush1.bf16.msra.mxu0 0
      %4887 = vmatprep.subr.bf16.mxu0 0
      %4888 = vmatpush1.bf16.msra.mxu0 0
      %4889 = vmatprep.subr.bf16.mxu0 0
      %4890 = vmatpush1.bf16.msra.mxu0 0
      %4891 = vmatprep.subr.bf16.mxu0 0
      %4892 = vmatpush1.bf16.msra.mxu0 0
      %4893 = vmatprep.subr.bf16.mxu0 0
      %4894 = vmatpush1.bf16.msra.mxu0 0
      %4895 = vmatprep.subr.bf16.mxu0 0
      %4896 = vmatpush1.bf16.msra.mxu0 0
      %4897 = vmatprep.subr.bf16.mxu0 0
      %4898 = vmatpush1.bf16.msra.mxu0 0
      %4899 = vmatprep.subr.bf16.mxu0 0
      %4900 = vmatpush1.bf16.msra.mxu0 0
      %4901 = vmatprep.subr.bf16.mxu0 0
      %4902 = vmatpush1.bf16.msra.mxu0 0
      %4903 = vmatprep.mubr.bf16.mxu0 0
      %4904 = vmatmul.mubr.bf16.gmra.mrb[0].mxu0 %v4869
      %v4905 = vpop.f32.mrb[0].mxu0
      %v4906 = vadd.f32 %v4842, %v4905
      %v4907 = vpop.f32.mrb[0].mxu0
      %v4908 = vpop.f32.mrb[0].mxu0
      %v4909 = vpop.f32.mrb[0].mxu0
      %4910 = vdwg.mxu0
      %v4911 = vmul.f32 %v4906, %v4906
      %v4912 = vmul.f32 %v4906, %v4911
      %v4913 = vmul.f32 %v4912, 0.044715
      %v4914 = vadd.f32 %v4906, %v4913
      %v4915 = vmul.f32 %v4914, 0.7978846
      %v4916 = vtanh.pop %v4915
      %v4917 = vadd.f32 %v4916, 1.0
      %v4918 = vmul.f32 %v4917, 0.5
      %v4919 = vmul.f32 %v4906, %v4918
      %v4920 = vpack.c.bf16 %v4919, %v4919
      %s4921 = scalar_lea.vmem %s12, 64
      %v4922 = vld [vmem:[%s4921] sm:$0xf]
      %v4923 = vld [vmem:[%s4921 + $0x4] sm:$0xf]
      %v4924 = vld [vmem:[%s4921 + $0x8] sm:$0xf]
      %v4925 = vld [vmem:[%s4921 + $0xc] sm:$0xf]
      %v4926 = vld [vmem:[%s4921 + $0x10] sm:$0xf]
      %v4927 = vld [vmem:[%s4921 + $0x14] sm:$0xf]
      %v4928 = vld [vmem:[%s4921 + $0x18] sm:$0xf]
      %v4929 = vld [vmem:[%s4921 + $0x1c] sm:$0xf]
      %v4930 = vld [vmem:[%s4921 + $0x20] sm:$0xf]
      %v4931 = vld [vmem:[%s4921 + $0x24] sm:$0xf]
      %v4932 = vld [vmem:[%s4921 + $0x28] sm:$0xf]
      %v4933 = vld [vmem:[%s4921 + $0x2c] sm:$0xf]
      %v4934 = vld [vmem:[%s4921 + $0x30] sm:$0xf]
      %v4935 = vld [vmem:[%s4921 + $0x34] sm:$0xf]
      %v4936 = vld [vmem:[%s4921 + $0x38] sm:$0xf]
      %v4937 = vld [vmem:[%s4921 + $0x3c] sm:$0xf]
      %v4939 = vlaneseq
      %v4940 = vshrl.u32 %v4939, 7
      %v4941 = vsub.s32 0, %v4940
      %v4942 = vrot.slane %v4781, %v4941
      %v4960 = vunpack.c.l.b16 %v4922
      %v4961 = vunpack.c.l.b16 %v4923
      %v4962 = vunpack.c.l.b16 %v4924
      %v4963 = vunpack.c.l.b16 %v4925
      %v4964 = vunpack.c.l.b16 %v4926
      %v4965 = vunpack.c.l.b16 %v4927
      %v4966 = vunpack.c.l.b16 %v4928
      %v4967 = vunpack.c.l.b16 %v4929
      %v4968 = vunpack.c.l.b16 %v4930
      %v4969 = vunpack.c.l.b16 %v4931
      %v4970 = vunpack.c.l.b16 %v4932
      %v4971 = vunpack.c.l.b16 %v4933
      %v4972 = vunpack.c.l.b16 %v4934
      %v4973 = vunpack.c.l.b16 %v4935
      %v4974 = vunpack.c.l.b16 %v4936
      %v4975 = vunpack.c.l.b16 %v4937
      %v4976 = vpack.c.b16 %v4961, %v4960
      %v4977 = vpack.c.b16 %v4963, %v4962
      %v4978 = vpack.c.b16 %v4965, %v4964
      %v4979 = vpack.c.b16 %v4967, %v4966
      %v4980 = vpack.c.b16 %v4969, %v4968
      %v4981 = vpack.c.b16 %v4971, %v4970
      %v4982 = vpack.c.b16 %v4973, %v4972
      %v4983 = vpack.c.b16 %v4975, %v4974
      %4992 = vmatprep.subr.bf16.mxu0 0
      %4993 = vmatpush1.bf16.msra.mxu0 %v4976
      %4994 = vmatprep.subr.bf16.mxu0 0
      %4995 = vmatpush1.bf16.msra.mxu0 %v4977
      %4996 = vmatprep.subr.bf16.mxu0 0
      %4997 = vmatpush1.bf16.msra.mxu0 %v4978
      %4998 = vmatprep.subr.bf16.mxu0 0
      %4999 = vmatpush1.bf16.msra.mxu0 %v4979
      %5000 = vmatprep.subr.bf16.mxu0 0
      %5001 = vmatpush1.bf16.msra.mxu0 %v4980
      %5002 = vmatprep.subr.bf16.mxu0 0
      %5003 = vmatpush1.bf16.msra.mxu0 %v4981
      %5004 = vmatprep.subr.bf16.mxu0 0
      %5005 = vmatpush1.bf16.msra.mxu0 %v4982
      %5006 = vmatprep.subr.bf16.mxu0 0
      %5007 = vmatpush1.bf16.msra.mxu0 %v4983
      %5008 = vmatprep.subr.bf16.mxu0 0
      %5009 = vmatpush1.bf16.msra.mxu0 0
      %5010 = vmatprep.subr.bf16.mxu0 0
      %5011 = vmatpush1.bf16.msra.mxu0 0
      %5012 = vmatprep.subr.bf16.mxu0 0
      %5013 = vmatpush1.bf16.msra.mxu0 0
      %5014 = vmatprep.subr.bf16.mxu0 0
      %5015 = vmatpush1.bf16.msra.mxu0 0
      %5016 = vmatprep.subr.bf16.mxu0 0
      %5017 = vmatpush1.bf16.msra.mxu0 0
      %5018 = vmatprep.subr.bf16.mxu0 0
      %5019 = vmatpush1.bf16.msra.mxu0 0
      %5020 = vmatprep.subr.bf16.mxu0 0
      %5021 = vmatpush1.bf16.msra.mxu0 0
      %5022 = vmatprep.subr.bf16.mxu0 0
      %5023 = vmatpush1.bf16.msra.mxu0 0
      %5024 = vmatprep.mubr.bf16.mxu0 0
      %5025 = vmatmul.mubr.bf16.gmra.mrb[0].mxu0 %v4920
      %v5026 = vpop.f32.mrb[0].mxu0
      %v5027 = vadd.f32 %v4942, %v5026
      %v5028 = vpop.f32.mrb[0].mxu0
      %v5029 = vpop.f32.mrb[0].mxu0
      %v5030 = vpop.f32.mrb[0].mxu0
      %5031 = vdwg.mxu0
      %v5032 = vadd.f32 %v4825, %v5027
      %v5033 = vsel %vm725, %v5032, 0.0
      %5034 = vadd.xlane.f32.xlu0 %v5033
      %v5035 = vpop.xlane.xlu0 %5034
      %v5036 = vmul.f32 %v5035, %v893
      %v5037 = vsub.f32 %v5032, %v5036
      %v5038 = vmul.f32 %v5037, %v5037
      %v5039 = vsel %vm725, %v5038, 0.0
      %5040 = vadd.xlane.f32.xlu0 %v5039
      %v5041 = vpop.xlane.xlu0 %5040
      %v5042 = vmul.f32 %v5041, %v893
      %v5043 = vadd.f32 %v5042, 1e-05
      %v5044 = vrsqrt.pop %v5043
      %v5045 = vmul.f32 %v5037, %v5044
      %v5047 = vlaneseq
      %v5048 = vshrl.u32 %v5047, 7
      %v5049 = vsub.s32 0, %v5048
      %v5050 = vrot.slane %v4782, %v5049
      %v5052 = vmul.f32 %v5045, %v5050
      %v5054 = vlaneseq
      %v5055 = vshrl.u32 %v5054, 7
      %v5056 = vsub.s32 0, %v5055
      %v5057 = vrot.slane %v4783, %v5056
      %v5059 = vadd.f32 %v5052, %v5057
      %v5060 = vld [vmem:[%s17] sm:$0x1]
      %v5061 = vld [vmem:[%s17 + $0x1] sm:$0x1]
      %v5062 = vpack.c.bf16 %v5059, %v5059
      %v5063 = vld [vmem:[%s14] sm:$0xf]
      %v5064 = vld [vmem:[%s14 + $0x4] sm:$0xf]
      %v5065 = vld [vmem:[%s14 + $0x8] sm:$0xf]
      %v5066 = vld [vmem:[%s14 + $0xc] sm:$0xf]
      %v5067 = vld [vmem:[%s14 + $0x10] sm:$0xf]
      %v5068 = vld [vmem:[%s14 + $0x14] sm:$0xf]
      %v5069 = vld [vmem:[%s14 + $0x18] sm:$0xf]
      %v5070 = vld [vmem:[%s14 + $0x1c] sm:$0xf]
      %v5072 = vlaneseq
      %v5073 = vshrl.u32 %v5072, 7
      %v5074 = vsub.s32 0, %v5073
      %v5075 = vrot.slane %v5060, %v5074
      %v5085 = vunpack.c.l.b16 %v5063
      %v5086 = vunpack.c.l.b16 %v5064
      %v5087 = vunpack.c.l.b16 %v5065
      %v5088 = vunpack.c.l.b16 %v5066
      %v5089 = vunpack.c.l.b16 %v5067
      %v5090 = vunpack.c.l.b16 %v5068
      %v5091 = vunpack.c.l.b16 %v5069
      %v5092 = vunpack.c.l.b16 %v5070
      %v5093 = vpack.c.b16 %v5086, %v5085
      %v5094 = vpack.c.b16 %v5088, %v5087
      %v5095 = vpack.c.b16 %v5090, %v5089
      %v5096 = vpack.c.b16 %v5092, %v5091
      %v5102 = vsel %vm725, %v5062, 0
      %5104 = vmatprep.subr.bf16.mxu0 0
      %5105 = vmatpush1.bf16.msra.mxu0 %v5093
      %5106 = vmatprep.subr.bf16.mxu0 0
      %5107 = vmatpush1.bf16.msra.mxu0 %v5094
      %5108 = vmatprep.subr.bf16.mxu0 0
      %5109 = vmatpush1.bf16.msra.mxu0 %v5095
      %5110 = vmatprep.subr.bf16.mxu0 0
      %5111 = vmatpush1.bf16.msra.mxu0 %v5096
      %5112 = vmatprep.subr.bf16.mxu0 0
      %5113 = vmatpush1.bf16.msra.mxu0 0
      %5114 = vmatprep.subr.bf16.mxu0 0
      %5115 = vmatpush1.bf16.msra.mxu0 0
      %5116 = vmatprep.subr.bf16.mxu0 0
      %5117 = vmatpush1.bf16.msra.mxu0 0
      %5118 = vmatprep.subr.bf16.mxu0 0
      %5119 = vmatpush1.bf16.msra.mxu0 0
      %5120 = vmatprep.subr.bf16.mxu0 0
      %5121 = vmatpush1.bf16.msra.mxu0 0
      %5122 = vmatprep.subr.bf16.mxu0 0
      %5123 = vmatpush1.bf16.msra.mxu0 0
      %5124 = vmatprep.subr.bf16.mxu0 0
      %5125 = vmatpush1.bf16.msra.mxu0 0
      %5126 = vmatprep.subr.bf16.mxu0 0
      %5127 = vmatpush1.bf16.msra.mxu0 0
      %5128 = vmatprep.subr.bf16.mxu0 0
      %5129 = vmatpush1.bf16.msra.mxu0 0
      %5130 = vmatprep.subr.bf16.mxu0 0
      %5131 = vmatpush1.bf16.msra.mxu0 0
      %5132 = vmatprep.subr.bf16.mxu0 0
      %5133 = vmatpush1.bf16.msra.mxu0 0
      %5134 = vmatprep.subr.bf16.mxu0 0
      %5135 = vmatpush1.bf16.msra.mxu0 0
      %5136 = vmatprep.mubr.bf16.mxu0 0
      %5137 = vmatmul.mubr.bf16.gmra.mrb[0].mxu0 %v5102
      %v5138 = vpop.f32.mrb[0].mxu0
      %v5139 = vadd.f32 %v5075, %v5138
      %v5140 = vpop.f32.mrb[0].mxu0
      %v5141 = vpop.f32.mrb[0].mxu0
      %v5142 = vpop.f32.mrb[0].mxu0
      %5143 = vdwg.mxu0
      %v5144 = vmul.f32 %v5139, %v5139
      %v5145 = vmul.f32 %v5139, %v5144
      %v5146 = vmul.f32 %v5145, 0.044715
      %v5147 = vadd.f32 %v5139, %v5146
      %v5148 = vmul.f32 %v5147, 0.7978846
      %v5149 = vtanh.pop %v5148
      %v5150 = vadd.f32 %v5149, 1.0
      %v5151 = vmul.f32 %v5150, 0.5
      %v5152 = vmul.f32 %v5139, %v5151
      %v5153 = vpack.c.bf16 %v5152, %v5152
      %v5154 = vld [vmem:[%s15] sm:$0xf]
      %v5155 = vld [vmem:[%s15 + $0x4] sm:$0xf]
      %v5156 = vld [vmem:[%s15 + $0x8] sm:$0xf]
      %v5157 = vld [vmem:[%s15 + $0xc] sm:$0xf]
      %v5158 = vld [vmem:[%s15 + $0x10] sm:$0xf]
      %v5159 = vld [vmem:[%s15 + $0x14] sm:$0xf]
      %v5160 = vld [vmem:[%s15 + $0x18] sm:$0xf]
      %v5161 = vld [vmem:[%s15 + $0x1c] sm:$0xf]
      %v5162 = vld [vmem:[%s15 + $0x20] sm:$0xf]
      %v5163 = vld [vmem:[%s15 + $0x24] sm:$0xf]
      %v5164 = vld [vmem:[%s15 + $0x28] sm:$0xf]
      %v5165 = vld [vmem:[%s15 + $0x2c] sm:$0xf]
      %v5166 = vld [vmem:[%s15 + $0x30] sm:$0xf]
      %v5167 = vld [vmem:[%s15 + $0x34] sm:$0xf]
      %v5168 = vld [vmem:[%s15 + $0x38] sm:$0xf]
      %v5169 = vld [vmem:[%s15 + $0x3c] sm:$0xf]
      %v5171 = vlaneseq
      %v5172 = vshrl.u32 %v5171, 7
      %v5173 = vsub.s32 0, %v5172
      %v5174 = vrot.slane %v5061, %v5173
      %v5192 = vunpack.c.l.b16 %v5154
      %v5193 = vunpack.c.l.b16 %v5155
      %v5194 = vunpack.c.l.b16 %v5156
      %v5195 = vunpack.c.l.b16 %v5157
      %v5196 = vunpack.c.l.b16 %v5158
      %v5197 = vunpack.c.l.b16 %v5159
      %v5198 = vunpack.c.l.b16 %v5160
      %v5199 = vunpack.c.l.b16 %v5161
      %v5200 = vunpack.c.l.b16 %v5162
      %v5201 = vunpack.c.l.b16 %v5163
      %v5202 = vunpack.c.l.b16 %v5164
      %v5203 = vunpack.c.l.b16 %v5165
      %v5204 = vunpack.c.l.b16 %v5166
      %v5205 = vunpack.c.l.b16 %v5167
      %v5206 = vunpack.c.l.b16 %v5168
      %v5207 = vunpack.c.l.b16 %v5169
      %v5208 = vpack.c.b16 %v5193, %v5192
      %v5209 = vpack.c.b16 %v5195, %v5194
      %v5210 = vpack.c.b16 %v5197, %v5196
      %v5211 = vpack.c.b16 %v5199, %v5198
      %v5212 = vpack.c.b16 %v5201, %v5200
      %v5213 = vpack.c.b16 %v5203, %v5202
      %v5214 = vpack.c.b16 %v5205, %v5204
      %v5215 = vpack.c.b16 %v5207, %v5206
      %5224 = vmatprep.subr.bf16.mxu0 0
      %5225 = vmatpush1.bf16.msra.mxu0 %v5208
      %5226 = vmatprep.subr.bf16.mxu0 0
      %5227 = vmatpush1.bf16.msra.mxu0 %v5209
      %5228 = vmatprep.subr.bf16.mxu0 0
      %5229 = vmatpush1.bf16.msra.mxu0 %v5210
      %5230 = vmatprep.subr.bf16.mxu0 0
      %5231 = vmatpush1.bf16.msra.mxu0 %v5211
      %5232 = vmatprep.subr.bf16.mxu0 0
      %5233 = vmatpush1.bf16.msra.mxu0 %v5212
      %5234 = vmatprep.subr.bf16.mxu0 0
      %5235 = vmatpush1.bf16.msra.mxu0 %v5213
      %5236 = vmatprep.subr.bf16.mxu0 0
      %5237 = vmatpush1.bf16.msra.mxu0 %v5214
      %5238 = vmatprep.subr.bf16.mxu0 0
      %5239 = vmatpush1.bf16.msra.mxu0 %v5215
      %5240 = vmatprep.subr.bf16.mxu0 0
      %5241 = vmatpush1.bf16.msra.mxu0 0
      %5242 = vmatprep.subr.bf16.mxu0 0
      %5243 = vmatpush1.bf16.msra.mxu0 0
      %5244 = vmatprep.subr.bf16.mxu0 0
      %5245 = vmatpush1.bf16.msra.mxu0 0
      %5246 = vmatprep.subr.bf16.mxu0 0
      %5247 = vmatpush1.bf16.msra.mxu0 0
      %5248 = vmatprep.subr.bf16.mxu0 0
      %5249 = vmatpush1.bf16.msra.mxu0 0
      %5250 = vmatprep.subr.bf16.mxu0 0
      %5251 = vmatpush1.bf16.msra.mxu0 0
      %5252 = vmatprep.subr.bf16.mxu0 0
      %5253 = vmatpush1.bf16.msra.mxu0 0
      %5254 = vmatprep.subr.bf16.mxu0 0
      %5255 = vmatpush1.bf16.msra.mxu0 0
      %5256 = vmatprep.mubr.bf16.mxu0 0
      %5257 = vmatmul.mubr.bf16.gmra.mrb[0].mxu0 %v5153
      %v5258 = vpop.f32.mrb[0].mxu0
      %v5259 = vadd.f32 %v5174, %v5258
      %v5260 = vpop.f32.mrb[0].mxu0
      %v5261 = vpop.f32.mrb[0].mxu0
      %v5262 = vpop.f32.mrb[0].mxu0
      %5263 = vdwg.mxu0
      %v5264 = vmul.f32 %v5259, %v5259
      %v5265 = vmul.f32 %v5259, %v5264
      %v5266 = vmul.f32 %v5265, 0.044715
      %v5267 = vadd.f32 %v5259, %v5266
      %v5268 = vmul.f32 %v5267, 0.7978846
      %v5269 = vtanh.pop %v5268
      %v5270 = vadd.f32 %v5269, 1.0
      %v5271 = vmul.f32 %v5270, 0.5
      %v5272 = vmul.f32 %v5259, %v5271
      %v5273 = vpack.c.bf16 %v5272, %v5272
      %v5274 = vld [vmem:[%s16] sm:$0xf]
      %v5275 = vld [vmem:[%s16 + $0x4] sm:$0xf]
      %v5276 = vld [vmem:[%s16 + $0x8] sm:$0xf]
      %v5277 = vld [vmem:[%s16 + $0xc] sm:$0xf]
      %v5278 = vld [vmem:[%s16 + $0x10] sm:$0xf]
      %v5279 = vld [vmem:[%s16 + $0x14] sm:$0xf]
      %v5280 = vld [vmem:[%s16 + $0x18] sm:$0xf]
      %v5281 = vld [vmem:[%s16 + $0x1c] sm:$0xf]
      %v5282 = vld [vmem:[%s16 + $0x20] sm:$0xf]
      %v5283 = vld [vmem:[%s16 + $0x24] sm:$0xf]
      %v5284 = vld [vmem:[%s16 + $0x28] sm:$0xf]
      %v5285 = vld [vmem:[%s16 + $0x2c] sm:$0xf]
      %v5286 = vld [vmem:[%s16 + $0x30] sm:$0xf]
      %v5287 = vld [vmem:[%s16 + $0x34] sm:$0xf]
      %v5288 = vld [vmem:[%s16 + $0x38] sm:$0xf]
      %v5289 = vld [vmem:[%s16 + $0x3c] sm:$0xf]
      %v5290 = vld [vmem:[%s18] sm:$0x1]
      %v5292 = vlaneseq
      %v5293 = vshrl.u32 %v5292, 7
      %v5294 = vsub.s32 0, %v5293
      %v5295 = vrot.slane %v5290, %v5294
      %v5313 = vunpack.c.l.b16 %v5274
      %v5314 = vunpack.c.l.b16 %v5275
      %v5315 = vunpack.c.l.b16 %v5276
      %v5316 = vunpack.c.l.b16 %v5277
      %v5317 = vunpack.c.l.b16 %v5278
      %v5318 = vunpack.c.l.b16 %v5279
      %v5319 = vunpack.c.l.b16 %v5280
      %v5320 = vunpack.c.l.b16 %v5281
      %v5321 = vunpack.c.l.b16 %v5282
      %v5322 = vunpack.c.l.b16 %v5283
      %v5323 = vunpack.c.l.b16 %v5284
      %v5324 = vunpack.c.l.b16 %v5285
      %v5325 = vunpack.c.l.b16 %v5286
      %v5326 = vunpack.c.l.b16 %v5287
      %v5327 = vunpack.c.l.b16 %v5288
      %v5328 = vunpack.c.l.b16 %v5289
      %v5329 = vpack.c.b16 %v5314, %v5313
      %v5330 = vpack.c.b16 %v5316, %v5315
      %v5331 = vpack.c.b16 %v5318, %v5317
      %v5332 = vpack.c.b16 %v5320, %v5319
      %v5333 = vpack.c.b16 %v5322, %v5321
      %v5334 = vpack.c.b16 %v5324, %v5323
      %v5335 = vpack.c.b16 %v5326, %v5325
      %v5336 = vpack.c.b16 %v5328, %v5327
      %5345 = vmatprep.subr.bf16.mxu0 0
      %5346 = vmatpush1.bf16.msra.mxu0 %v5329
      %5347 = vmatprep.subr.bf16.mxu0 0
      %5348 = vmatpush1.bf16.msra.mxu0 %v5330
      %5349 = vmatprep.subr.bf16.mxu0 0
      %5350 = vmatpush1.bf16.msra.mxu0 %v5331
      %5351 = vmatprep.subr.bf16.mxu0 0
      %5352 = vmatpush1.bf16.msra.mxu0 %v5332
      %5353 = vmatprep.subr.bf16.mxu0 0
      %5354 = vmatpush1.bf16.msra.mxu0 %v5333
      %5355 = vmatprep.subr.bf16.mxu0 0
      %5356 = vmatpush1.bf16.msra.mxu0 %v5334
      %5357 = vmatprep.subr.bf16.mxu0 0
      %5358 = vmatpush1.bf16.msra.mxu0 %v5335
      %5359 = vmatprep.subr.bf16.mxu0 0
      %5360 = vmatpush1.bf16.msra.mxu0 %v5336
      %5361 = vmatprep.subr.bf16.mxu0 0
      %5362 = vmatpush1.bf16.msra.mxu0 0
      %5363 = vmatprep.subr.bf16.mxu0 0
      %5364 = vmatpush1.bf16.msra.mxu0 0
      %5365 = vmatprep.subr.bf16.mxu0 0
      %5366 = vmatpush1.bf16.msra.mxu0 0
      %5367 = vmatprep.subr.bf16.mxu0 0
      %5368 = vmatpush1.bf16.msra.mxu0 0
      %5369 = vmatprep.subr.bf16.mxu0 0
      %5370 = vmatpush1.bf16.msra.mxu0 0
      %5371 = vmatprep.subr.bf16.mxu0 0
      %5372 = vmatpush1.bf16.msra.mxu0 0
      %5373 = vmatprep.subr.bf16.mxu0 0
      %5374 = vmatpush1.bf16.msra.mxu0 0
      %5375 = vmatprep.subr.bf16.mxu0 0
      %5376 = vmatpush1.bf16.msra.mxu0 0
      %5377 = vmatprep.mubr.bf16.mxu0 0
      %5378 = vmatmul.mubr.bf16.gmra.mrb[0].mxu0 %v5273
      %v5379 = vpop.f32.mrb[0].mxu0
      %v5380 = vadd.f32 %v5295, %v5379
      %v5381 = vpop.f32.mrb[0].mxu0
      %v5382 = vpop.f32.mrb[0].mxu0
      %v5383 = vpop.f32.mrb[0].mxu0
      %5384 = vdwg.mxu0
      %5385 = vst [vmem:[%s611] sm:$0xff] %v5380
      %p5386 = scmp.lt.s32.totalorder %s30, 1
      %s5387 = scalar_select %p5386, %s30, 1
      %s5388 = smul.addr %s5387, 8
      %s5389 = scalar_lea.vmem %s19, %s5388
      // Predicated region
      $region97: #{wave_function_encoding.1} parent=95 // pred_check
        %p5390 = pneg %p457
      $region98: #{wave_function_encoding.1} parent=95 // pred_check_branch
        %5392 = sbr.rel (%p5390) target = $region100
      $region99: #{wave_function_encoding.1} parent=95 // pred_region
        _
      $region100: #{wave_function_encoding.1} parent=95 // pred_fallthru
        _
    $region96: #{wave_function_encoding.1} parent=5 // pred_fallthru
      _
    %p5393 = scmp.le.s32.totalorder 2, %s25
    // Predicated region
    $region101: #{wave_function_encoding.1} parent=5 // pred_check
      %p5394 = pneg %p5393
    $region102: #{wave_function_encoding.1} parent=5 // pred_check_branch
      %5396 = sbr.rel (%p5394) target = $region104
    $region103: #{wave_function_encoding.1} parent=5 // pred_region
      %s5397 = ssub.s32 %s25, 2
      // Predicated region
      $region105: #{wave_function_encoding.1} parent=103 // pred_check
        %p5398 = pneg %p463
      $region106: #{wave_function_encoding.1} parent=103 // pred_check_branch
        %5400 = sbr.rel (%p5398) target = $region108
      $region107: #{wave_function_encoding.1} parent=103 // pred_region
        %p5401 = scmp.lt.s32.totalorder %s31, 1
        %s5402 = scalar_select %p5401, %s31, 1
        %s5403 = smul.addr %s5402, 8
        %s5404 = scalar_lea.vmem %s19, %s5403
      $region108: #{wave_function_encoding.1} parent=103 // pred_fallthru
        _
    $region104: #{wave_function_encoding.1} parent=5 // pred_fallthru
      _
  $region6: #{wave_function_encoding.1} parent=0 // loop_footer
    %s29 = sadd.s32 1, %s25
  $region7: #{wave_function_encoding.1} parent=0 // loop_footer_branch
    %24 = sbr.rel target = $region3
  $region8: #{wave_function_encoding.1} parent=0 // loop_exit
    _

</llo_original>
